<compile_context>
chip_gen: v7x
topology: tpu7x:2x2x1
jax: 0.10.0
libtpu: 0.0.40
codegen_flags: <defaults>
</compile_context>

<pallas_src>
import math
from functools import partial

import numpy as np
import jax
import jax.numpy as jnp
from jax.experimental import pallas as pl
from jax.experimental.pallas import tpu as pltpu


def _shifted_dft_matrix(n):
    """Matrix A with A @ x == fftshift(fft(ifftshift(x))) for a length-n vector."""
    eye = np.eye(n, dtype=np.float64)
    return np.fft.fftshift(np.fft.fft(np.fft.ifftshift(eye, axes=0), axis=0), axes=0)


def _bartlett_window(n):
    """torch.bartlett_window(n) (periodic=True, the PyTorch default)."""
    k = np.arange(n, dtype=np.float64)
    return 1.0 - np.abs(2.0 * k / n - 1.0)


def _pick_group(BC, M, N, oh, ow, mm_elem=4, budget_bytes=12 << 20, max_unroll=8):
    """Slabs (batch*channel planes) per grid step.

    Models actual VMEM residency: 2x double-buffered input slabs (amp, P),
    2x double-buffered outputs (I1/Yr/Yi), the 6 (double-buffered) constant DFT
    operands, plus per-slab live elementwise temporaries.  G is capped so that
    S = BC // G >= 2 whenever BC >= 2 (keeps the 'parallel' grid axis able to
    feed both v7x TensorCores; harmless on v5e/v6e) and so the static in-kernel
    unroll stays small.  The 12 MiB default budget is safe on every generation
    (v5e scoped default 16 MiB) given vmem_limit_bytes=32 MiB below.
    """
    const = 2 * mm_elem * 3 * (oh * M + N * ow)   # 6 constants, double-buffered
    live = 8 * 4 * M * N                          # per-slab elementwise temps (f32)
    cap = BC if BC < 2 else BC // 2               # keep S >= 2 when possible
    cap = min(cap, max_unroll)
    best = 1
    for g in range(1, cap + 1):
        if BC % g:
            continue
        stream = 2 * 2 * 4 * g * M * N            # amp + P slabs, double-buffered
        outs = 3 * 2 * 4 * g * oh * ow            # I1/Yr/Yi, double-buffered
        if const + stream + outs + live <= budget_bytes:
            best = g
    return best


def _make_kernel(G, matmul_dtype):
    cd = matmul_dtype

    def kernel(amp_ref, p_ref, ar_ref, ai_ref, as_ref, cr_ref, ci_ref, cs_ref,
               i1_ref, yr_ref, yi_ref):
        # Constant DFT operands (already crop- and window-folded host-side).
        Ar = ar_ref[...]
        Ai = ai_ref[...]
        As = as_ref[...]
        Cr = cr_ref[...]
        Ci = ci_ref[...]
        Cs = cs_ref[...]

        # Static per-slab loop: each slab does two small plain 2-D MXU matmuls
        # (stage-1 (oh,M)@(M,N), stage-2 (oh,N)@(N,ow)).  No block-diagonal
        # operand -> stage 2 does exactly the necessary FLOPs.
        for g in range(G):
            Pg = p_ref[g]              # already scaled by pi in the wrapper
            amp = amp_ref[g]           # already sqrt(I) in the wrapper
            Ur = jnp.cos(Pg) * amp
            Ui = jnp.sin(Pg) * amp
            # Cast to the matmul dtype immediately so f32 temporaries die
            # before the matmuls (keeps the live working set small for bf16).
            Us = (Ur + Ui).astype(cd)
            Urc = Ur.astype(cd)
            Uic = Ui.astype(cd)

            # Stage 1 (rows): T = A' @ U.  Gauss 3-multiply complex product
            # (As = Ar + Ai precomputed host-side).
            t1 = jnp.dot(Ar, Urc, preferred_element_type=jnp.float32)
            t2 = jnp.dot(Ai, Uic, preferred_element_type=jnp.float32)
            t3 = jnp.dot(As, Us, preferred_element_type=jnp.float32)
            Tr = t1 - t2                              # (oh, N)
            Ti = t3 - t1 - t2

            Ts = (Tr + Ti).astype(cd)
            Trc = Tr.astype(cd)
            Tic = Ti.astype(cd)

            # Stage 2 (cols): Y = T @ Ct' with the single shared (N, ow) operand.
            s1 = jnp.dot(Trc, Cr, preferred_element_type=jnp.float32)
            s2 = jnp.dot(Tic, Ci, preferred_element_type=jnp.float32)
            s3 = jnp.dot(Ts, Cs, preferred_element_type=jnp.float32)
            Yr = s1 - s2                              # (oh, ow)
            Yi = s3 - s1 - s2

            i1_ref[g] = Yr * Yr + Yi * Yi             # |U_out|^2
            yr_ref[g] = Yr
            yi_ref[g] = Yi

    return kernel


def real_fft_forward(I, P, out_size, window=True, matmul_dtype=jnp.float32):
    B, C, M, N = I.shape
    # Synthetic config: fullsize == window_size == input spatial size, so the
    # CenterCrop-pad to self.fullsize in the original module is the identity.
    fullsize = M
    assert M == N == fullsize, "synthetic config assumes square input == fullsize"
    oh = ow = int(out_size)
    assert 0 < oh <= M and 0 < ow <= N
    BC = B * C

    # torchvision CenterCrop offsets
    r0 = int(round((M - oh) / 2.0))
    c0 = int(round((N - ow) / 2.0))

    # ---- host-side constant folding (crop + Bartlett window into DFT mats) ----
    w = _bartlett_window(fullsize) if window else np.ones(fullsize, np.float64)
    A = _shifted_dft_matrix(M)                    # U_out = A @ U @ A^T  (M == N)
    Ct = _shifted_dft_matrix(N).T
    Acrop = A[r0:r0 + oh, :] * w[None, :]         # (oh, M): row crop + col window
    Ctcrop = Ct[:, c0:c0 + ow] * w[:, None]       # (N, ow): col crop + row window

    Ar = jnp.asarray(Acrop.real, matmul_dtype)
    Ai = jnp.asarray(Acrop.imag, matmul_dtype)
    As = jnp.asarray(Acrop.real + Acrop.imag, matmul_dtype)
    Cr = jnp.asarray(Ctcrop.real, matmul_dtype)
    Ci = jnp.asarray(Ctcrop.imag, matmul_dtype)
    Cs = jnp.asarray(Ctcrop.real + Ctcrop.imag, matmul_dtype)

    mm_elem = jnp.dtype(matmul_dtype).itemsize
    G = _pick_group(BC, M, N, oh, ow, mm_elem=mm_elem)
    S = BC // G

    # Natural (BC, M, N) layout — no wrapper transpose (no extra HBM round trip
    # of both inputs).  sqrt(I) and the *pi scale fuse into this reshape pass,
    # so the kernel's EUP only does cos/sin.
    amp = jnp.sqrt(jnp.asarray(I, jnp.float32)).reshape(BC, M, N)
    Pw = (jnp.asarray(P, jnp.float32) * math.pi).reshape(BC, M, N)

    kernel = _make_kernel(G, matmul_dtype)

    grid_spec = pltpu.PrefetchScalarGridSpec(
        num_scalar_prefetch=0,
        grid=(S,),
        in_specs=[
            pl.BlockSpec((G, M, N), lambda s: (s, 0, 0)),   # sqrt(I) slabs
            pl.BlockSpec((G, M, N), lambda s: (s, 0, 0)),   # pi*P slabs
            pl.BlockSpec((oh, M), lambda s: (0, 0)),        # Re(A')
            pl.BlockSpec((oh, M), lambda s: (0, 0)),        # Im(A')
            pl.BlockSpec((oh, M), lambda s: (0, 0)),        # Re+Im(A')
            pl.BlockSpec((N, ow), lambda s: (0, 0)),        # Re(Ct')
            pl.BlockSpec((N, ow), lambda s: (0, 0)),        # Im(Ct')
            pl.BlockSpec((N, ow), lambda s: (0, 0)),        # Re+Im(Ct')
        ],
        out_specs=[
            pl.BlockSpec((G, oh, ow), lambda s: (s, 0, 0)),  # I1
            pl.BlockSpec((G, oh, ow), lambda s: (s, 0, 0)),  # Re(U_out)
            pl.BlockSpec((G, oh, ow), lambda s: (s, 0, 0)),  # Im(U_out)
        ],
    )

    i1, yr, yi = pl.pallas_call(
        kernel,
        out_shape=(
            jax.ShapeDtypeStruct((BC, oh, ow), jnp.float32),
            jax.ShapeDtypeStruct((BC, oh, ow), jnp.float32),
            jax.ShapeDtypeStruct((BC, oh, ow), jnp.float32),
        ),
        grid_spec=grid_spec,
        compiler_params=pltpu.CompilerParams(
            dimension_semantics=("parallel",),     # grid steps fully independent
            vmem_limit_bytes=32 * 1024 * 1024,     # explicit; _pick_group stays under
        ),
    )(amp, Pw, Ar, Ai, As, Cr, Ci, Cs)

    I1 = i1.reshape(B, C, oh, ow)
    # Global max over the whole batch, like torch.max(torch.max(I1)).
    # All-zero input yields NaN/Inf, matching PyTorch semantics (no clamp).
    outI1 = I1 / jnp.max(I1)
    # TODO(synk): angle() kept as plain-JAX atan2 on the tiny cropped output
    # (lowering atan2 inside the Mosaic kernel is avoided for portability).
    phi1 = jnp.arctan2(yi, yr).reshape(B, C, oh, ow)
    return outI1, phi1


if __name__ == "__main__":
    key = jax.random.PRNGKey(0)
    k1, k2 = jax.random.split(key)
    B, C, Ssp = 2, 4, 16
    out_size = 8
    I = jax.random.uniform(k1, (B, C, Ssp, Ssp), dtype=jnp.float32)            # intensity >= 0
    P = jax.random.uniform(k2, (B, C, Ssp, Ssp), dtype=jnp.float32,
                           minval=-1.0, maxval=1.0)                            # phase (pre * pi)
    outI1, phi1 = real_fft_forward(I, P, out_size, window=True)
    jax.block_until_ready((outI1, phi1))
    assert np.all(np.isfinite(np.asarray(outI1)))
    assert np.all(np.isfinite(np.asarray(phi1)))
    print("KERNEL_OK")
</pallas_src>

<mosaic_0001>
module attributes {stable_mosaic.version = 11 : i64} {
  func.func @kernel(%arg0: i32, %arg1: memref<4x16x16xf32, #tpu.memory_space<vmem>>, %arg2: memref<4x16x16xf32, #tpu.memory_space<vmem>>, %arg3: memref<8x16xf32, #tpu.memory_space<vmem>>, %arg4: memref<8x16xf32, #tpu.memory_space<vmem>>, %arg5: memref<8x16xf32, #tpu.memory_space<vmem>>, %arg6: memref<16x8xf32, #tpu.memory_space<vmem>>, %arg7: memref<16x8xf32, #tpu.memory_space<vmem>>, %arg8: memref<16x8xf32, #tpu.memory_space<vmem>>, %arg9: memref<4x8x8xf32, #tpu.memory_space<vmem>>, %arg10: memref<4x8x8xf32, #tpu.memory_space<vmem>>, %arg11: memref<4x8x8xf32, #tpu.memory_space<vmem>>) attributes {dimension_semantics = [#tpu.dimension_semantics<parallel>], iteration_bounds = array<i64: 2>, scalar_prefetch = 0 : i64, scratch_operands = 0 : i64, tpu.core_type = #tpu.core_type<tc>, window_params = [{transform_indices = @transform_0, window_bounds = array<i64: 4, 16, 16>}, {transform_indices = @transform_1, window_bounds = array<i64: 4, 16, 16>}, {pipeline_mode = #tpu.pipeline_mode<synchronous>, transform_indices = @transform_2, window_bounds = array<i64: 8, 16>}, {pipeline_mode = #tpu.pipeline_mode<synchronous>, transform_indices = @transform_3, window_bounds = array<i64: 8, 16>}, {pipeline_mode = #tpu.pipeline_mode<synchronous>, transform_indices = @transform_4, window_bounds = array<i64: 8, 16>}, {pipeline_mode = #tpu.pipeline_mode<synchronous>, transform_indices = @transform_5, window_bounds = array<i64: 16, 8>}, {pipeline_mode = #tpu.pipeline_mode<synchronous>, transform_indices = @transform_6, window_bounds = array<i64: 16, 8>}, {pipeline_mode = #tpu.pipeline_mode<synchronous>, transform_indices = @transform_7, window_bounds = array<i64: 16, 8>}, {transform_indices = @transform_8, window_bounds = array<i64: 4, 8, 8>}, {transform_indices = @transform_9, window_bounds = array<i64: 4, 8, 8>}, {transform_indices = @transform_10, window_bounds = array<i64: 4, 8, 8>}]} {
    %c0 = arith.constant 0 : index
    %c0_0 = arith.constant 0 : index
    %0 = vector.load %arg3[%c0, %c0_0] : memref<8x16xf32, #tpu.memory_space<vmem>>, vector<8x16xf32>
    %c0_1 = arith.constant 0 : index
    %c0_2 = arith.constant 0 : index
    %1 = vector.load %arg4[%c0_1, %c0_2] : memref<8x16xf32, #tpu.memory_space<vmem>>, vector<8x16xf32>
    %c0_3 = arith.constant 0 : index
    %c0_4 = arith.constant 0 : index
    %2 = vector.load %arg5[%c0_3, %c0_4] : memref<8x16xf32, #tpu.memory_space<vmem>>, vector<8x16xf32>
    %c0_5 = arith.constant 0 : index
    %c0_6 = arith.constant 0 : index
    %3 = vector.load %arg6[%c0_5, %c0_6] : memref<16x8xf32, #tpu.memory_space<vmem>>, vector<16x8xf32>
    %c0_7 = arith.constant 0 : index
    %c0_8 = arith.constant 0 : index
    %4 = vector.load %arg7[%c0_7, %c0_8] : memref<16x8xf32, #tpu.memory_space<vmem>>, vector<16x8xf32>
    %c0_9 = arith.constant 0 : index
    %c0_10 = arith.constant 0 : index
    %5 = vector.load %arg8[%c0_9, %c0_10] : memref<16x8xf32, #tpu.memory_space<vmem>>, vector<16x8xf32>
    %c0_11 = arith.constant 0 : index
    %c0_12 = arith.constant 0 : index
    %c0_13 = arith.constant 0 : index
    %6 = vector.load %arg2[%c0_11, %c0_12, %c0_13] : memref<4x16x16xf32, #tpu.memory_space<vmem>>, vector<1x16x16xf32>
    %7 = vector.shape_cast %6 : vector<1x16x16xf32> to vector<16x16xf32>
    %c0_14 = arith.constant 0 : index
    %c0_15 = arith.constant 0 : index
    %c0_16 = arith.constant 0 : index
    %8 = vector.load %arg1[%c0_14, %c0_15, %c0_16] : memref<4x16x16xf32, #tpu.memory_space<vmem>>, vector<1x16x16xf32>
    %9 = vector.shape_cast %8 : vector<1x16x16xf32> to vector<16x16xf32>
    %10 = math.cos %7 : vector<16x16xf32>
    %11 = arith.mulf %10, %9 : vector<16x16xf32>
    %12 = math.sin %7 : vector<16x16xf32>
    %13 = arith.mulf %12, %9 : vector<16x16xf32>
    %14 = arith.addf %11, %13 : vector<16x16xf32>
    %cst = arith.constant dense<0.000000e+00> : vector<8x16xf32>
    %15 = tpu.matmul %0, %11, %cst {dimension_numbers = #tpu.dot_dimension_numbers<[1], [0], [0], [1], [0, 0, 1, 1], [], []>} : vector<8x16xf32>, vector<16x16xf32>, vector<8x16xf32> -> vector<8x16xf32>
    %cst_17 = arith.constant dense<0.000000e+00> : vector<8x16xf32>
    %16 = tpu.matmul %1, %13, %cst_17 {dimension_numbers = #tpu.dot_dimension_numbers<[1], [0], [0], [1], [0, 0, 1, 1], [], []>} : vector<8x16xf32>, vector<16x16xf32>, vector<8x16xf32> -> vector<8x16xf32>
    %cst_18 = arith.constant dense<0.000000e+00> : vector<8x16xf32>
    %17 = tpu.matmul %2, %14, %cst_18 {dimension_numbers = #tpu.dot_dimension_numbers<[1], [0], [0], [1], [0, 0, 1, 1], [], []>} : vector<8x16xf32>, vector<16x16xf32>, vector<8x16xf32> -> vector<8x16xf32>
    %18 = arith.subf %15, %16 : vector<8x16xf32>
    %19 = arith.subf %17, %15 : vector<8x16xf32>
    %20 = arith.subf %19, %16 : vector<8x16xf32>
    %21 = arith.addf %18, %20 : vector<8x16xf32>
    %cst_19 = arith.constant dense<0.000000e+00> : vector<8x8xf32>
    %22 = tpu.matmul %18, %3, %cst_19 {dimension_numbers = #tpu.dot_dimension_numbers<[1], [0], [0], [1], [0, 0, 1, 1], [], []>} : vector<8x16xf32>, vector<16x8xf32>, vector<8x8xf32> -> vector<8x8xf32>
    %cst_20 = arith.constant dense<0.000000e+00> : vector<8x8xf32>
    %23 = tpu.matmul %20, %4, %cst_20 {dimension_numbers = #tpu.dot_dimension_numbers<[1], [0], [0], [1], [0, 0, 1, 1], [], []>} : vector<8x16xf32>, vector<16x8xf32>, vector<8x8xf32> -> vector<8x8xf32>
    %cst_21 = arith.constant dense<0.000000e+00> : vector<8x8xf32>
    %24 = tpu.matmul %21, %5, %cst_21 {dimension_numbers = #tpu.dot_dimension_numbers<[1], [0], [0], [1], [0, 0, 1, 1], [], []>} : vector<8x16xf32>, vector<16x8xf32>, vector<8x8xf32> -> vector<8x8xf32>
    %25 = arith.subf %22, %23 : vector<8x8xf32>
    %26 = arith.subf %24, %22 : vector<8x8xf32>
    %27 = arith.subf %26, %23 : vector<8x8xf32>
    %28 = arith.mulf %25, %25 : vector<8x8xf32>
    %29 = arith.mulf %27, %27 : vector<8x8xf32>
    %30 = arith.addf %28, %29 : vector<8x8xf32>
    %c0_22 = arith.constant 0 : index
    %c0_23 = arith.constant 0 : index
    %c0_24 = arith.constant 0 : index
    %31 = vector.load %arg9[%c0_22, %c0_23, %c0_24] : memref<4x8x8xf32, #tpu.memory_space<vmem>>, vector<1x8x8xf32>
    %32 = vector.shape_cast %31 : vector<1x8x8xf32> to vector<8x8xf32>
    %33 = vector.shape_cast %30 : vector<8x8xf32> to vector<1x8x8xf32>
    tpu.vector_store %arg9[%c0_22, %c0_23, %c0_24], %33 {strides = array<i32>} : memref<4x8x8xf32, #tpu.memory_space<vmem>>, vector<1x8x8xf32>,
    %c0_25 = arith.constant 0 : index
    %c0_26 = arith.constant 0 : index
    %c0_27 = arith.constant 0 : index
    %34 = vector.load %arg10[%c0_25, %c0_26, %c0_27] : memref<4x8x8xf32, #tpu.memory_space<vmem>>, vector<1x8x8xf32>
    %35 = vector.shape_cast %34 : vector<1x8x8xf32> to vector<8x8xf32>
    %36 = vector.shape_cast %25 : vector<8x8xf32> to vector<1x8x8xf32>
    tpu.vector_store %arg10[%c0_25, %c0_26, %c0_27], %36 {strides = array<i32>} : memref<4x8x8xf32, #tpu.memory_space<vmem>>, vector<1x8x8xf32>,
    %c0_28 = arith.constant 0 : index
    %c0_29 = arith.constant 0 : index
    %c0_30 = arith.constant 0 : index
    %37 = vector.load %arg11[%c0_28, %c0_29, %c0_30] : memref<4x8x8xf32, #tpu.memory_space<vmem>>, vector<1x8x8xf32>
    %38 = vector.shape_cast %37 : vector<1x8x8xf32> to vector<8x8xf32>
    %39 = vector.shape_cast %27 : vector<8x8xf32> to vector<1x8x8xf32>
    tpu.vector_store %arg11[%c0_28, %c0_29, %c0_30], %39 {strides = array<i32>} : memref<4x8x8xf32, #tpu.memory_space<vmem>>, vector<1x8x8xf32>,
    %c1 = arith.constant 1 : index
    %c0_31 = arith.constant 0 : index
    %c0_32 = arith.constant 0 : index
    %40 = vector.load %arg2[%c1, %c0_31, %c0_32] : memref<4x16x16xf32, #tpu.memory_space<vmem>>, vector<1x16x16xf32>
    %41 = vector.shape_cast %40 : vector<1x16x16xf32> to vector<16x16xf32>
    %c1_33 = arith.constant 1 : index
    %c0_34 = arith.constant 0 : index
    %c0_35 = arith.constant 0 : index
    %42 = vector.load %arg1[%c1_33, %c0_34, %c0_35] : memref<4x16x16xf32, #tpu.memory_space<vmem>>, vector<1x16x16xf32>
    %43 = vector.shape_cast %42 : vector<1x16x16xf32> to vector<16x16xf32>
    %44 = math.cos %41 : vector<16x16xf32>
    %45 = arith.mulf %44, %43 : vector<16x16xf32>
    %46 = math.sin %41 : vector<16x16xf32>
    %47 = arith.mulf %46, %43 : vector<16x16xf32>
    %48 = arith.addf %45, %47 : vector<16x16xf32>
    %cst_36 = arith.constant dense<0.000000e+00> : vector<8x16xf32>
    %49 = tpu.matmul %0, %45, %cst_36 {dimension_numbers = #tpu.dot_dimension_numbers<[1], [0], [0], [1], [0, 0, 1, 1], [], []>} : vector<8x16xf32>, vector<16x16xf32>, vector<8x16xf32> -> vector<8x16xf32>
    %cst_37 = arith.constant dense<0.000000e+00> : vector<8x16xf32>
    %50 = tpu.matmul %1, %47, %cst_37 {dimension_numbers = #tpu.dot_dimension_numbers<[1], [0], [0], [1], [0, 0, 1, 1], [], []>} : vector<8x16xf32>, vector<16x16xf32>, vector<8x16xf32> -> vector<8x16xf32>
    %cst_38 = arith.constant dense<0.000000e+00> : vector<8x16xf32>
    %51 = tpu.matmul %2, %48, %cst_38 {dimension_numbers = #tpu.dot_dimension_numbers<[1], [0], [0], [1], [0, 0, 1, 1], [], []>} : vector<8x16xf32>, vector<16x16xf32>, vector<8x16xf32> -> vector<8x16xf32>
    %52 = arith.subf %49, %50 : vector<8x16xf32>
    %53 = arith.subf %51, %49 : vector<8x16xf32>
    %54 = arith.subf %53, %50 : vector<8x16xf32>
    %55 = arith.addf %52, %54 : vector<8x16xf32>
    %cst_39 = arith.constant dense<0.000000e+00> : vector<8x8xf32>
    %56 = tpu.matmul %52, %3, %cst_39 {dimension_numbers = #tpu.dot_dimension_numbers<[1], [0], [0], [1], [0, 0, 1, 1], [], []>} : vector<8x16xf32>, vector<16x8xf32>, vector<8x8xf32> -> vector<8x8xf32>
    %cst_40 = arith.constant dense<0.000000e+00> : vector<8x8xf32>
    %57 = tpu.matmul %54, %4, %cst_40 {dimension_numbers = #tpu.dot_dimension_numbers<[1], [0], [0], [1], [0, 0, 1, 1], [], []>} : vector<8x16xf32>, vector<16x8xf32>, vector<8x8xf32> -> vector<8x8xf32>
    %cst_41 = arith.constant dense<0.000000e+00> : vector<8x8xf32>
    %58 = tpu.matmul %55, %5, %cst_41 {dimension_numbers = #tpu.dot_dimension_numbers<[1], [0], [0], [1], [0, 0, 1, 1], [], []>} : vector<8x16xf32>, vector<16x8xf32>, vector<8x8xf32> -> vector<8x8xf32>
    %59 = arith.subf %56, %57 : vector<8x8xf32>
    %60 = arith.subf %58, %56 : vector<8x8xf32>
    %61 = arith.subf %60, %57 : vector<8x8xf32>
    %62 = arith.mulf %59, %59 : vector<8x8xf32>
    %63 = arith.mulf %61, %61 : vector<8x8xf32>
    %64 = arith.addf %62, %63 : vector<8x8xf32>
    %c1_42 = arith.constant 1 : index
    %c0_43 = arith.constant 0 : index
    %c0_44 = arith.constant 0 : index
    %65 = vector.load %arg9[%c1_42, %c0_43, %c0_44] : memref<4x8x8xf32, #tpu.memory_space<vmem>>, vector<1x8x8xf32>
    %66 = vector.shape_cast %65 : vector<1x8x8xf32> to vector<8x8xf32>
    %67 = vector.shape_cast %64 : vector<8x8xf32> to vector<1x8x8xf32>
    tpu.vector_store %arg9[%c1_42, %c0_43, %c0_44], %67 {strides = array<i32>} : memref<4x8x8xf32, #tpu.memory_space<vmem>>, vector<1x8x8xf32>,
    %c1_45 = arith.constant 1 : index
    %c0_46 = arith.constant 0 : index
    %c0_47 = arith.constant 0 : index
    %68 = vector.load %arg10[%c1_45, %c0_46, %c0_47] : memref<4x8x8xf32, #tpu.memory_space<vmem>>, vector<1x8x8xf32>
    %69 = vector.shape_cast %68 : vector<1x8x8xf32> to vector<8x8xf32>
    %70 = vector.shape_cast %59 : vector<8x8xf32> to vector<1x8x8xf32>
    tpu.vector_store %arg10[%c1_45, %c0_46, %c0_47], %70 {strides = array<i32>} : memref<4x8x8xf32, #tpu.memory_space<vmem>>, vector<1x8x8xf32>,
    %c1_48 = arith.constant 1 : index
    %c0_49 = arith.constant 0 : index
    %c0_50 = arith.constant 0 : index
    %71 = vector.load %arg11[%c1_48, %c0_49, %c0_50] : memref<4x8x8xf32, #tpu.memory_space<vmem>>, vector<1x8x8xf32>
    %72 = vector.shape_cast %71 : vector<1x8x8xf32> to vector<8x8xf32>
    %73 = vector.shape_cast %61 : vector<8x8xf32> to vector<1x8x8xf32>
    tpu.vector_store %arg11[%c1_48, %c0_49, %c0_50], %73 {strides = array<i32>} : memref<4x8x8xf32, #tpu.memory_space<vmem>>, vector<1x8x8xf32>,
    %c2 = arith.constant 2 : index
    %c0_51 = arith.constant 0 : index
    %c0_52 = arith.constant 0 : index
    %74 = vector.load %arg2[%c2, %c0_51, %c0_52] : memref<4x16x16xf32, #tpu.memory_space<vmem>>, vector<1x16x16xf32>
    %75 = vector.shape_cast %74 : vector<1x16x16xf32> to vector<16x16xf32>
    %c2_53 = arith.constant 2 : index
    %c0_54 = arith.constant 0 : index
    %c0_55 = arith.constant 0 : index
    %76 = vector.load %arg1[%c2_53, %c0_54, %c0_55] : memref<4x16x16xf32, #tpu.memory_space<vmem>>, vector<1x16x16xf32>
    %77 = vector.shape_cast %76 : vector<1x16x16xf32> to vector<16x16xf32>
    %78 = math.cos %75 : vector<16x16xf32>
    %79 = arith.mulf %78, %77 : vector<16x16xf32>
    %80 = math.sin %75 : vector<16x16xf32>
    %81 = arith.mulf %80, %77 : vector<16x16xf32>
    %82 = arith.addf %79, %81 : vector<16x16xf32>
    %cst_56 = arith.constant dense<0.000000e+00> : vector<8x16xf32>
    %83 = tpu.matmul %0, %79, %cst_56 {dimension_numbers = #tpu.dot_dimension_numbers<[1], [0], [0], [1], [0, 0, 1, 1], [], []>} : vector<8x16xf32>, vector<16x16xf32>, vector<8x16xf32> -> vector<8x16xf32>
    %cst_57 = arith.constant dense<0.000000e+00> : vector<8x16xf32>
    %84 = tpu.matmul %1, %81, %cst_57 {dimension_numbers = #tpu.dot_dimension_numbers<[1], [0], [0], [1], [0, 0, 1, 1], [], []>} : vector<8x16xf32>, vector<16x16xf32>, vector<8x16xf32> -> vector<8x16xf32>
    %cst_58 = arith.constant dense<0.000000e+00> : vector<8x16xf32>
    %85 = tpu.matmul %2, %82, %cst_58 {dimension_numbers = #tpu.dot_dimension_numbers<[1], [0], [0], [1], [0, 0, 1, 1], [], []>} : vector<8x16xf32>, vector<16x16xf32>, vector<8x16xf32> -> vector<8x16xf32>
    %86 = arith.subf %83, %84 : vector<8x16xf32>
    %87 = arith.subf %85, %83 : vector<8x16xf32>
    %88 = arith.subf %87, %84 : vector<8x16xf32>
    %89 = arith.addf %86, %88 : vector<8x16xf32>
    %cst_59 = arith.constant dense<0.000000e+00> : vector<8x8xf32>
    %90 = tpu.matmul %86, %3, %cst_59 {dimension_numbers = #tpu.dot_dimension_numbers<[1], [0], [0], [1], [0, 0, 1, 1], [], []>} : vector<8x16xf32>, vector<16x8xf32>, vector<8x8xf32> -> vector<8x8xf32>
    %cst_60 = arith.constant dense<0.000000e+00> : vector<8x8xf32>
    %91 = tpu.matmul %88, %4, %cst_60 {dimension_numbers = #tpu.dot_dimension_numbers<[1], [0], [0], [1], [0, 0, 1, 1], [], []>} : vector<8x16xf32>, vector<16x8xf32>, vector<8x8xf32> -> vector<8x8xf32>
    %cst_61 = arith.constant dense<0.000000e+00> : vector<8x8xf32>
    %92 = tpu.matmul %89, %5, %cst_61 {dimension_numbers = #tpu.dot_dimension_numbers<[1], [0], [0], [1], [0, 0, 1, 1], [], []>} : vector<8x16xf32>, vector<16x8xf32>, vector<8x8xf32> -> vector<8x8xf32>
    %93 = arith.subf %90, %91 : vector<8x8xf32>
    %94 = arith.subf %92, %90 : vector<8x8xf32>
    %95 = arith.subf %94, %91 : vector<8x8xf32>
    %96 = arith.mulf %93, %93 : vector<8x8xf32>
    %97 = arith.mulf %95, %95 : vector<8x8xf32>
    %98 = arith.addf %96, %97 : vector<8x8xf32>
    %c2_62 = arith.constant 2 : index
    %c0_63 = arith.constant 0 : index
    %c0_64 = arith.constant 0 : index
    %99 = vector.load %arg9[%c2_62, %c0_63, %c0_64] : memref<4x8x8xf32, #tpu.memory_space<vmem>>, vector<1x8x8xf32>
    %100 = vector.shape_cast %99 : vector<1x8x8xf32> to vector<8x8xf32>
    %101 = vector.shape_cast %98 : vector<8x8xf32> to vector<1x8x8xf32>
    tpu.vector_store %arg9[%c2_62, %c0_63, %c0_64], %101 {strides = array<i32>} : memref<4x8x8xf32, #tpu.memory_space<vmem>>, vector<1x8x8xf32>,
    %c2_65 = arith.constant 2 : index
    %c0_66 = arith.constant 0 : index
    %c0_67 = arith.constant 0 : index
    %102 = vector.load %arg10[%c2_65, %c0_66, %c0_67] : memref<4x8x8xf32, #tpu.memory_space<vmem>>, vector<1x8x8xf32>
    %103 = vector.shape_cast %102 : vector<1x8x8xf32> to vector<8x8xf32>
    %104 = vector.shape_cast %93 : vector<8x8xf32> to vector<1x8x8xf32>
    tpu.vector_store %arg10[%c2_65, %c0_66, %c0_67], %104 {strides = array<i32>} : memref<4x8x8xf32, #tpu.memory_space<vmem>>, vector<1x8x8xf32>,
    %c2_68 = arith.constant 2 : index
    %c0_69 = arith.constant 0 : index
    %c0_70 = arith.constant 0 : index
    %105 = vector.load %arg11[%c2_68, %c0_69, %c0_70] : memref<4x8x8xf32, #tpu.memory_space<vmem>>, vector<1x8x8xf32>
    %106 = vector.shape_cast %105 : vector<1x8x8xf32> to vector<8x8xf32>
    %107 = vector.shape_cast %95 : vector<8x8xf32> to vector<1x8x8xf32>
    tpu.vector_store %arg11[%c2_68, %c0_69, %c0_70], %107 {strides = array<i32>} : memref<4x8x8xf32, #tpu.memory_space<vmem>>, vector<1x8x8xf32>,
    %c3 = arith.constant 3 : index
    %c0_71 = arith.constant 0 : index
    %c0_72 = arith.constant 0 : index
    %108 = vector.load %arg2[%c3, %c0_71, %c0_72] : memref<4x16x16xf32, #tpu.memory_space<vmem>>, vector<1x16x16xf32>
    %109 = vector.shape_cast %108 : vector<1x16x16xf32> to vector<16x16xf32>
    %c3_73 = arith.constant 3 : index
    %c0_74 = arith.constant 0 : index
    %c0_75 = arith.constant 0 : index
    %110 = vector.load %arg1[%c3_73, %c0_74, %c0_75] : memref<4x16x16xf32, #tpu.memory_space<vmem>>, vector<1x16x16xf32>
    %111 = vector.shape_cast %110 : vector<1x16x16xf32> to vector<16x16xf32>
    %112 = math.cos %109 : vector<16x16xf32>
    %113 = arith.mulf %112, %111 : vector<16x16xf32>
    %114 = math.sin %109 : vector<16x16xf32>
    %115 = arith.mulf %114, %111 : vector<16x16xf32>
    %116 = arith.addf %113, %115 : vector<16x16xf32>
    %cst_76 = arith.constant dense<0.000000e+00> : vector<8x16xf32>
    %117 = tpu.matmul %0, %113, %cst_76 {dimension_numbers = #tpu.dot_dimension_numbers<[1], [0], [0], [1], [0, 0, 1, 1], [], []>} : vector<8x16xf32>, vector<16x16xf32>, vector<8x16xf32> -> vector<8x16xf32>
    %cst_77 = arith.constant dense<0.000000e+00> : vector<8x16xf32>
    %118 = tpu.matmul %1, %115, %cst_77 {dimension_numbers = #tpu.dot_dimension_numbers<[1], [0], [0], [1], [0, 0, 1, 1], [], []>} : vector<8x16xf32>, vector<16x16xf32>, vector<8x16xf32> -> vector<8x16xf32>
    %cst_78 = arith.constant dense<0.000000e+00> : vector<8x16xf32>
    %119 = tpu.matmul %2, %116, %cst_78 {dimension_numbers = #tpu.dot_dimension_numbers<[1], [0], [0], [1], [0, 0, 1, 1], [], []>} : vector<8x16xf32>, vector<16x16xf32>, vector<8x16xf32> -> vector<8x16xf32>
    %120 = arith.subf %117, %118 : vector<8x16xf32>
    %121 = arith.subf %119, %117 : vector<8x16xf32>
    %122 = arith.subf %121, %118 : vector<8x16xf32>
    %123 = arith.addf %120, %122 : vector<8x16xf32>
    %cst_79 = arith.constant dense<0.000000e+00> : vector<8x8xf32>
    %124 = tpu.matmul %120, %3, %cst_79 {dimension_numbers = #tpu.dot_dimension_numbers<[1], [0], [0], [1], [0, 0, 1, 1], [], []>} : vector<8x16xf32>, vector<16x8xf32>, vector<8x8xf32> -> vector<8x8xf32>
    %cst_80 = arith.constant dense<0.000000e+00> : vector<8x8xf32>
    %125 = tpu.matmul %122, %4, %cst_80 {dimension_numbers = #tpu.dot_dimension_numbers<[1], [0], [0], [1], [0, 0, 1, 1], [], []>} : vector<8x16xf32>, vector<16x8xf32>, vector<8x8xf32> -> vector<8x8xf32>
    %cst_81 = arith.constant dense<0.000000e+00> : vector<8x8xf32>
    %126 = tpu.matmul %123, %5, %cst_81 {dimension_numbers = #tpu.dot_dimension_numbers<[1], [0], [0], [1], [0, 0, 1, 1], [], []>} : vector<8x16xf32>, vector<16x8xf32>, vector<8x8xf32> -> vector<8x8xf32>
    %127 = arith.subf %124, %125 : vector<8x8xf32>
    %128 = arith.subf %126, %124 : vector<8x8xf32>
    %129 = arith.subf %128, %125 : vector<8x8xf32>
    %130 = arith.mulf %127, %127 : vector<8x8xf32>
    %131 = arith.mulf %129, %129 : vector<8x8xf32>
    %132 = arith.addf %130, %131 : vector<8x8xf32>
    %c3_82 = arith.constant 3 : index
    %c0_83 = arith.constant 0 : index
    %c0_84 = arith.constant 0 : index
    %133 = vector.load %arg9[%c3_82, %c0_83, %c0_84] : memref<4x8x8xf32, #tpu.memory_space<vmem>>, vector<1x8x8xf32>
    %134 = vector.shape_cast %133 : vector<1x8x8xf32> to vector<8x8xf32>
    %135 = vector.shape_cast %132 : vector<8x8xf32> to vector<1x8x8xf32>
    tpu.vector_store %arg9[%c3_82, %c0_83, %c0_84], %135 {strides = array<i32>} : memref<4x8x8xf32, #tpu.memory_space<vmem>>, vector<1x8x8xf32>,
    %c3_85 = arith.constant 3 : index
    %c0_86 = arith.constant 0 : index
    %c0_87 = arith.constant 0 : index
    %136 = vector.load %arg10[%c3_85, %c0_86, %c0_87] : memref<4x8x8xf32, #tpu.memory_space<vmem>>, vector<1x8x8xf32>
    %137 = vector.shape_cast %136 : vector<1x8x8xf32> to vector<8x8xf32>
    %138 = vector.shape_cast %127 : vector<8x8xf32> to vector<1x8x8xf32>
    tpu.vector_store %arg10[%c3_85, %c0_86, %c0_87], %138 {strides = array<i32>} : memref<4x8x8xf32, #tpu.memory_space<vmem>>, vector<1x8x8xf32>,
    %c3_88 = arith.constant 3 : index
    %c0_89 = arith.constant 0 : index
    %c0_90 = arith.constant 0 : index
    %139 = vector.load %arg11[%c3_88, %c0_89, %c0_90] : memref<4x8x8xf32, #tpu.memory_space<vmem>>, vector<1x8x8xf32>
    %140 = vector.shape_cast %139 : vector<1x8x8xf32> to vector<8x8xf32>
    %141 = vector.shape_cast %129 : vector<8x8xf32> to vector<1x8x8xf32>
    tpu.vector_store %arg11[%c3_88, %c0_89, %c0_90], %141 {strides = array<i32>} : memref<4x8x8xf32, #tpu.memory_space<vmem>>, vector<1x8x8xf32>,
    return
  }
  func.func @transform_0(%arg0: i32) -> (i32, i32, i32) {
    %c0_i32 = arith.constant 0 : i32
    %c0_i32_0 = arith.constant 0 : i32
    %c0_i32_1 = arith.constant 0 : i32
    return %arg0, %c0_i32, %c0_i32_0 : i32, i32, i32
  }
  func.func @transform_1(%arg0: i32) -> (i32, i32, i32) {
    %c0_i32 = arith.constant 0 : i32
    %c0_i32_0 = arith.constant 0 : i32
    %c0_i32_1 = arith.constant 0 : i32
    return %arg0, %c0_i32, %c0_i32_0 : i32, i32, i32
  }
  func.func @transform_2(%arg0: i32) -> (i32, i32) {
    %c0_i32 = arith.constant 0 : i32
    %c0_i32_0 = arith.constant 0 : i32
    %c0_i32_1 = arith.constant 0 : i32
    return %c0_i32, %c0_i32_0 : i32, i32
  }
  func.func @transform_3(%arg0: i32) -> (i32, i32) {
    %c0_i32 = arith.constant 0 : i32
    %c0_i32_0 = arith.constant 0 : i32
    %c0_i32_1 = arith.constant 0 : i32
    return %c0_i32, %c0_i32_0 : i32, i32
  }
  func.func @transform_4(%arg0: i32) -> (i32, i32) {
    %c0_i32 = arith.constant 0 : i32
    %c0_i32_0 = arith.constant 0 : i32
    %c0_i32_1 = arith.constant 0 : i32
    return %c0_i32, %c0_i32_0 : i32, i32
  }
  func.func @transform_5(%arg0: i32) -> (i32, i32) {
    %c0_i32 = arith.constant 0 : i32
    %c0_i32_0 = arith.constant 0 : i32
    %c0_i32_1 = arith.constant 0 : i32
    return %c0_i32, %c0_i32_0 : i32, i32
  }
  func.func @transform_6(%arg0: i32) -> (i32, i32) {
    %c0_i32 = arith.constant 0 : i32
    %c0_i32_0 = arith.constant 0 : i32
    %c0_i32_1 = arith.constant 0 : i32
    return %c0_i32, %c0_i32_0 : i32, i32
  }
  func.func @transform_7(%arg0: i32) -> (i32, i32) {
    %c0_i32 = arith.constant 0 : i32
    %c0_i32_0 = arith.constant 0 : i32
    %c0_i32_1 = arith.constant 0 : i32
    return %c0_i32, %c0_i32_0 : i32, i32
  }
  func.func @transform_8(%arg0: i32) -> (i32, i32, i32) {
    %c0_i32 = arith.constant 0 : i32
    %c0_i32_0 = arith.constant 0 : i32
    %c0_i32_1 = arith.constant 0 : i32
    return %arg0, %c0_i32, %c0_i32_0 : i32, i32, i32
  }
  func.func @transform_9(%arg0: i32) -> (i32, i32, i32) {
    %c0_i32 = arith.constant 0 : i32
    %c0_i32_0 = arith.constant 0 : i32
    %c0_i32_1 = arith.constant 0 : i32
    return %arg0, %c0_i32, %c0_i32_0 : i32, i32, i32
  }
  func.func @transform_10(%arg0: i32) -> (i32, i32, i32) {
    %c0_i32 = arith.constant 0 : i32
    %c0_i32_0 = arith.constant 0 : i32
    %c0_i32_1 = arith.constant 0 : i32
    return %arg0, %c0_i32, %c0_i32_0 : i32, i32, i32
  }
}

</mosaic_0001>

<llo_original>
// kernel: tpu_custom_call.1
$region0: #{tpu_custom_call.1}
  #allocation0 [shape = 'u32[]', space=smem, size = 0x4, offset = 0x4, fixed_abs, tag = 'smem constant byte address 0x4 - core index']
  #allocation1 [shape = 'u32[144,128]{1,0:T(1,128)}', space=vmem, size = 0x12000, scoped, tag = 'internal scratch']
  %s0 = inlined_call_operand.hbm [shape: f32[8,16,16], index: 0, kind: input, shape index: {}]
  %s1 = inlined_call_operand.hbm [shape: f32[8,16,16], index: 1, kind: input, shape index: {}]
  %s2 = inlined_call_operand.vmem [shape: f32[8,16], index: 2, kind: input, shape index: {}]
  %s3 = inlined_call_operand.vmem [shape: f32[8,16], index: 3, kind: input, shape index: {}]
  %s4 = inlined_call_operand.vmem [shape: f32[8,16], index: 4, kind: input, shape index: {}]
  %s5 = inlined_call_operand.vmem [shape: f32[16,8], index: 5, kind: input, shape index: {}]
  %s6 = inlined_call_operand.vmem [shape: f32[16,8], index: 6, kind: input, shape index: {}]
  %s7 = inlined_call_operand.vmem [shape: f32[16,8], index: 7, kind: input, shape index: {}]
  %s8 = inlined_call_operand.hbm [shape: f32[8,8,8], index: 8, kind: output, shape index: {0}]
  %s9 = inlined_call_operand.hbm [shape: f32[8,8,8], index: 9, kind: output, shape index: {1}]
  %s10 = inlined_call_operand.hbm [shape: f32[8,8,8], index: 10, kind: output, shape index: {2}]
  %11 = xla_tuple %s8, %s9, %s10
  %s12 = sld [smem:[#allocation0]]
  $region89: #{tpu_custom_call.1} parent=0
    _
  %s14 = ssub.s32 1, %s12
  %s15 = scalar_select 0, %s14, %s12
  $region1: #{tpu_custom_call.1} parent=0
    #allocation2 [shape = 'u8[65536]{0}', space=vmem, size = 0x10000, scoped, tag = 'input window, operand 0']
    #allocation3 [shape = 's32[2]{0}', space=sflag, size = 0x8, scoped, tag = 'scoped memory for tpu_custom_call.1']
    #allocation4 [shape = 's32[2]{0}', space=sflag, size = 0x8, scoped, tag = 'scoped memory for tpu_custom_call.1']
    #allocation5 [shape = 'u8[65536]{0}', space=vmem, size = 0x10000, scoped, tag = 'input window, operand 1']
    #allocation6 [shape = 's32[2]{0}', space=sflag, size = 0x8, scoped, tag = 'scoped memory for tpu_custom_call.1']
    #allocation7 [shape = 'u8[32768]{0}', space=vmem, size = 0x8000, scoped, tag = 'output window, operand 0']
    #allocation8 [shape = 'u8[32768]{0}', space=vmem, size = 0x8000, scoped, tag = 'output window, operand 1']
    #allocation9 [shape = 's32[2]{0}', space=sflag, size = 0x8, scoped, tag = 'scoped memory for tpu_custom_call.1']
    #allocation10 [shape = 'u8[32768]{0}', space=vmem, size = 0x8000, scoped, tag = 'output window, operand 2']
    %16 = vsyncpa [#allocation3], 0
    %s17 = scalar_lea.sflag [#allocation3], 1
    %18 = vsyncpa %s17, 0
    %19 = vsyncpa [#allocation6], 0
    %s20 = scalar_lea.sflag [#allocation6], 1
    %21 = vsyncpa %s20, 0
    %22 = vsyncpa [#allocation4], 0
    %s23 = scalar_lea.sflag [#allocation4], 1
    %24 = vsyncpa %s23, 0
    %25 = vsyncpa [#allocation9], 0
    %s26 = scalar_lea.sflag [#allocation9], 1
    %27 = vsyncpa %s26, 0
    loop: start=0, step=1, limit=4
    $region2: #{tpu_custom_call.1} parent=1 // loop_pre_header
      _
    $region3: #{tpu_custom_call.1} parent=1 // loop_header
      %s29 = sphi 0, %s33
      %p30 = scmp.ge.s32.totalorder %s29, 4
      %s39 = sphi 0, %s41
      %s42 = sphi 0, %s39
      %s43 = sphi 0, %s42
      %s59 = sphi 0, %s43
      %s65 = sphi 0, %s67
      %s68 = sphi 0, %s65
      %s69 = sphi 0, %s68
      %s85 = sphi 0, %s69
      %s89 = sphi 0, %s89
      %s91 = sphi 0, %s89
      %s92 = sphi 0, %s91
      %s106 = sphi 0, %s92
      %s110 = sphi 0, %s110
      %s112 = sphi 0, %s110
      %s113 = sphi 0, %s112
      %s127 = sphi 0, %s113
      %s131 = sphi 0, %s131
      %s133 = sphi 0, %s131
      %s134 = sphi 0, %s133
      %s148 = sphi 0, %s134
      %s152 = sphi 0, %s152
      %s154 = sphi 0, %s152
      %s155 = sphi 0, %s154
      %s169 = sphi 0, %s155
      %s173 = sphi 0, %s173
      %s175 = sphi 0, %s173
      %s176 = sphi 0, %s175
      %s190 = sphi 0, %s176
      %s194 = sphi 0, %s194
      %s196 = sphi 0, %s194
      %s197 = sphi 0, %s196
      %s211 = sphi 0, %s197
      %s217 = sphi 0, %s219
      %s220 = sphi 0, %s217
      %s221 = sphi 0, %s220
      %s237 = sphi 0, %s221
      %s243 = sphi 0, %s245
      %s246 = sphi 0, %s243
      %s247 = sphi 0, %s246
      %s263 = sphi 0, %s247
      %s269 = sphi 0, %s271
      %s272 = sphi 0, %s269
      %s273 = sphi 0, %s272
      %s289 = sphi 0, %s273
    $region4: #{tpu_custom_call.1} parent=1 // loop_header_branch
      %32 = sbr.rel (%p30) target = $region8
    $region5: #{tpu_custom_call.1} parent=1 // loop_body
      %s34 = ssub.s32 %s29, 1
      %s35 = ssub.s32 %s29, 2
      %s36 = sadd.s32 %s29, 1
      %s37 = ssub.s32 %s29, %s36
      %p38 = scmp.eq.s32.totalorder %s37, 0
      %s40 = sadd.s32 %s39, 1
      %s41 = scalar_select %p38, %s39, %s40
      %p44 = pneg %p38
      %p45 = scmp.eq.s32.totalorder %s29, 1
      %p46 = por %p44, %p45
      %p47 = scmp.ne.s32.totalorder %s39, %s42
      %p48 = scmp.eq.s32.totalorder %s29, 0
      %p49 = por %p47, %p48
      %p50 = scmp.ne.s32.totalorder %s39, %s42
      %p51 = scmp.eq.s32.totalorder %s34, 1
      %p52 = por %p50, %p51
      %p53 = scmp.ne.s32.totalorder %s42, %s43
      %p54 = scmp.eq.s32.totalorder %s34, 0
      %p55 = por %p53, %p54
      %p56 = scmp.ne.s32.totalorder %s42, %s43
      %p57 = scmp.eq.s32.totalorder %s35, 1
      %p58 = por %p56, %p57
      %p60 = scmp.ne.s32.totalorder %s43, %s59
      %p61 = scmp.eq.s32.totalorder %s35, 0
      %p62 = por %p60, %p61
      %s63 = ssub.s32 %s29, %s36
      %p64 = scmp.eq.s32.totalorder %s63, 0
      %s66 = sadd.s32 %s65, 1
      %s67 = scalar_select %p64, %s65, %s66
      %p70 = pneg %p64
      %p71 = scmp.eq.s32.totalorder %s29, 1
      %p72 = por %p70, %p71
      %p73 = scmp.ne.s32.totalorder %s65, %s68
      %p74 = scmp.eq.s32.totalorder %s29, 0
      %p75 = por %p73, %p74
      %p76 = scmp.ne.s32.totalorder %s65, %s68
      %p77 = scmp.eq.s32.totalorder %s34, 1
      %p78 = por %p76, %p77
      %p79 = scmp.ne.s32.totalorder %s68, %s69
      %p80 = scmp.eq.s32.totalorder %s34, 0
      %p81 = por %p79, %p80
      %p82 = scmp.ne.s32.totalorder %s68, %s69
      %p83 = scmp.eq.s32.totalorder %s35, 1
      %p84 = por %p82, %p83
      %p86 = scmp.ne.s32.totalorder %s69, %s85
      %p87 = scmp.eq.s32.totalorder %s35, 0
      %p88 = por %p86, %p87
      %s90 = sadd.s32 %s89, 1
      %p93 = scmp.eq.s32.totalorder %s29, 1
      %p94 = scmp.ne.s32.totalorder %s89, %s91
      %p95 = scmp.eq.s32.totalorder %s29, 0
      %p96 = por %p94, %p95
      %p97 = scmp.ne.s32.totalorder %s89, %s91
      %p98 = scmp.eq.s32.totalorder %s34, 1
      %p99 = por %p97, %p98
      %p100 = scmp.ne.s32.totalorder %s91, %s92
      %p101 = scmp.eq.s32.totalorder %s34, 0
      %p102 = por %p100, %p101
      %p103 = scmp.ne.s32.totalorder %s91, %s92
      %p104 = scmp.eq.s32.totalorder %s35, 1
      %p105 = por %p103, %p104
      %p107 = scmp.ne.s32.totalorder %s92, %s106
      %p108 = scmp.eq.s32.totalorder %s35, 0
      %p109 = por %p107, %p108
      %s111 = sadd.s32 %s110, 1
      %p114 = scmp.eq.s32.totalorder %s29, 1
      %p115 = scmp.ne.s32.totalorder %s110, %s112
      %p116 = scmp.eq.s32.totalorder %s29, 0
      %p117 = por %p115, %p116
      %p118 = scmp.ne.s32.totalorder %s110, %s112
      %p119 = scmp.eq.s32.totalorder %s34, 1
      %p120 = por %p118, %p119
      %p121 = scmp.ne.s32.totalorder %s112, %s113
      %p122 = scmp.eq.s32.totalorder %s34, 0
      %p123 = por %p121, %p122
      %p124 = scmp.ne.s32.totalorder %s112, %s113
      %p125 = scmp.eq.s32.totalorder %s35, 1
      %p126 = por %p124, %p125
      %p128 = scmp.ne.s32.totalorder %s113, %s127
      %p129 = scmp.eq.s32.totalorder %s35, 0
      %p130 = por %p128, %p129
      %s132 = sadd.s32 %s131, 1
      %p135 = scmp.eq.s32.totalorder %s29, 1
      %p136 = scmp.ne.s32.totalorder %s131, %s133
      %p137 = scmp.eq.s32.totalorder %s29, 0
      %p138 = por %p136, %p137
      %p139 = scmp.ne.s32.totalorder %s131, %s133
      %p140 = scmp.eq.s32.totalorder %s34, 1
      %p141 = por %p139, %p140
      %p142 = scmp.ne.s32.totalorder %s133, %s134
      %p143 = scmp.eq.s32.totalorder %s34, 0
      %p144 = por %p142, %p143
      %p145 = scmp.ne.s32.totalorder %s133, %s134
      %p146 = scmp.eq.s32.totalorder %s35, 1
      %p147 = por %p145, %p146
      %p149 = scmp.ne.s32.totalorder %s134, %s148
      %p150 = scmp.eq.s32.totalorder %s35, 0
      %p151 = por %p149, %p150
      %s153 = sadd.s32 %s152, 1
      %p156 = scmp.eq.s32.totalorder %s29, 1
      %p157 = scmp.ne.s32.totalorder %s152, %s154
      %p158 = scmp.eq.s32.totalorder %s29, 0
      %p159 = por %p157, %p158
      %p160 = scmp.ne.s32.totalorder %s152, %s154
      %p161 = scmp.eq.s32.totalorder %s34, 1
      %p162 = por %p160, %p161
      %p163 = scmp.ne.s32.totalorder %s154, %s155
      %p164 = scmp.eq.s32.totalorder %s34, 0
      %p165 = por %p163, %p164
      %p166 = scmp.ne.s32.totalorder %s154, %s155
      %p167 = scmp.eq.s32.totalorder %s35, 1
      %p168 = por %p166, %p167
      %p170 = scmp.ne.s32.totalorder %s155, %s169
      %p171 = scmp.eq.s32.totalorder %s35, 0
      %p172 = por %p170, %p171
      %s174 = sadd.s32 %s173, 1
      %p177 = scmp.eq.s32.totalorder %s29, 1
      %p178 = scmp.ne.s32.totalorder %s173, %s175
      %p179 = scmp.eq.s32.totalorder %s29, 0
      %p180 = por %p178, %p179
      %p181 = scmp.ne.s32.totalorder %s173, %s175
      %p182 = scmp.eq.s32.totalorder %s34, 1
      %p183 = por %p181, %p182
      %p184 = scmp.ne.s32.totalorder %s175, %s176
      %p185 = scmp.eq.s32.totalorder %s34, 0
      %p186 = por %p184, %p185
      %p187 = scmp.ne.s32.totalorder %s175, %s176
      %p188 = scmp.eq.s32.totalorder %s35, 1
      %p189 = por %p187, %p188
      %p191 = scmp.ne.s32.totalorder %s176, %s190
      %p192 = scmp.eq.s32.totalorder %s35, 0
      %p193 = por %p191, %p192
      %s195 = sadd.s32 %s194, 1
      %p198 = scmp.eq.s32.totalorder %s29, 1
      %p199 = scmp.ne.s32.totalorder %s194, %s196
      %p200 = scmp.eq.s32.totalorder %s29, 0
      %p201 = por %p199, %p200
      %p202 = scmp.ne.s32.totalorder %s194, %s196
      %p203 = scmp.eq.s32.totalorder %s34, 1
      %p204 = por %p202, %p203
      %p205 = scmp.ne.s32.totalorder %s196, %s197
      %p206 = scmp.eq.s32.totalorder %s34, 0
      %p207 = por %p205, %p206
      %p208 = scmp.ne.s32.totalorder %s196, %s197
      %p209 = scmp.eq.s32.totalorder %s35, 1
      %p210 = por %p208, %p209
      %p212 = scmp.ne.s32.totalorder %s197, %s211
      %p213 = scmp.eq.s32.totalorder %s35, 0
      %p214 = por %p212, %p213
      %s215 = ssub.s32 %s29, %s36
      %p216 = scmp.eq.s32.totalorder %s215, 0
      %s218 = sadd.s32 %s217, 1
      %s219 = scalar_select %p216, %s217, %s218
      %p222 = pneg %p216
      %p223 = scmp.eq.s32.totalorder %s29, 1
      %p224 = por %p222, %p223
      %p225 = scmp.ne.s32.totalorder %s217, %s220
      %p226 = scmp.eq.s32.totalorder %s29, 0
      %p227 = por %p225, %p226
      %p228 = scmp.ne.s32.totalorder %s217, %s220
      %p229 = scmp.eq.s32.totalorder %s34, 1
      %p230 = por %p228, %p229
      %p231 = scmp.ne.s32.totalorder %s220, %s221
      %p232 = scmp.eq.s32.totalorder %s34, 0
      %p233 = por %p231, %p232
      %p234 = scmp.ne.s32.totalorder %s220, %s221
      %p235 = scmp.eq.s32.totalorder %s35, 1
      %p236 = por %p234, %p235
      %p238 = scmp.ne.s32.totalorder %s221, %s237
      %p239 = scmp.eq.s32.totalorder %s35, 0
      %p240 = por %p238, %p239
      %s241 = ssub.s32 %s29, %s36
      %p242 = scmp.eq.s32.totalorder %s241, 0
      %s244 = sadd.s32 %s243, 1
      %s245 = scalar_select %p242, %s243, %s244
      %p248 = pneg %p242
      %p249 = scmp.eq.s32.totalorder %s29, 1
      %p250 = por %p248, %p249
      %p251 = scmp.ne.s32.totalorder %s243, %s246
      %p252 = scmp.eq.s32.totalorder %s29, 0
      %p253 = por %p251, %p252
      %p254 = scmp.ne.s32.totalorder %s243, %s246
      %p255 = scmp.eq.s32.totalorder %s34, 1
      %p256 = por %p254, %p255
      %p257 = scmp.ne.s32.totalorder %s246, %s247
      %p258 = scmp.eq.s32.totalorder %s34, 0
      %p259 = por %p257, %p258
      %p260 = scmp.ne.s32.totalorder %s246, %s247
      %p261 = scmp.eq.s32.totalorder %s35, 1
      %p262 = por %p260, %p261
      %p264 = scmp.ne.s32.totalorder %s247, %s263
      %p265 = scmp.eq.s32.totalorder %s35, 0
      %p266 = por %p264, %p265
      %s267 = ssub.s32 %s29, %s36
      %p268 = scmp.eq.s32.totalorder %s267, 0
      %s270 = sadd.s32 %s269, 1
      %s271 = scalar_select %p268, %s269, %s270
      %p274 = pneg %p268
      %p275 = scmp.eq.s32.totalorder %s29, 1
      %p276 = por %p274, %p275
      %p277 = scmp.ne.s32.totalorder %s269, %s272
      %p278 = scmp.eq.s32.totalorder %s29, 0
      %p279 = por %p277, %p278
      %p280 = scmp.ne.s32.totalorder %s269, %s272
      %p281 = scmp.eq.s32.totalorder %s34, 1
      %p282 = por %p280, %p281
      %p283 = scmp.ne.s32.totalorder %s272, %s273
      %p284 = scmp.eq.s32.totalorder %s34, 0
      %p285 = por %p283, %p284
      %p286 = scmp.ne.s32.totalorder %s272, %s273
      %p287 = scmp.eq.s32.totalorder %s35, 1
      %p288 = por %p286, %p287
      %p290 = scmp.ne.s32.totalorder %s273, %s289
      %p291 = scmp.eq.s32.totalorder %s35, 0
      %p292 = por %p290, %p291
      %p293 = scmp.le.s32.totalorder 1, %s29
      %p294 = scmp.lt.s32.totalorder %s29, 3
      %p295 = pnand %p293, %p294
      %p296 = pneg %p295
      // Predicated region
      $region9: #{tpu_custom_call.1} parent=5 // pred_check
        _
      $region10: #{tpu_custom_call.1} parent=5 // pred_check_branch
        %298 = sbr.rel (%p295) target = $region12
      $region11: #{tpu_custom_call.1} parent=5 // pred_region
        %s299 = ssub.s32 %s29, 1
        // Predicated region
        $region13: #{tpu_custom_call.1} parent=11 // pred_check
          %p300 = pneg %p102
        $region14: #{tpu_custom_call.1} parent=11 // pred_check_branch
          %302 = sbr.rel (%p300) target = $region16
        $region15: #{tpu_custom_call.1} parent=11 // pred_region
          _
        $region16: #{tpu_custom_call.1} parent=11 // pred_fallthru
          _
        // Predicated region
        $region17: #{tpu_custom_call.1} parent=11 // pred_check
          %p303 = pneg %p123
        $region18: #{tpu_custom_call.1} parent=11 // pred_check_branch
          %305 = sbr.rel (%p303) target = $region20
        $region19: #{tpu_custom_call.1} parent=11 // pred_region
          _
        $region20: #{tpu_custom_call.1} parent=11 // pred_fallthru
          _
        // Predicated region
        $region21: #{tpu_custom_call.1} parent=11 // pred_check
          %p306 = pneg %p144
        $region22: #{tpu_custom_call.1} parent=11 // pred_check_branch
          %308 = sbr.rel (%p306) target = $region24
        $region23: #{tpu_custom_call.1} parent=11 // pred_region
          _
        $region24: #{tpu_custom_call.1} parent=11 // pred_fallthru
          _
        // Predicated region
        $region25: #{tpu_custom_call.1} parent=11 // pred_check
          %p309 = pneg %p165
        $region26: #{tpu_custom_call.1} parent=11 // pred_check_branch
          %311 = sbr.rel (%p309) target = $region28
        $region27: #{tpu_custom_call.1} parent=11 // pred_region
          _
        $region28: #{tpu_custom_call.1} parent=11 // pred_fallthru
          _
        // Predicated region
        $region29: #{tpu_custom_call.1} parent=11 // pred_check
          %p312 = pneg %p186
        $region30: #{tpu_custom_call.1} parent=11 // pred_check_branch
          %314 = sbr.rel (%p312) target = $region32
        $region31: #{tpu_custom_call.1} parent=11 // pred_region
          _
        $region32: #{tpu_custom_call.1} parent=11 // pred_fallthru
          _
        // Predicated region
        $region33: #{tpu_custom_call.1} parent=11 // pred_check
          %p315 = pneg %p207
        $region34: #{tpu_custom_call.1} parent=11 // pred_check_branch
          %317 = sbr.rel (%p315) target = $region36
        $region35: #{tpu_custom_call.1} parent=11 // pred_region
          _
        $region36: #{tpu_custom_call.1} parent=11 // pred_fallthru
          _
      $region12: #{tpu_custom_call.1} parent=5 // pred_fallthru
        _
      %p318 = scmp.lt.s32.totalorder %s29, 2
      // Predicated region
      $region37: #{tpu_custom_call.1} parent=5 // pred_check
        %p319 = pneg %p318
      $region38: #{tpu_custom_call.1} parent=5 // pred_check_branch
        %321 = sbr.rel (%p319) target = $region40
      $region39: #{tpu_custom_call.1} parent=5 // pred_region
        // Predicated region
        $region41: #{tpu_custom_call.1} parent=39 // pred_check
          %p322 = pneg %p49
        $region42: #{tpu_custom_call.1} parent=39 // pred_check_branch
          %324 = sbr.rel (%p322) target = $region44
        $region43: #{tpu_custom_call.1} parent=39 // pred_region
          %s325 = sand.u32 %s39, 1
          %s326 = scalar_lea.sflag [#allocation3], %s325
          %s327 = sand.u32 %s39, 1
          %s328 = smul.addr %s327, 64
          %s329 = scalar_lea.vmem [#allocation2], %s328
          %s330 = smul.u32 4, %s29
          %s332 = ssub.s32 1024, 1024
          %333 = vsyncadd %s326, %s332
          %s334 = smul.addr %s330, 2
          %s335 = smul.addr %s334, 128
          %s336 = scalar_lea.hbm %s0, %s335
          %s337 = sshll.u32 %s329, 4
          %s338 = int_to_ptr.vmem [resolvable:$true] %s337
          %343 = dma.hbm_to_vmem [thread:$0]  %s336, 1024, %s338, %s326, 128, 128, 8
        $region44: #{tpu_custom_call.1} parent=39 // pred_fallthru
          _
        // Predicated region
        $region45: #{tpu_custom_call.1} parent=39 // pred_check
          %p344 = pneg %p75
        $region46: #{tpu_custom_call.1} parent=39 // pred_check_branch
          %346 = sbr.rel (%p344) target = $region48
        $region47: #{tpu_custom_call.1} parent=39 // pred_region
          %s347 = sand.u32 %s65, 1
          %s348 = scalar_lea.sflag [#allocation6], %s347
          %s349 = sand.u32 %s65, 1
          %s350 = smul.addr %s349, 64
          %s351 = scalar_lea.vmem [#allocation5], %s350
          %s352 = smul.u32 4, %s29
          %s354 = ssub.s32 1024, 1024
          %355 = vsyncadd %s348, %s354
          %s356 = smul.addr %s352, 2
          %s357 = smul.addr %s356, 128
          %s358 = scalar_lea.hbm %s1, %s357
          %s359 = sshll.u32 %s351, 4
          %s360 = int_to_ptr.vmem [resolvable:$true] %s359
          %365 = dma.hbm_to_vmem [thread:$0]  %s358, 1024, %s360, %s348, 128, 128, 8
        $region48: #{tpu_custom_call.1} parent=39 // pred_fallthru
          _
      $region40: #{tpu_custom_call.1} parent=5 // pred_fallthru
        _
      %p366 = scmp.le.s32.totalorder 1, %s29
      %p367 = scmp.lt.s32.totalorder %s29, 3
      %p368 = pnand %p366, %p367
      %p369 = pneg %p368
      // Predicated region
      $region49: #{tpu_custom_call.1} parent=5 // pred_check
        _
      $region50: #{tpu_custom_call.1} parent=5 // pred_check_branch
        %371 = sbr.rel (%p368) target = $region52
      $region51: #{tpu_custom_call.1} parent=5 // pred_region
        %s372 = ssub.s32 %s29, 1
        %s373 = sand.u32 %s42, 1
        %s374 = scalar_lea.sflag [#allocation3], %s373
        %s375 = sand.u32 %s42, 1
        %s376 = smul.addr %s375, 64
        %s377 = scalar_lea.vmem [#allocation2], %s376
        // Predicated region
        $region53: #{tpu_custom_call.1} parent=51 // pred_check
          %p378 = pneg %p55
        $region54: #{tpu_custom_call.1} parent=51 // pred_check_branch
          %380 = sbr.rel (%p378) target = $region56
        $region55: #{tpu_custom_call.1} parent=51 // pred_region
          %381 = dma.done %s374, 1024
        $region56: #{tpu_custom_call.1} parent=51 // pred_fallthru
          _
        %s382 = sand.u32 %s68, 1
        %s383 = scalar_lea.sflag [#allocation6], %s382
        %s384 = sand.u32 %s68, 1
        %s385 = smul.addr %s384, 64
        %s386 = scalar_lea.vmem [#allocation5], %s385
        // Predicated region
        $region57: #{tpu_custom_call.1} parent=51 // pred_check
          %p387 = pneg %p81
        $region58: #{tpu_custom_call.1} parent=51 // pred_check_branch
          %389 = sbr.rel (%p387) target = $region60
        $region59: #{tpu_custom_call.1} parent=51 // pred_region
          %390 = dma.done %s383, 1024
        $region60: #{tpu_custom_call.1} parent=51 // pred_fallthru
          _
        %s391 = sand.u32 %s42, 1
        %s392 = scalar_lea.sflag [#allocation3], %s391
        %s393 = sand.u32 %s42, 1
        %s394 = smul.addr %s393, 64
        %s395 = scalar_lea.vmem [#allocation2], %s394
        %p396 = pneg %p55
        %p397 = pneg %p52
        %s398 = sand.u32 %s68, 1
        %s399 = scalar_lea.sflag [#allocation6], %s398
        %s400 = sand.u32 %s68, 1
        %s401 = smul.addr %s400, 64
        %s402 = scalar_lea.vmem [#allocation5], %s401
        %p403 = pneg %p81
        %p404 = pneg %p78
        %p405 = pneg %p102
        %p406 = pneg %p99
        %p407 = pneg %p123
        %p408 = pneg %p120
        %p409 = pneg %p144
        %p410 = pneg %p141
        %p411 = pneg %p165
        %p412 = pneg %p162
        %p413 = pneg %p186
        %p414 = pneg %p183
        %p415 = pneg %p207
        %p416 = pneg %p204
        %p417 = pneg %p233
        %p418 = pneg %p230
        %s419 = sand.u32 %s220, 1
        %s420 = scalar_lea.sflag [#allocation4], %s419
        %s421 = sand.u32 %s220, 1
        %s422 = smul.addr %s421, 32
        %s423 = scalar_lea.vmem [#allocation7], %s422
        %p424 = pneg %p259
        %p425 = pneg %p256
        %s426 = sand.u32 %s34, 1
        %s427 = scalar_lea.sflag [#allocation9], %s426
        %s428 = sand.u32 %s246, 1
        %s429 = smul.addr %s428, 32
        %s430 = scalar_lea.vmem [#allocation8], %s429
        %p431 = pneg %p285
        %p432 = pneg %p282
        %s433 = sand.u32 %s34, 1
        %s434 = scalar_lea.sflag [#allocation9], %s433
        %s435 = sand.u32 %s272, 1
        %s436 = smul.addr %s435, 32
        %s437 = scalar_lea.vmem [#allocation10], %s436
        %s438 = smul.u32 4, %s34
        %s439 = smul.u32 4, %s34
        %s440 = smul.u32 4, %s34
        %s441 = smul.u32 4, %s34
        %s442 = smul.u32 4, %s34
        %v443 = vld [vmem:[%s2] sm:$0xff]
        %v444 = vld [vmem:[%s3] sm:$0xff]
        %v445 = vld [vmem:[%s4] sm:$0xff]
        %v446 = vld [vmem:[%s5] sm:$0xff]
        %v447 = vld [vmem:[%s5 + $0x8] sm:$0xff]
        %v448 = vld [vmem:[%s6] sm:$0xff]
        %v449 = vld [vmem:[%s6 + $0x8] sm:$0xff]
        %v450 = vld [vmem:[%s7] sm:$0xff]
        %v451 = vld [vmem:[%s7 + $0x8] sm:$0xff]
        %v452 = vld [vmem:[%s386] sm:$0xff]
        %v453 = vld [vmem:[%s386 + $0x8] sm:$0xff]
        %v454 = vld [vmem:[%s377] sm:$0xff]
        %v455 = vld [vmem:[%s377 + $0x8] sm:$0xff]
        %v456 = vand.u32 2147483647, %v452
        %vm457 = vcmp.le.f32.partialorder %v456, 0.7853982
        %vm458 = vcmp.lt.s32.totalorder %v452, 0
        %v459 = vand.u32 %v452, 2139095040
        %v460 = vshrl.u32 %v459, 23
        %v461 = vsub.s32 %v460, 127
        %v462 = vand.u32 2147483647, %v452
        %v463 = vand.u32 %v462, 8388607
        %v464 = vor.u32 %v463, 8388608
        %v465 = vsub.s32 0, %v464
        %v466 = vadd.s32 %v461, 1
        %vm467 = vcmp.gt.s32.totalorder %v466, 0
        %v468 = vsel %vm467, %v466, 0
        %v469 = vshrl.u32 %v468, 5
        %v470 = vand.u32 %v468, 31
        %v471 = vsub.s32 32, %v470
        %v472 = vshrl.u32 683565275, %v471
        %v473 = vshll.u32 683565275, %v470
        %v474 = vshrl.u32 2475754826, %v471
        %v475 = vor.u32 %v473, %v474
        %v476 = vshll.u32 2475754826, %v470
        %v477 = vshrl.u32 2131351028, %v471
        %v478 = vor.u32 %v476, %v477
        %v479 = vshll.u32 2131351028, %v470
        %v480 = vshrl.u32 2102212464, %v471
        %v481 = vor.u32 %v479, %v480
        %v482 = vshll.u32 2102212464, %v470
        %v483 = vshrl.u32 920167782, %v471
        %v484 = vor.u32 %v482, %v483
        %v485 = vshll.u32 920167782, %v470
        %v486 = vshrl.u32 1326507024, %v471
        %v487 = vor.u32 %v485, %v486
        %vm488 = vcmp.lt.s32.totalorder %v469, 1
        %vm489 = vcmp.lt.s32.totalorder %v469, 2
        %vm490 = vcmp.lt.s32.totalorder %v469, 3
        %vm491 = vcmp.lt.s32.totalorder %v469, 4
        %v492 = vsel %vm488, %v472, %v475
        %v493 = vsel %vm491, %v481, 2102212464
        %v494 = vsel %vm490, %v478, %v493
        %v495 = vsel %vm489, %v492, %v494
        %v496 = vsel %vm488, %v475, %v478
        %v497 = vsel %vm491, %v484, 920167782
        %v498 = vsel %vm490, %v481, %v497
        %v499 = vsel %vm489, %v496, %v498
        %v500 = vsel %vm488, %v478, %v481
        %v501 = vsel %vm491, %v487, 1326507024
        %v502 = vsel %vm490, %v484, %v501
        %v503 = vsel %vm489, %v500, %v502
        %v504 = vshll.u32 %v464, 8
        %v505 = vmul.u32.u64.compose %v504, %v503
        %v506 = vextract.low.u32 %v505
        %v507 = vextract.high.u32 %v505
        %v508 = vmul.u32.u64.compose %v504, %v499
        %v509 = vextract.low.u32 %v508
        %v510 = vextract.high.u32 %v508
        %v511 = vmul.u32 %v504, %v495
        %v512 = vadd.s32 %v507, %v509
        %vm513 = vc.u32 %v507, %v509
        %v514 = vadd.s32 %v510, 1
        %v515 = vsel %vm513, %v514, %v510
        %v516 = vadd.s32 %v511, %v515
        %v517 = vadd.s32 %v516, 536870912
        %v518 = vshrl.u32 %v517, 30
        %v519 = vshll.u32 %v518, 30
        %v520 = vsub.s32 %v516, %v519
        %vm521 = vcmp.lt.s32.totalorder %v520, 0
        %v522 = vsub.s32 0, %v520
        %v523 = vsel %vm521, %v522, %v520
        %v524 = vclz %v523
        %v525 = vsub.s32 %v524, 2
        %vm526 = vcmp.gt.s32.totalorder 0, %v525
        %v527 = vsel %vm526, 0, %v525
        %v528 = vsub.s32 32, %v527
        %v529 = vshll.u32 %v520, %v527
        %v530 = vshrl.u32 %v512, %v528
        %v531 = vor.u32 %v529, %v530
        %v532 = vsub.s32 4294967266, %v527
        %v533 = vadd.s32 %v532, 127
        %v534 = vshll.u32 %v533, 23
        %v535 = vor.u32 4788187, %v534
        %v536 = vand.u32 2147483647, %v535
        %v538 = vcvt.s32.f32 %v531
        %v539 = vmul.f32 %v538, %v536
        %v540 = vxor.u32 %v539, 2147483648
        %v541 = vsel %vm458, %v540, %v539
        %v542 = vsub.s32 4, %v518
        %v543 = vsel %vm458, %v542, %v518
        %v544 = vsel %vm457, %v452, %v541
        %v545 = vsel %vm457, 0, %v543
        %v546 = vcosq.f32.pop %v544
        %v547 = vsinq.f32.pop %v544
        %vm548 = vweird.f32 %v452
        %v549 = vand.u32 %v545, 3
        %vm550 = vcmp.lt.s32.totalorder %v549, 2
        %vm551 = vcmp.eq.s32.totalorder %v549, 0
        %v552 = vxor.u32 %v547, 2147483648
        %v553 = vsel %vm551, %v546, %v552
        %vm554 = vcmp.eq.s32.totalorder %v549, 2
        %v555 = vxor.u32 %v546, 2147483648
        %v556 = vsel %vm554, %v555, %v547
        %v557 = vsel %vm550, %v553, %v556
        %v558 = vsel %vm548, nan, %v557
        %v559 = vand.u32 2147483647, %v453
        %vm560 = vcmp.le.f32.partialorder %v559, 0.7853982
        %vm561 = vcmp.lt.s32.totalorder %v453, 0
        %v562 = vand.u32 %v453, 2139095040
        %v563 = vshrl.u32 %v562, 23
        %v564 = vsub.s32 %v563, 127
        %v565 = vand.u32 2147483647, %v453
        %v566 = vand.u32 %v565, 8388607
        %v567 = vor.u32 %v566, 8388608
        %v568 = vsub.s32 0, %v567
        %v569 = vadd.s32 %v564, 1
        %vm570 = vcmp.gt.s32.totalorder %v569, 0
        %v571 = vsel %vm570, %v569, 0
        %v572 = vshrl.u32 %v571, 5
        %v573 = vand.u32 %v571, 31
        %v574 = vsub.s32 32, %v573
        %v575 = vshrl.u32 683565275, %v574
        %v576 = vshll.u32 683565275, %v573
        %v577 = vshrl.u32 2475754826, %v574
        %v578 = vor.u32 %v576, %v577
        %v579 = vshll.u32 2475754826, %v573
        %v580 = vshrl.u32 2131351028, %v574
        %v581 = vor.u32 %v579, %v580
        %v582 = vshll.u32 2131351028, %v573
        %v583 = vshrl.u32 2102212464, %v574
        %v584 = vor.u32 %v582, %v583
        %v585 = vshll.u32 2102212464, %v573
        %v586 = vshrl.u32 920167782, %v574
        %v587 = vor.u32 %v585, %v586
        %v588 = vshll.u32 920167782, %v573
        %v589 = vshrl.u32 1326507024, %v574
        %v590 = vor.u32 %v588, %v589
        %vm591 = vcmp.lt.s32.totalorder %v572, 1
        %vm592 = vcmp.lt.s32.totalorder %v572, 2
        %vm593 = vcmp.lt.s32.totalorder %v572, 3
        %vm594 = vcmp.lt.s32.totalorder %v572, 4
        %v595 = vsel %vm591, %v575, %v578
        %v596 = vsel %vm594, %v584, 2102212464
        %v597 = vsel %vm593, %v581, %v596
        %v598 = vsel %vm592, %v595, %v597
        %v599 = vsel %vm591, %v578, %v581
        %v600 = vsel %vm594, %v587, 920167782
        %v601 = vsel %vm593, %v584, %v600
        %v602 = vsel %vm592, %v599, %v601
        %v603 = vsel %vm591, %v581, %v584
        %v604 = vsel %vm594, %v590, 1326507024
        %v605 = vsel %vm593, %v587, %v604
        %v606 = vsel %vm592, %v603, %v605
        %v607 = vshll.u32 %v567, 8
        %v608 = vmul.u32.u64.compose %v607, %v606
        %v609 = vextract.low.u32 %v608
        %v610 = vextract.high.u32 %v608
        %v611 = vmul.u32.u64.compose %v607, %v602
        %v612 = vextract.low.u32 %v611
        %v613 = vextract.high.u32 %v611
        %v614 = vmul.u32 %v607, %v598
        %v615 = vadd.s32 %v610, %v612
        %vm616 = vc.u32 %v610, %v612
        %v617 = vadd.s32 %v613, 1
        %v618 = vsel %vm616, %v617, %v613
        %v619 = vadd.s32 %v614, %v618
        %v620 = vadd.s32 %v619, 536870912
        %v621 = vshrl.u32 %v620, 30
        %v622 = vshll.u32 %v621, 30
        %v623 = vsub.s32 %v619, %v622
        %vm624 = vcmp.lt.s32.totalorder %v623, 0
        %v625 = vsub.s32 0, %v623
        %v626 = vsel %vm624, %v625, %v623
        %v627 = vclz %v626
        %v628 = vsub.s32 %v627, 2
        %vm629 = vcmp.gt.s32.totalorder 0, %v628
        %v630 = vsel %vm629, 0, %v628
        %v631 = vsub.s32 32, %v630
        %v632 = vshll.u32 %v623, %v630
        %v633 = vshrl.u32 %v615, %v631
        %v634 = vor.u32 %v632, %v633
        %v635 = vsub.s32 4294967266, %v630
        %v636 = vadd.s32 %v635, 127
        %v637 = vshll.u32 %v636, 23
        %v638 = vor.u32 4788187, %v637
        %v639 = vand.u32 2147483647, %v638
        %v641 = vcvt.s32.f32 %v634
        %v642 = vmul.f32 %v641, %v639
        %v643 = vxor.u32 %v642, 2147483648
        %v644 = vsel %vm561, %v643, %v642
        %v645 = vsub.s32 4, %v621
        %v646 = vsel %vm561, %v645, %v621
        %v647 = vsel %vm560, %v453, %v644
        %v648 = vsel %vm560, 0, %v646
        %v649 = vcosq.f32.pop %v647
        %v650 = vsinq.f32.pop %v647
        %vm651 = vweird.f32 %v453
        %v652 = vand.u32 %v648, 3
        %vm653 = vcmp.lt.s32.totalorder %v652, 2
        %vm654 = vcmp.eq.s32.totalorder %v652, 0
        %v655 = vxor.u32 %v650, 2147483648
        %v656 = vsel %vm654, %v649, %v655
        %vm657 = vcmp.eq.s32.totalorder %v652, 2
        %v658 = vxor.u32 %v649, 2147483648
        %v659 = vsel %vm657, %v658, %v650
        %v660 = vsel %vm653, %v656, %v659
        %v661 = vsel %vm651, nan, %v660
        %v662 = vmul.f32 %v558, %v454
        %v663 = vmul.f32 %v661, %v455
        %v664 = vand.u32 2147483647, %v452
        %vm665 = vcmp.le.f32.partialorder %v664, 0.7853982
        %vm666 = vcmp.lt.s32.totalorder %v452, 0
        %v667 = vand.u32 %v452, 2139095040
        %v668 = vshrl.u32 %v667, 23
        %v669 = vsub.s32 %v668, 127
        %v670 = vand.u32 2147483647, %v452
        %v671 = vand.u32 %v670, 8388607
        %v672 = vor.u32 %v671, 8388608
        %v673 = vsub.s32 0, %v672
        %v674 = vadd.s32 %v669, 1
        %vm675 = vcmp.gt.s32.totalorder %v674, 0
        %v676 = vsel %vm675, %v674, 0
        %v677 = vshrl.u32 %v676, 5
        %v678 = vand.u32 %v676, 31
        %v679 = vsub.s32 32, %v678
        %v680 = vshrl.u32 683565275, %v679
        %v681 = vshll.u32 683565275, %v678
        %v682 = vshrl.u32 2475754826, %v679
        %v683 = vor.u32 %v681, %v682
        %v684 = vshll.u32 2475754826, %v678
        %v685 = vshrl.u32 2131351028, %v679
        %v686 = vor.u32 %v684, %v685
        %v687 = vshll.u32 2131351028, %v678
        %v688 = vshrl.u32 2102212464, %v679
        %v689 = vor.u32 %v687, %v688
        %v690 = vshll.u32 2102212464, %v678
        %v691 = vshrl.u32 920167782, %v679
        %v692 = vor.u32 %v690, %v691
        %v693 = vshll.u32 920167782, %v678
        %v694 = vshrl.u32 1326507024, %v679
        %v695 = vor.u32 %v693, %v694
        %vm696 = vcmp.lt.s32.totalorder %v677, 1
        %vm697 = vcmp.lt.s32.totalorder %v677, 2
        %vm698 = vcmp.lt.s32.totalorder %v677, 3
        %vm699 = vcmp.lt.s32.totalorder %v677, 4
        %v700 = vsel %vm696, %v680, %v683
        %v701 = vsel %vm699, %v689, 2102212464
        %v702 = vsel %vm698, %v686, %v701
        %v703 = vsel %vm697, %v700, %v702
        %v704 = vsel %vm696, %v683, %v686
        %v705 = vsel %vm699, %v692, 920167782
        %v706 = vsel %vm698, %v689, %v705
        %v707 = vsel %vm697, %v704, %v706
        %v708 = vsel %vm696, %v686, %v689
        %v709 = vsel %vm699, %v695, 1326507024
        %v710 = vsel %vm698, %v692, %v709
        %v711 = vsel %vm697, %v708, %v710
        %v712 = vshll.u32 %v672, 8
        %v713 = vmul.u32.u64.compose %v712, %v711
        %v714 = vextract.low.u32 %v713
        %v715 = vextract.high.u32 %v713
        %v716 = vmul.u32.u64.compose %v712, %v707
        %v717 = vextract.low.u32 %v716
        %v718 = vextract.high.u32 %v716
        %v719 = vmul.u32 %v712, %v703
        %v720 = vadd.s32 %v715, %v717
        %vm721 = vc.u32 %v715, %v717
        %v722 = vadd.s32 %v718, 1
        %v723 = vsel %vm721, %v722, %v718
        %v724 = vadd.s32 %v719, %v723
        %v725 = vadd.s32 %v724, 536870912
        %v726 = vshrl.u32 %v725, 30
        %v727 = vshll.u32 %v726, 30
        %v728 = vsub.s32 %v724, %v727
        %vm729 = vcmp.lt.s32.totalorder %v728, 0
        %v730 = vsub.s32 0, %v728
        %v731 = vsel %vm729, %v730, %v728
        %v732 = vclz %v731
        %v733 = vsub.s32 %v732, 2
        %vm734 = vcmp.gt.s32.totalorder 0, %v733
        %v735 = vsel %vm734, 0, %v733
        %v736 = vsub.s32 32, %v735
        %v737 = vshll.u32 %v728, %v735
        %v738 = vshrl.u32 %v720, %v736
        %v739 = vor.u32 %v737, %v738
        %v740 = vsub.s32 4294967266, %v735
        %v741 = vadd.s32 %v740, 127
        %v742 = vshll.u32 %v741, 23
        %v743 = vor.u32 4788187, %v742
        %v744 = vand.u32 2147483647, %v743
        %v746 = vcvt.s32.f32 %v739
        %v747 = vmul.f32 %v746, %v744
        %v748 = vxor.u32 %v747, 2147483648
        %v749 = vsel %vm666, %v748, %v747
        %v750 = vsub.s32 4, %v726
        %v751 = vsel %vm666, %v750, %v726
        %v752 = vsel %vm665, %v452, %v749
        %v753 = vsel %vm665, 0, %v751
        %v754 = vcosq.f32.pop %v752
        %v755 = vsinq.f32.pop %v752
        %vm756 = vweird.f32 %v452
        %v757 = vadd.s32 %v753, 3
        %v758 = vand.u32 %v757, 3
        %vm759 = vcmp.lt.s32.totalorder %v758, 2
        %vm760 = vcmp.eq.s32.totalorder %v758, 0
        %v761 = vxor.u32 %v755, 2147483648
        %v762 = vsel %vm760, %v754, %v761
        %vm763 = vcmp.eq.s32.totalorder %v758, 2
        %v764 = vxor.u32 %v754, 2147483648
        %v765 = vsel %vm763, %v764, %v755
        %v766 = vsel %vm759, %v762, %v765
        %v767 = vsel %vm756, nan, %v766
        %v768 = vand.u32 2147483647, %v453
        %vm769 = vcmp.le.f32.partialorder %v768, 0.7853982
        %vm770 = vcmp.lt.s32.totalorder %v453, 0
        %v771 = vand.u32 %v453, 2139095040
        %v772 = vshrl.u32 %v771, 23
        %v773 = vsub.s32 %v772, 127
        %v774 = vand.u32 2147483647, %v453
        %v775 = vand.u32 %v774, 8388607
        %v776 = vor.u32 %v775, 8388608
        %v777 = vsub.s32 0, %v776
        %v778 = vadd.s32 %v773, 1
        %vm779 = vcmp.gt.s32.totalorder %v778, 0
        %v780 = vsel %vm779, %v778, 0
        %v781 = vshrl.u32 %v780, 5
        %v782 = vand.u32 %v780, 31
        %v783 = vsub.s32 32, %v782
        %v784 = vshrl.u32 683565275, %v783
        %v785 = vshll.u32 683565275, %v782
        %v786 = vshrl.u32 2475754826, %v783
        %v787 = vor.u32 %v785, %v786
        %v788 = vshll.u32 2475754826, %v782
        %v789 = vshrl.u32 2131351028, %v783
        %v790 = vor.u32 %v788, %v789
        %v791 = vshll.u32 2131351028, %v782
        %v792 = vshrl.u32 2102212464, %v783
        %v793 = vor.u32 %v791, %v792
        %v794 = vshll.u32 2102212464, %v782
        %v795 = vshrl.u32 920167782, %v783
        %v796 = vor.u32 %v794, %v795
        %v797 = vshll.u32 920167782, %v782
        %v798 = vshrl.u32 1326507024, %v783
        %v799 = vor.u32 %v797, %v798
        %vm800 = vcmp.lt.s32.totalorder %v781, 1
        %vm801 = vcmp.lt.s32.totalorder %v781, 2
        %vm802 = vcmp.lt.s32.totalorder %v781, 3
        %vm803 = vcmp.lt.s32.totalorder %v781, 4
        %v804 = vsel %vm800, %v784, %v787
        %v805 = vsel %vm803, %v793, 2102212464
        %v806 = vsel %vm802, %v790, %v805
        %v807 = vsel %vm801, %v804, %v806
        %v808 = vsel %vm800, %v787, %v790
        %v809 = vsel %vm803, %v796, 920167782
        %v810 = vsel %vm802, %v793, %v809
        %v811 = vsel %vm801, %v808, %v810
        %v812 = vsel %vm800, %v790, %v793
        %v813 = vsel %vm803, %v799, 1326507024
        %v814 = vsel %vm802, %v796, %v813
        %v815 = vsel %vm801, %v812, %v814
        %v816 = vshll.u32 %v776, 8
        %v817 = vmul.u32.u64.compose %v816, %v815
        %v818 = vextract.low.u32 %v817
        %v819 = vextract.high.u32 %v817
        %v820 = vmul.u32.u64.compose %v816, %v811
        %v821 = vextract.low.u32 %v820
        %v822 = vextract.high.u32 %v820
        %v823 = vmul.u32 %v816, %v807
        %v824 = vadd.s32 %v819, %v821
        %vm825 = vc.u32 %v819, %v821
        %v826 = vadd.s32 %v822, 1
        %v827 = vsel %vm825, %v826, %v822
        %v828 = vadd.s32 %v823, %v827
        %v829 = vadd.s32 %v828, 536870912
        %v830 = vshrl.u32 %v829, 30
        %v831 = vshll.u32 %v830, 30
        %v832 = vsub.s32 %v828, %v831
        %vm833 = vcmp.lt.s32.totalorder %v832, 0
        %v834 = vsub.s32 0, %v832
        %v835 = vsel %vm833, %v834, %v832
        %v836 = vclz %v835
        %v837 = vsub.s32 %v836, 2
        %vm838 = vcmp.gt.s32.totalorder 0, %v837
        %v839 = vsel %vm838, 0, %v837
        %v840 = vsub.s32 32, %v839
        %v841 = vshll.u32 %v832, %v839
        %v842 = vshrl.u32 %v824, %v840
        %v843 = vor.u32 %v841, %v842
        %v844 = vsub.s32 4294967266, %v839
        %v845 = vadd.s32 %v844, 127
        %v846 = vshll.u32 %v845, 23
        %v847 = vor.u32 4788187, %v846
        %v848 = vand.u32 2147483647, %v847
        %v850 = vcvt.s32.f32 %v843
        %v851 = vmul.f32 %v850, %v848
        %v852 = vxor.u32 %v851, 2147483648
        %v853 = vsel %vm770, %v852, %v851
        %v854 = vsub.s32 4, %v830
        %v855 = vsel %vm770, %v854, %v830
        %v856 = vsel %vm769, %v453, %v853
        %v857 = vsel %vm769, 0, %v855
        %v858 = vcosq.f32.pop %v856
        %v859 = vsinq.f32.pop %v856
        %vm860 = vweird.f32 %v453
        %v861 = vadd.s32 %v857, 3
        %v862 = vand.u32 %v861, 3
        %vm863 = vcmp.lt.s32.totalorder %v862, 2
        %vm864 = vcmp.eq.s32.totalorder %v862, 0
        %v865 = vxor.u32 %v859, 2147483648
        %v866 = vsel %vm864, %v858, %v865
        %vm867 = vcmp.eq.s32.totalorder %v862, 2
        %v868 = vxor.u32 %v858, 2147483648
        %v869 = vsel %vm867, %v868, %v859
        %v870 = vsel %vm863, %v866, %v869
        %v871 = vsel %vm860, nan, %v870
        %v872 = vmul.f32 %v767, %v454
        %v873 = vmul.f32 %v871, %v455
        %v874 = vadd.f32 %v662, %v872
        %v875 = vadd.f32 %v663, %v873
        %vm876 = vcmask 130048
        %v878 = vsel %vm876, %v443, 0
        %880 = vmatprep.subr.mxu0 0.0
        %881 = vmatpush1.msra.mxu0 %v662
        %882 = vmatprep.subr.mxu0 0.0
        %883 = vmatpush1.msra.mxu0 %v663
        %884 = vmatprep.subr.mxu0 0.0
        %885 = vmatpush1.msra.mxu0 0.0
        %886 = vmatprep.subr.mxu0 0.0
        %887 = vmatpush1.msra.mxu0 0.0
        %888 = vmatprep.subr.mxu0 0.0
        %889 = vmatpush1.msra.mxu0 0.0
        %890 = vmatprep.subr.mxu0 0.0
        %891 = vmatpush1.msra.mxu0 0.0
        %892 = vmatprep.subr.mxu0 0.0
        %893 = vmatpush1.msra.mxu0 0.0
        %894 = vmatprep.subr.mxu0 0.0
        %895 = vmatpush1.msra.mxu0 0.0
        %896 = vmatprep.subr.mxu0 0.0
        %897 = vmatpush1.msra.mxu0 0.0
        %898 = vmatprep.subr.mxu0 0.0
        %899 = vmatpush1.msra.mxu0 0.0
        %900 = vmatprep.subr.mxu0 0.0
        %901 = vmatpush1.msra.mxu0 0.0
        %902 = vmatprep.subr.mxu0 0.0
        %903 = vmatpush1.msra.mxu0 0.0
        %904 = vmatprep.subr.mxu0 0.0
        %905 = vmatpush1.msra.mxu0 0.0
        %906 = vmatprep.subr.mxu0 0.0
        %907 = vmatpush1.msra.mxu0 0.0
        %908 = vmatprep.subr.mxu0 0.0
        %909 = vmatpush1.msra.mxu0 0.0
        %910 = vmatprep.subr.mxu0 0.0
        %911 = vmatpush1.msra.mxu0 0.0
        %912 = vmatprep.subr.mxu0 0.0
        %913 = vmatpush1.msra.mxu0 0.0
        %914 = vmatprep.subr.mxu0 0.0
        %915 = vmatpush1.msra.mxu0 0.0
        %916 = vmatprep.subr.mxu0 0.0
        %917 = vmatpush1.msra.mxu0 0.0
        %918 = vmatprep.subr.mxu0 0.0
        %919 = vmatpush1.msra.mxu0 0.0
        %920 = vmatprep.subr.mxu0 0.0
        %921 = vmatpush1.msra.mxu0 0.0
        %922 = vmatprep.subr.mxu0 0.0
        %923 = vmatpush1.msra.mxu0 0.0
        %924 = vmatprep.subr.mxu0 0.0
        %925 = vmatpush1.msra.mxu0 0.0
        %926 = vmatprep.subr.mxu0 0.0
        %927 = vmatpush1.msra.mxu0 0.0
        %928 = vmatprep.subr.mxu0 0.0
        %929 = vmatpush1.msra.mxu0 0.0
        %930 = vmatprep.subr.mxu0 0.0
        %931 = vmatpush1.msra.mxu0 0.0
        %932 = vmatprep.subr.mxu0 0.0
        %933 = vmatpush1.msra.mxu0 0.0
        %934 = vmatprep.subr.mxu0 0.0
        %935 = vmatpush1.msra.mxu0 0.0
        %936 = vmatprep.subr.mxu0 0.0
        %937 = vmatpush1.msra.mxu0 0.0
        %938 = vmatprep.subr.mxu0 0.0
        %939 = vmatpush1.msra.mxu0 0.0
        %940 = vmatprep.subr.mxu0 0.0
        %941 = vmatpush1.msra.mxu0 0.0
        %942 = vmatprep.subr.mxu0 0.0
        %943 = vmatpush1.msra.mxu0 0.0
        %944 = vmatprep.mubr.f32.mxu0 0.0
        %945 = vmatmul.mubr.f32.gmra.mrb[0].mxu0 %v878
        %v946 = vpop.f32.mrb[0].mxu0
        %v947 = vadd.f32 0.0, %v946
        %v948 = vpop.f32.mrb[0].mxu0
        %949 = vdwg.mxu0
        %v951 = vsel %vm876, %v444, 0
        %953 = vmatprep.subr.mxu0 0.0
        %954 = vmatpush1.msra.mxu0 %v872
        %955 = vmatprep.subr.mxu0 0.0
        %956 = vmatpush1.msra.mxu0 %v873
        %957 = vmatprep.subr.mxu0 0.0
        %958 = vmatpush1.msra.mxu0 0.0
        %959 = vmatprep.subr.mxu0 0.0
        %960 = vmatpush1.msra.mxu0 0.0
        %961 = vmatprep.subr.mxu0 0.0
        %962 = vmatpush1.msra.mxu0 0.0
        %963 = vmatprep.subr.mxu0 0.0
        %964 = vmatpush1.msra.mxu0 0.0
        %965 = vmatprep.subr.mxu0 0.0
        %966 = vmatpush1.msra.mxu0 0.0
        %967 = vmatprep.subr.mxu0 0.0
        %968 = vmatpush1.msra.mxu0 0.0
        %969 = vmatprep.subr.mxu0 0.0
        %970 = vmatpush1.msra.mxu0 0.0
        %971 = vmatprep.subr.mxu0 0.0
        %972 = vmatpush1.msra.mxu0 0.0
        %973 = vmatprep.subr.mxu0 0.0
        %974 = vmatpush1.msra.mxu0 0.0
        %975 = vmatprep.subr.mxu0 0.0
        %976 = vmatpush1.msra.mxu0 0.0
        %977 = vmatprep.subr.mxu0 0.0
        %978 = vmatpush1.msra.mxu0 0.0
        %979 = vmatprep.subr.mxu0 0.0
        %980 = vmatpush1.msra.mxu0 0.0
        %981 = vmatprep.subr.mxu0 0.0
        %982 = vmatpush1.msra.mxu0 0.0
        %983 = vmatprep.subr.mxu0 0.0
        %984 = vmatpush1.msra.mxu0 0.0
        %985 = vmatprep.subr.mxu0 0.0
        %986 = vmatpush1.msra.mxu0 0.0
        %987 = vmatprep.subr.mxu0 0.0
        %988 = vmatpush1.msra.mxu0 0.0
        %989 = vmatprep.subr.mxu0 0.0
        %990 = vmatpush1.msra.mxu0 0.0
        %991 = vmatprep.subr.mxu0 0.0
        %992 = vmatpush1.msra.mxu0 0.0
        %993 = vmatprep.subr.mxu0 0.0
        %994 = vmatpush1.msra.mxu0 0.0
        %995 = vmatprep.subr.mxu0 0.0
        %996 = vmatpush1.msra.mxu0 0.0
        %997 = vmatprep.subr.mxu0 0.0
        %998 = vmatpush1.msra.mxu0 0.0
        %999 = vmatprep.subr.mxu0 0.0
        %1000 = vmatpush1.msra.mxu0 0.0
        %1001 = vmatprep.subr.mxu0 0.0
        %1002 = vmatpush1.msra.mxu0 0.0
        %1003 = vmatprep.subr.mxu0 0.0
        %1004 = vmatpush1.msra.mxu0 0.0
        %1005 = vmatprep.subr.mxu0 0.0
        %1006 = vmatpush1.msra.mxu0 0.0
        %1007 = vmatprep.subr.mxu0 0.0
        %1008 = vmatpush1.msra.mxu0 0.0
        %1009 = vmatprep.subr.mxu0 0.0
        %1010 = vmatpush1.msra.mxu0 0.0
        %1011 = vmatprep.subr.mxu0 0.0
        %1012 = vmatpush1.msra.mxu0 0.0
        %1013 = vmatprep.subr.mxu0 0.0
        %1014 = vmatpush1.msra.mxu0 0.0
        %1015 = vmatprep.subr.mxu0 0.0
        %1016 = vmatpush1.msra.mxu0 0.0
        %1017 = vmatprep.mubr.f32.mxu0 0.0
        %1018 = vmatmul.mubr.f32.gmra.mrb[0].mxu0 %v951
        %v1019 = vpop.f32.mrb[0].mxu0
        %v1020 = vadd.f32 0.0, %v1019
        %v1021 = vpop.f32.mrb[0].mxu0
        %1022 = vdwg.mxu0
        %v1024 = vsel %vm876, %v445, 0
        %1026 = vmatprep.subr.mxu0 0.0
        %1027 = vmatpush1.msra.mxu0 %v874
        %1028 = vmatprep.subr.mxu0 0.0
        %1029 = vmatpush1.msra.mxu0 %v875
        %1030 = vmatprep.subr.mxu0 0.0
        %1031 = vmatpush1.msra.mxu0 0.0
        %1032 = vmatprep.subr.mxu0 0.0
        %1033 = vmatpush1.msra.mxu0 0.0
        %1034 = vmatprep.subr.mxu0 0.0
        %1035 = vmatpush1.msra.mxu0 0.0
        %1036 = vmatprep.subr.mxu0 0.0
        %1037 = vmatpush1.msra.mxu0 0.0
        %1038 = vmatprep.subr.mxu0 0.0
        %1039 = vmatpush1.msra.mxu0 0.0
        %1040 = vmatprep.subr.mxu0 0.0
        %1041 = vmatpush1.msra.mxu0 0.0
        %1042 = vmatprep.subr.mxu0 0.0
        %1043 = vmatpush1.msra.mxu0 0.0
        %1044 = vmatprep.subr.mxu0 0.0
        %1045 = vmatpush1.msra.mxu0 0.0
        %1046 = vmatprep.subr.mxu0 0.0
        %1047 = vmatpush1.msra.mxu0 0.0
        %1048 = vmatprep.subr.mxu0 0.0
        %1049 = vmatpush1.msra.mxu0 0.0
        %1050 = vmatprep.subr.mxu0 0.0
        %1051 = vmatpush1.msra.mxu0 0.0
        %1052 = vmatprep.subr.mxu0 0.0
        %1053 = vmatpush1.msra.mxu0 0.0
        %1054 = vmatprep.subr.mxu0 0.0
        %1055 = vmatpush1.msra.mxu0 0.0
        %1056 = vmatprep.subr.mxu0 0.0
        %1057 = vmatpush1.msra.mxu0 0.0
        %1058 = vmatprep.subr.mxu0 0.0
        %1059 = vmatpush1.msra.mxu0 0.0
        %1060 = vmatprep.subr.mxu0 0.0
        %1061 = vmatpush1.msra.mxu0 0.0
        %1062 = vmatprep.subr.mxu0 0.0
        %1063 = vmatpush1.msra.mxu0 0.0
        %1064 = vmatprep.subr.mxu0 0.0
        %1065 = vmatpush1.msra.mxu0 0.0
        %1066 = vmatprep.subr.mxu0 0.0
        %1067 = vmatpush1.msra.mxu0 0.0
        %1068 = vmatprep.subr.mxu0 0.0
        %1069 = vmatpush1.msra.mxu0 0.0
        %1070 = vmatprep.subr.mxu0 0.0
        %1071 = vmatpush1.msra.mxu0 0.0
        %1072 = vmatprep.subr.mxu0 0.0
        %1073 = vmatpush1.msra.mxu0 0.0
        %1074 = vmatprep.subr.mxu0 0.0
        %1075 = vmatpush1.msra.mxu0 0.0
        %1076 = vmatprep.subr.mxu0 0.0
        %1077 = vmatpush1.msra.mxu0 0.0
        %1078 = vmatprep.subr.mxu0 0.0
        %1079 = vmatpush1.msra.mxu0 0.0
        %1080 = vmatprep.subr.mxu0 0.0
        %1081 = vmatpush1.msra.mxu0 0.0
        %1082 = vmatprep.subr.mxu0 0.0
        %1083 = vmatpush1.msra.mxu0 0.0
        %1084 = vmatprep.subr.mxu0 0.0
        %1085 = vmatpush1.msra.mxu0 0.0
        %1086 = vmatprep.subr.mxu0 0.0
        %1087 = vmatpush1.msra.mxu0 0.0
        %1088 = vmatprep.subr.mxu0 0.0
        %1089 = vmatpush1.msra.mxu0 0.0
        %1090 = vmatprep.mubr.f32.mxu0 0.0
        %1091 = vmatmul.mubr.f32.gmra.mrb[0].mxu0 %v1024
        %v1092 = vpop.f32.mrb[0].mxu0
        %v1093 = vadd.f32 0.0, %v1092
        %v1094 = vpop.f32.mrb[0].mxu0
        %1095 = vdwg.mxu0
        %v1096 = vsub.f32 %v947, %v1020
        %v1097 = vsub.f32 %v1093, %v947
        %v1098 = vsub.f32 %v1097, %v1020
        %v1099 = vadd.f32 %v1096, %v1098
        %v1101 = vsel %vm876, %v1096, 0
        %1103 = vmatprep.subr.mxu0 0.0
        %1104 = vmatpush1.msra.mxu0 %v446
        %1105 = vmatprep.subr.mxu0 0.0
        %1106 = vmatpush1.msra.mxu0 %v447
        %1107 = vmatprep.subr.mxu0 0.0
        %1108 = vmatpush1.msra.mxu0 0.0
        %1109 = vmatprep.subr.mxu0 0.0
        %1110 = vmatpush1.msra.mxu0 0.0
        %1111 = vmatprep.subr.mxu0 0.0
        %1112 = vmatpush1.msra.mxu0 0.0
        %1113 = vmatprep.subr.mxu0 0.0
        %1114 = vmatpush1.msra.mxu0 0.0
        %1115 = vmatprep.subr.mxu0 0.0
        %1116 = vmatpush1.msra.mxu0 0.0
        %1117 = vmatprep.subr.mxu0 0.0
        %1118 = vmatpush1.msra.mxu0 0.0
        %1119 = vmatprep.subr.mxu0 0.0
        %1120 = vmatpush1.msra.mxu0 0.0
        %1121 = vmatprep.subr.mxu0 0.0
        %1122 = vmatpush1.msra.mxu0 0.0
        %1123 = vmatprep.subr.mxu0 0.0
        %1124 = vmatpush1.msra.mxu0 0.0
        %1125 = vmatprep.subr.mxu0 0.0
        %1126 = vmatpush1.msra.mxu0 0.0
        %1127 = vmatprep.subr.mxu0 0.0
        %1128 = vmatpush1.msra.mxu0 0.0
        %1129 = vmatprep.subr.mxu0 0.0
        %1130 = vmatpush1.msra.mxu0 0.0
        %1131 = vmatprep.subr.mxu0 0.0
        %1132 = vmatpush1.msra.mxu0 0.0
        %1133 = vmatprep.subr.mxu0 0.0
        %1134 = vmatpush1.msra.mxu0 0.0
        %1135 = vmatprep.subr.mxu0 0.0
        %1136 = vmatpush1.msra.mxu0 0.0
        %1137 = vmatprep.subr.mxu0 0.0
        %1138 = vmatpush1.msra.mxu0 0.0
        %1139 = vmatprep.subr.mxu0 0.0
        %1140 = vmatpush1.msra.mxu0 0.0
        %1141 = vmatprep.subr.mxu0 0.0
        %1142 = vmatpush1.msra.mxu0 0.0
        %1143 = vmatprep.subr.mxu0 0.0
        %1144 = vmatpush1.msra.mxu0 0.0
        %1145 = vmatprep.subr.mxu0 0.0
        %1146 = vmatpush1.msra.mxu0 0.0
        %1147 = vmatprep.subr.mxu0 0.0
        %1148 = vmatpush1.msra.mxu0 0.0
        %1149 = vmatprep.subr.mxu0 0.0
        %1150 = vmatpush1.msra.mxu0 0.0
        %1151 = vmatprep.subr.mxu0 0.0
        %1152 = vmatpush1.msra.mxu0 0.0
        %1153 = vmatprep.subr.mxu0 0.0
        %1154 = vmatpush1.msra.mxu0 0.0
        %1155 = vmatprep.subr.mxu0 0.0
        %1156 = vmatpush1.msra.mxu0 0.0
        %1157 = vmatprep.subr.mxu0 0.0
        %1158 = vmatpush1.msra.mxu0 0.0
        %1159 = vmatprep.subr.mxu0 0.0
        %1160 = vmatpush1.msra.mxu0 0.0
        %1161 = vmatprep.subr.mxu0 0.0
        %1162 = vmatpush1.msra.mxu0 0.0
        %1163 = vmatprep.subr.mxu0 0.0
        %1164 = vmatpush1.msra.mxu0 0.0
        %1165 = vmatprep.subr.mxu0 0.0
        %1166 = vmatpush1.msra.mxu0 0.0
        %1167 = vmatprep.mubr.f32.mxu0 0.0
        %1168 = vmatmul.mubr.f32.gmra.mrb[0].mxu0 %v1101
        %v1169 = vpop.f32.mrb[0].mxu0
        %v1170 = vadd.f32 0.0, %v1169
        %v1171 = vpop.f32.mrb[0].mxu0
        %1172 = vdwg.mxu0
        %v1174 = vsel %vm876, %v1098, 0
        %1176 = vmatprep.subr.mxu0 0.0
        %1177 = vmatpush1.msra.mxu0 %v448
        %1178 = vmatprep.subr.mxu0 0.0
        %1179 = vmatpush1.msra.mxu0 %v449
        %1180 = vmatprep.subr.mxu0 0.0
        %1181 = vmatpush1.msra.mxu0 0.0
        %1182 = vmatprep.subr.mxu0 0.0
        %1183 = vmatpush1.msra.mxu0 0.0
        %1184 = vmatprep.subr.mxu0 0.0
        %1185 = vmatpush1.msra.mxu0 0.0
        %1186 = vmatprep.subr.mxu0 0.0
        %1187 = vmatpush1.msra.mxu0 0.0
        %1188 = vmatprep.subr.mxu0 0.0
        %1189 = vmatpush1.msra.mxu0 0.0
        %1190 = vmatprep.subr.mxu0 0.0
        %1191 = vmatpush1.msra.mxu0 0.0
        %1192 = vmatprep.subr.mxu0 0.0
        %1193 = vmatpush1.msra.mxu0 0.0
        %1194 = vmatprep.subr.mxu0 0.0
        %1195 = vmatpush1.msra.mxu0 0.0
        %1196 = vmatprep.subr.mxu0 0.0
        %1197 = vmatpush1.msra.mxu0 0.0
        %1198 = vmatprep.subr.mxu0 0.0
        %1199 = vmatpush1.msra.mxu0 0.0
        %1200 = vmatprep.subr.mxu0 0.0
        %1201 = vmatpush1.msra.mxu0 0.0
        %1202 = vmatprep.subr.mxu0 0.0
        %1203 = vmatpush1.msra.mxu0 0.0
        %1204 = vmatprep.subr.mxu0 0.0
        %1205 = vmatpush1.msra.mxu0 0.0
        %1206 = vmatprep.subr.mxu0 0.0
        %1207 = vmatpush1.msra.mxu0 0.0
        %1208 = vmatprep.subr.mxu0 0.0
        %1209 = vmatpush1.msra.mxu0 0.0
        %1210 = vmatprep.subr.mxu0 0.0
        %1211 = vmatpush1.msra.mxu0 0.0
        %1212 = vmatprep.subr.mxu0 0.0
        %1213 = vmatpush1.msra.mxu0 0.0
        %1214 = vmatprep.subr.mxu0 0.0
        %1215 = vmatpush1.msra.mxu0 0.0
        %1216 = vmatprep.subr.mxu0 0.0
        %1217 = vmatpush1.msra.mxu0 0.0
        %1218 = vmatprep.subr.mxu0 0.0
        %1219 = vmatpush1.msra.mxu0 0.0
        %1220 = vmatprep.subr.mxu0 0.0
        %1221 = vmatpush1.msra.mxu0 0.0
        %1222 = vmatprep.subr.mxu0 0.0
        %1223 = vmatpush1.msra.mxu0 0.0
        %1224 = vmatprep.subr.mxu0 0.0
        %1225 = vmatpush1.msra.mxu0 0.0
        %1226 = vmatprep.subr.mxu0 0.0
        %1227 = vmatpush1.msra.mxu0 0.0
        %1228 = vmatprep.subr.mxu0 0.0
        %1229 = vmatpush1.msra.mxu0 0.0
        %1230 = vmatprep.subr.mxu0 0.0
        %1231 = vmatpush1.msra.mxu0 0.0
        %1232 = vmatprep.subr.mxu0 0.0
        %1233 = vmatpush1.msra.mxu0 0.0
        %1234 = vmatprep.subr.mxu0 0.0
        %1235 = vmatpush1.msra.mxu0 0.0
        %1236 = vmatprep.subr.mxu0 0.0
        %1237 = vmatpush1.msra.mxu0 0.0
        %1238 = vmatprep.subr.mxu0 0.0
        %1239 = vmatpush1.msra.mxu0 0.0
        %1240 = vmatprep.mubr.f32.mxu0 0.0
        %1241 = vmatmul.mubr.f32.gmra.mrb[0].mxu0 %v1174
        %v1242 = vpop.f32.mrb[0].mxu0
        %v1243 = vadd.f32 0.0, %v1242
        %v1244 = vpop.f32.mrb[0].mxu0
        %1245 = vdwg.mxu0
        %v1247 = vsel %vm876, %v1099, 0
        %1249 = vmatprep.subr.mxu0 0.0
        %1250 = vmatpush1.msra.mxu0 %v450
        %1251 = vmatprep.subr.mxu0 0.0
        %1252 = vmatpush1.msra.mxu0 %v451
        %1253 = vmatprep.subr.mxu0 0.0
        %1254 = vmatpush1.msra.mxu0 0.0
        %1255 = vmatprep.subr.mxu0 0.0
        %1256 = vmatpush1.msra.mxu0 0.0
        %1257 = vmatprep.subr.mxu0 0.0
        %1258 = vmatpush1.msra.mxu0 0.0
        %1259 = vmatprep.subr.mxu0 0.0
        %1260 = vmatpush1.msra.mxu0 0.0
        %1261 = vmatprep.subr.mxu0 0.0
        %1262 = vmatpush1.msra.mxu0 0.0
        %1263 = vmatprep.subr.mxu0 0.0
        %1264 = vmatpush1.msra.mxu0 0.0
        %1265 = vmatprep.subr.mxu0 0.0
        %1266 = vmatpush1.msra.mxu0 0.0
        %1267 = vmatprep.subr.mxu0 0.0
        %1268 = vmatpush1.msra.mxu0 0.0
        %1269 = vmatprep.subr.mxu0 0.0
        %1270 = vmatpush1.msra.mxu0 0.0
        %1271 = vmatprep.subr.mxu0 0.0
        %1272 = vmatpush1.msra.mxu0 0.0
        %1273 = vmatprep.subr.mxu0 0.0
        %1274 = vmatpush1.msra.mxu0 0.0
        %1275 = vmatprep.subr.mxu0 0.0
        %1276 = vmatpush1.msra.mxu0 0.0
        %1277 = vmatprep.subr.mxu0 0.0
        %1278 = vmatpush1.msra.mxu0 0.0
        %1279 = vmatprep.subr.mxu0 0.0
        %1280 = vmatpush1.msra.mxu0 0.0
        %1281 = vmatprep.subr.mxu0 0.0
        %1282 = vmatpush1.msra.mxu0 0.0
        %1283 = vmatprep.subr.mxu0 0.0
        %1284 = vmatpush1.msra.mxu0 0.0
        %1285 = vmatprep.subr.mxu0 0.0
        %1286 = vmatpush1.msra.mxu0 0.0
        %1287 = vmatprep.subr.mxu0 0.0
        %1288 = vmatpush1.msra.mxu0 0.0
        %1289 = vmatprep.subr.mxu0 0.0
        %1290 = vmatpush1.msra.mxu0 0.0
        %1291 = vmatprep.subr.mxu0 0.0
        %1292 = vmatpush1.msra.mxu0 0.0
        %1293 = vmatprep.subr.mxu0 0.0
        %1294 = vmatpush1.msra.mxu0 0.0
        %1295 = vmatprep.subr.mxu0 0.0
        %1296 = vmatpush1.msra.mxu0 0.0
        %1297 = vmatprep.subr.mxu0 0.0
        %1298 = vmatpush1.msra.mxu0 0.0
        %1299 = vmatprep.subr.mxu0 0.0
        %1300 = vmatpush1.msra.mxu0 0.0
        %1301 = vmatprep.subr.mxu0 0.0
        %1302 = vmatpush1.msra.mxu0 0.0
        %1303 = vmatprep.subr.mxu0 0.0
        %1304 = vmatpush1.msra.mxu0 0.0
        %1305 = vmatprep.subr.mxu0 0.0
        %1306 = vmatpush1.msra.mxu0 0.0
        %1307 = vmatprep.subr.mxu0 0.0
        %1308 = vmatpush1.msra.mxu0 0.0
        %1309 = vmatprep.subr.mxu0 0.0
        %1310 = vmatpush1.msra.mxu0 0.0
        %1311 = vmatprep.subr.mxu0 0.0
        %1312 = vmatpush1.msra.mxu0 0.0
        %1313 = vmatprep.mubr.f32.mxu0 0.0
        %1314 = vmatmul.mubr.f32.gmra.mrb[0].mxu0 %v1247
        %v1315 = vpop.f32.mrb[0].mxu0
        %v1316 = vadd.f32 0.0, %v1315
        %v1317 = vpop.f32.mrb[0].mxu0
        %1318 = vdwg.mxu0
        %v1319 = vsub.f32 %v1170, %v1243
        %v1320 = vsub.f32 %v1316, %v1170
        %v1321 = vsub.f32 %v1320, %v1243
        %v1322 = vmul.f32 %v1319, %v1319
        %v1323 = vmul.f32 %v1321, %v1321
        %v1324 = vadd.f32 %v1322, %v1323
        %vm1325 = vcmask 64512
        %1326 = vst.msk [vmem:[%s423] sm:$0xff] %vm1325, %v1324
        %1327 = vst.msk [vmem:[%s430] sm:$0xff] %vm1325, %v1319
        %1328 = vst.msk [vmem:[%s437] sm:$0xff] %vm1325, %v1321
        %s1329 = scalar_lea.vmem %s386, 16 [#allocation5]
        %v1330 = vld [vmem:[%s1329] sm:$0xff]
        %v1331 = vld [vmem:[%s1329 + $0x8] sm:$0xff]
        %s1332 = scalar_lea.vmem %s377, 16 [#allocation2]
        %v1333 = vld [vmem:[%s1332] sm:$0xff]
        %v1334 = vld [vmem:[%s1332 + $0x8] sm:$0xff]
        %v1335 = vand.u32 2147483647, %v1330
        %vm1336 = vcmp.le.f32.partialorder %v1335, 0.7853982
        %vm1337 = vcmp.lt.s32.totalorder %v1330, 0
        %v1338 = vand.u32 %v1330, 2139095040
        %v1339 = vshrl.u32 %v1338, 23
        %v1340 = vsub.s32 %v1339, 127
        %v1341 = vand.u32 2147483647, %v1330
        %v1342 = vand.u32 %v1341, 8388607
        %v1343 = vor.u32 %v1342, 8388608
        %v1344 = vsub.s32 0, %v1343
        %v1345 = vadd.s32 %v1340, 1
        %vm1346 = vcmp.gt.s32.totalorder %v1345, 0
        %v1347 = vsel %vm1346, %v1345, 0
        %v1348 = vshrl.u32 %v1347, 5
        %v1349 = vand.u32 %v1347, 31
        %v1350 = vsub.s32 32, %v1349
        %v1351 = vshrl.u32 683565275, %v1350
        %v1352 = vshll.u32 683565275, %v1349
        %v1353 = vshrl.u32 2475754826, %v1350
        %v1354 = vor.u32 %v1352, %v1353
        %v1355 = vshll.u32 2475754826, %v1349
        %v1356 = vshrl.u32 2131351028, %v1350
        %v1357 = vor.u32 %v1355, %v1356
        %v1358 = vshll.u32 2131351028, %v1349
        %v1359 = vshrl.u32 2102212464, %v1350
        %v1360 = vor.u32 %v1358, %v1359
        %v1361 = vshll.u32 2102212464, %v1349
        %v1362 = vshrl.u32 920167782, %v1350
        %v1363 = vor.u32 %v1361, %v1362
        %v1364 = vshll.u32 920167782, %v1349
        %v1365 = vshrl.u32 1326507024, %v1350
        %v1366 = vor.u32 %v1364, %v1365
        %vm1367 = vcmp.lt.s32.totalorder %v1348, 1
        %vm1368 = vcmp.lt.s32.totalorder %v1348, 2
        %vm1369 = vcmp.lt.s32.totalorder %v1348, 3
        %vm1370 = vcmp.lt.s32.totalorder %v1348, 4
        %v1371 = vsel %vm1367, %v1351, %v1354
        %v1372 = vsel %vm1370, %v1360, 2102212464
        %v1373 = vsel %vm1369, %v1357, %v1372
        %v1374 = vsel %vm1368, %v1371, %v1373
        %v1375 = vsel %vm1367, %v1354, %v1357
        %v1376 = vsel %vm1370, %v1363, 920167782
        %v1377 = vsel %vm1369, %v1360, %v1376
        %v1378 = vsel %vm1368, %v1375, %v1377
        %v1379 = vsel %vm1367, %v1357, %v1360
        %v1380 = vsel %vm1370, %v1366, 1326507024
        %v1381 = vsel %vm1369, %v1363, %v1380
        %v1382 = vsel %vm1368, %v1379, %v1381
        %v1383 = vshll.u32 %v1343, 8
        %v1384 = vmul.u32.u64.compose %v1383, %v1382
        %v1385 = vextract.low.u32 %v1384
        %v1386 = vextract.high.u32 %v1384
        %v1387 = vmul.u32.u64.compose %v1383, %v1378
        %v1388 = vextract.low.u32 %v1387
        %v1389 = vextract.high.u32 %v1387
        %v1390 = vmul.u32 %v1383, %v1374
        %v1391 = vadd.s32 %v1386, %v1388
        %vm1392 = vc.u32 %v1386, %v1388
        %v1393 = vadd.s32 %v1389, 1
        %v1394 = vsel %vm1392, %v1393, %v1389
        %v1395 = vadd.s32 %v1390, %v1394
        %v1396 = vadd.s32 %v1395, 536870912
        %v1397 = vshrl.u32 %v1396, 30
        %v1398 = vshll.u32 %v1397, 30
        %v1399 = vsub.s32 %v1395, %v1398
        %vm1400 = vcmp.lt.s32.totalorder %v1399, 0
        %v1401 = vsub.s32 0, %v1399
        %v1402 = vsel %vm1400, %v1401, %v1399
        %v1403 = vclz %v1402
        %v1404 = vsub.s32 %v1403, 2
        %vm1405 = vcmp.gt.s32.totalorder 0, %v1404
        %v1406 = vsel %vm1405, 0, %v1404
        %v1407 = vsub.s32 32, %v1406
        %v1408 = vshll.u32 %v1399, %v1406
        %v1409 = vshrl.u32 %v1391, %v1407
        %v1410 = vor.u32 %v1408, %v1409
        %v1411 = vsub.s32 4294967266, %v1406
        %v1412 = vadd.s32 %v1411, 127
        %v1413 = vshll.u32 %v1412, 23
        %v1414 = vor.u32 4788187, %v1413
        %v1415 = vand.u32 2147483647, %v1414
        %v1417 = vcvt.s32.f32 %v1410
        %v1418 = vmul.f32 %v1417, %v1415
        %v1419 = vxor.u32 %v1418, 2147483648
        %v1420 = vsel %vm1337, %v1419, %v1418
        %v1421 = vsub.s32 4, %v1397
        %v1422 = vsel %vm1337, %v1421, %v1397
        %v1423 = vsel %vm1336, %v1330, %v1420
        %v1424 = vsel %vm1336, 0, %v1422
        %v1425 = vcosq.f32.pop %v1423
        %v1426 = vsinq.f32.pop %v1423
        %vm1427 = vweird.f32 %v1330
        %v1428 = vand.u32 %v1424, 3
        %vm1429 = vcmp.lt.s32.totalorder %v1428, 2
        %vm1430 = vcmp.eq.s32.totalorder %v1428, 0
        %v1431 = vxor.u32 %v1426, 2147483648
        %v1432 = vsel %vm1430, %v1425, %v1431
        %vm1433 = vcmp.eq.s32.totalorder %v1428, 2
        %v1434 = vxor.u32 %v1425, 2147483648
        %v1435 = vsel %vm1433, %v1434, %v1426
        %v1436 = vsel %vm1429, %v1432, %v1435
        %v1437 = vsel %vm1427, nan, %v1436
        %v1438 = vand.u32 2147483647, %v1331
        %vm1439 = vcmp.le.f32.partialorder %v1438, 0.7853982
        %vm1440 = vcmp.lt.s32.totalorder %v1331, 0
        %v1441 = vand.u32 %v1331, 2139095040
        %v1442 = vshrl.u32 %v1441, 23
        %v1443 = vsub.s32 %v1442, 127
        %v1444 = vand.u32 2147483647, %v1331
        %v1445 = vand.u32 %v1444, 8388607
        %v1446 = vor.u32 %v1445, 8388608
        %v1447 = vsub.s32 0, %v1446
        %v1448 = vadd.s32 %v1443, 1
        %vm1449 = vcmp.gt.s32.totalorder %v1448, 0
        %v1450 = vsel %vm1449, %v1448, 0
        %v1451 = vshrl.u32 %v1450, 5
        %v1452 = vand.u32 %v1450, 31
        %v1453 = vsub.s32 32, %v1452
        %v1454 = vshrl.u32 683565275, %v1453
        %v1455 = vshll.u32 683565275, %v1452
        %v1456 = vshrl.u32 2475754826, %v1453
        %v1457 = vor.u32 %v1455, %v1456
        %v1458 = vshll.u32 2475754826, %v1452
        %v1459 = vshrl.u32 2131351028, %v1453
        %v1460 = vor.u32 %v1458, %v1459
        %v1461 = vshll.u32 2131351028, %v1452
        %v1462 = vshrl.u32 2102212464, %v1453
        %v1463 = vor.u32 %v1461, %v1462
        %v1464 = vshll.u32 2102212464, %v1452
        %v1465 = vshrl.u32 920167782, %v1453
        %v1466 = vor.u32 %v1464, %v1465
        %v1467 = vshll.u32 920167782, %v1452
        %v1468 = vshrl.u32 1326507024, %v1453
        %v1469 = vor.u32 %v1467, %v1468
        %vm1470 = vcmp.lt.s32.totalorder %v1451, 1
        %vm1471 = vcmp.lt.s32.totalorder %v1451, 2
        %vm1472 = vcmp.lt.s32.totalorder %v1451, 3
        %vm1473 = vcmp.lt.s32.totalorder %v1451, 4
        %v1474 = vsel %vm1470, %v1454, %v1457
        %v1475 = vsel %vm1473, %v1463, 2102212464
        %v1476 = vsel %vm1472, %v1460, %v1475
        %v1477 = vsel %vm1471, %v1474, %v1476
        %v1478 = vsel %vm1470, %v1457, %v1460
        %v1479 = vsel %vm1473, %v1466, 920167782
        %v1480 = vsel %vm1472, %v1463, %v1479
        %v1481 = vsel %vm1471, %v1478, %v1480
        %v1482 = vsel %vm1470, %v1460, %v1463
        %v1483 = vsel %vm1473, %v1469, 1326507024
        %v1484 = vsel %vm1472, %v1466, %v1483
        %v1485 = vsel %vm1471, %v1482, %v1484
        %v1486 = vshll.u32 %v1446, 8
        %v1487 = vmul.u32.u64.compose %v1486, %v1485
        %v1488 = vextract.low.u32 %v1487
        %v1489 = vextract.high.u32 %v1487
        %v1490 = vmul.u32.u64.compose %v1486, %v1481
        %v1491 = vextract.low.u32 %v1490
        %v1492 = vextract.high.u32 %v1490
        %v1493 = vmul.u32 %v1486, %v1477
        %v1494 = vadd.s32 %v1489, %v1491
        %vm1495 = vc.u32 %v1489, %v1491
        %v1496 = vadd.s32 %v1492, 1
        %v1497 = vsel %vm1495, %v1496, %v1492
        %v1498 = vadd.s32 %v1493, %v1497
        %v1499 = vadd.s32 %v1498, 536870912
        %v1500 = vshrl.u32 %v1499, 30
        %v1501 = vshll.u32 %v1500, 30
        %v1502 = vsub.s32 %v1498, %v1501
        %vm1503 = vcmp.lt.s32.totalorder %v1502, 0
        %v1504 = vsub.s32 0, %v1502
        %v1505 = vsel %vm1503, %v1504, %v1502
        %v1506 = vclz %v1505
        %v1507 = vsub.s32 %v1506, 2
        %vm1508 = vcmp.gt.s32.totalorder 0, %v1507
        %v1509 = vsel %vm1508, 0, %v1507
        %v1510 = vsub.s32 32, %v1509
        %v1511 = vshll.u32 %v1502, %v1509
        %v1512 = vshrl.u32 %v1494, %v1510
        %v1513 = vor.u32 %v1511, %v1512
        %v1514 = vsub.s32 4294967266, %v1509
        %v1515 = vadd.s32 %v1514, 127
        %v1516 = vshll.u32 %v1515, 23
        %v1517 = vor.u32 4788187, %v1516
        %v1518 = vand.u32 2147483647, %v1517
        %v1520 = vcvt.s32.f32 %v1513
        %v1521 = vmul.f32 %v1520, %v1518
        %v1522 = vxor.u32 %v1521, 2147483648
        %v1523 = vsel %vm1440, %v1522, %v1521
        %v1524 = vsub.s32 4, %v1500
        %v1525 = vsel %vm1440, %v1524, %v1500
        %v1526 = vsel %vm1439, %v1331, %v1523
        %v1527 = vsel %vm1439, 0, %v1525
        %v1528 = vcosq.f32.pop %v1526
        %v1529 = vsinq.f32.pop %v1526
        %vm1530 = vweird.f32 %v1331
        %v1531 = vand.u32 %v1527, 3
        %vm1532 = vcmp.lt.s32.totalorder %v1531, 2
        %vm1533 = vcmp.eq.s32.totalorder %v1531, 0
        %v1534 = vxor.u32 %v1529, 2147483648
        %v1535 = vsel %vm1533, %v1528, %v1534
        %vm1536 = vcmp.eq.s32.totalorder %v1531, 2
        %v1537 = vxor.u32 %v1528, 2147483648
        %v1538 = vsel %vm1536, %v1537, %v1529
        %v1539 = vsel %vm1532, %v1535, %v1538
        %v1540 = vsel %vm1530, nan, %v1539
        %v1541 = vmul.f32 %v1437, %v1333
        %v1542 = vmul.f32 %v1540, %v1334
        %v1543 = vand.u32 2147483647, %v1330
        %vm1544 = vcmp.le.f32.partialorder %v1543, 0.7853982
        %vm1545 = vcmp.lt.s32.totalorder %v1330, 0
        %v1546 = vand.u32 %v1330, 2139095040
        %v1547 = vshrl.u32 %v1546, 23
        %v1548 = vsub.s32 %v1547, 127
        %v1549 = vand.u32 2147483647, %v1330
        %v1550 = vand.u32 %v1549, 8388607
        %v1551 = vor.u32 %v1550, 8388608
        %v1552 = vsub.s32 0, %v1551
        %v1553 = vadd.s32 %v1548, 1
        %vm1554 = vcmp.gt.s32.totalorder %v1553, 0
        %v1555 = vsel %vm1554, %v1553, 0
        %v1556 = vshrl.u32 %v1555, 5
        %v1557 = vand.u32 %v1555, 31
        %v1558 = vsub.s32 32, %v1557
        %v1559 = vshrl.u32 683565275, %v1558
        %v1560 = vshll.u32 683565275, %v1557
        %v1561 = vshrl.u32 2475754826, %v1558
        %v1562 = vor.u32 %v1560, %v1561
        %v1563 = vshll.u32 2475754826, %v1557
        %v1564 = vshrl.u32 2131351028, %v1558
        %v1565 = vor.u32 %v1563, %v1564
        %v1566 = vshll.u32 2131351028, %v1557
        %v1567 = vshrl.u32 2102212464, %v1558
        %v1568 = vor.u32 %v1566, %v1567
        %v1569 = vshll.u32 2102212464, %v1557
        %v1570 = vshrl.u32 920167782, %v1558
        %v1571 = vor.u32 %v1569, %v1570
        %v1572 = vshll.u32 920167782, %v1557
        %v1573 = vshrl.u32 1326507024, %v1558
        %v1574 = vor.u32 %v1572, %v1573
        %vm1575 = vcmp.lt.s32.totalorder %v1556, 1
        %vm1576 = vcmp.lt.s32.totalorder %v1556, 2
        %vm1577 = vcmp.lt.s32.totalorder %v1556, 3
        %vm1578 = vcmp.lt.s32.totalorder %v1556, 4
        %v1579 = vsel %vm1575, %v1559, %v1562
        %v1580 = vsel %vm1578, %v1568, 2102212464
        %v1581 = vsel %vm1577, %v1565, %v1580
        %v1582 = vsel %vm1576, %v1579, %v1581
        %v1583 = vsel %vm1575, %v1562, %v1565
        %v1584 = vsel %vm1578, %v1571, 920167782
        %v1585 = vsel %vm1577, %v1568, %v1584
        %v1586 = vsel %vm1576, %v1583, %v1585
        %v1587 = vsel %vm1575, %v1565, %v1568
        %v1588 = vsel %vm1578, %v1574, 1326507024
        %v1589 = vsel %vm1577, %v1571, %v1588
        %v1590 = vsel %vm1576, %v1587, %v1589
        %v1591 = vshll.u32 %v1551, 8
        %v1592 = vmul.u32.u64.compose %v1591, %v1590
        %v1593 = vextract.low.u32 %v1592
        %v1594 = vextract.high.u32 %v1592
        %v1595 = vmul.u32.u64.compose %v1591, %v1586
        %v1596 = vextract.low.u32 %v1595
        %v1597 = vextract.high.u32 %v1595
        %v1598 = vmul.u32 %v1591, %v1582
        %v1599 = vadd.s32 %v1594, %v1596
        %vm1600 = vc.u32 %v1594, %v1596
        %v1601 = vadd.s32 %v1597, 1
        %v1602 = vsel %vm1600, %v1601, %v1597
        %v1603 = vadd.s32 %v1598, %v1602
        %v1604 = vadd.s32 %v1603, 536870912
        %v1605 = vshrl.u32 %v1604, 30
        %v1606 = vshll.u32 %v1605, 30
        %v1607 = vsub.s32 %v1603, %v1606
        %vm1608 = vcmp.lt.s32.totalorder %v1607, 0
        %v1609 = vsub.s32 0, %v1607
        %v1610 = vsel %vm1608, %v1609, %v1607
        %v1611 = vclz %v1610
        %v1612 = vsub.s32 %v1611, 2
        %vm1613 = vcmp.gt.s32.totalorder 0, %v1612
        %v1614 = vsel %vm1613, 0, %v1612
        %v1615 = vsub.s32 32, %v1614
        %v1616 = vshll.u32 %v1607, %v1614
        %v1617 = vshrl.u32 %v1599, %v1615
        %v1618 = vor.u32 %v1616, %v1617
        %v1619 = vsub.s32 4294967266, %v1614
        %v1620 = vadd.s32 %v1619, 127
        %v1621 = vshll.u32 %v1620, 23
        %v1622 = vor.u32 4788187, %v1621
        %v1623 = vand.u32 2147483647, %v1622
        %v1625 = vcvt.s32.f32 %v1618
        %v1626 = vmul.f32 %v1625, %v1623
        %v1627 = vxor.u32 %v1626, 2147483648
        %v1628 = vsel %vm1545, %v1627, %v1626
        %v1629 = vsub.s32 4, %v1605
        %v1630 = vsel %vm1545, %v1629, %v1605
        %v1631 = vsel %vm1544, %v1330, %v1628
        %v1632 = vsel %vm1544, 0, %v1630
        %v1633 = vcosq.f32.pop %v1631
        %v1634 = vsinq.f32.pop %v1631
        %vm1635 = vweird.f32 %v1330
        %v1636 = vadd.s32 %v1632, 3
        %v1637 = vand.u32 %v1636, 3
        %vm1638 = vcmp.lt.s32.totalorder %v1637, 2
        %vm1639 = vcmp.eq.s32.totalorder %v1637, 0
        %v1640 = vxor.u32 %v1634, 2147483648
        %v1641 = vsel %vm1639, %v1633, %v1640
        %vm1642 = vcmp.eq.s32.totalorder %v1637, 2
        %v1643 = vxor.u32 %v1633, 2147483648
        %v1644 = vsel %vm1642, %v1643, %v1634
        %v1645 = vsel %vm1638, %v1641, %v1644
        %v1646 = vsel %vm1635, nan, %v1645
        %v1647 = vand.u32 2147483647, %v1331
        %vm1648 = vcmp.le.f32.partialorder %v1647, 0.7853982
        %vm1649 = vcmp.lt.s32.totalorder %v1331, 0
        %v1650 = vand.u32 %v1331, 2139095040
        %v1651 = vshrl.u32 %v1650, 23
        %v1652 = vsub.s32 %v1651, 127
        %v1653 = vand.u32 2147483647, %v1331
        %v1654 = vand.u32 %v1653, 8388607
        %v1655 = vor.u32 %v1654, 8388608
        %v1656 = vsub.s32 0, %v1655
        %v1657 = vadd.s32 %v1652, 1
        %vm1658 = vcmp.gt.s32.totalorder %v1657, 0
        %v1659 = vsel %vm1658, %v1657, 0
        %v1660 = vshrl.u32 %v1659, 5
        %v1661 = vand.u32 %v1659, 31
        %v1662 = vsub.s32 32, %v1661
        %v1663 = vshrl.u32 683565275, %v1662
        %v1664 = vshll.u32 683565275, %v1661
        %v1665 = vshrl.u32 2475754826, %v1662
        %v1666 = vor.u32 %v1664, %v1665
        %v1667 = vshll.u32 2475754826, %v1661
        %v1668 = vshrl.u32 2131351028, %v1662
        %v1669 = vor.u32 %v1667, %v1668
        %v1670 = vshll.u32 2131351028, %v1661
        %v1671 = vshrl.u32 2102212464, %v1662
        %v1672 = vor.u32 %v1670, %v1671
        %v1673 = vshll.u32 2102212464, %v1661
        %v1674 = vshrl.u32 920167782, %v1662
        %v1675 = vor.u32 %v1673, %v1674
        %v1676 = vshll.u32 920167782, %v1661
        %v1677 = vshrl.u32 1326507024, %v1662
        %v1678 = vor.u32 %v1676, %v1677
        %vm1679 = vcmp.lt.s32.totalorder %v1660, 1
        %vm1680 = vcmp.lt.s32.totalorder %v1660, 2
        %vm1681 = vcmp.lt.s32.totalorder %v1660, 3
        %vm1682 = vcmp.lt.s32.totalorder %v1660, 4
        %v1683 = vsel %vm1679, %v1663, %v1666
        %v1684 = vsel %vm1682, %v1672, 2102212464
        %v1685 = vsel %vm1681, %v1669, %v1684
        %v1686 = vsel %vm1680, %v1683, %v1685
        %v1687 = vsel %vm1679, %v1666, %v1669
        %v1688 = vsel %vm1682, %v1675, 920167782
        %v1689 = vsel %vm1681, %v1672, %v1688
        %v1690 = vsel %vm1680, %v1687, %v1689
        %v1691 = vsel %vm1679, %v1669, %v1672
        %v1692 = vsel %vm1682, %v1678, 1326507024
        %v1693 = vsel %vm1681, %v1675, %v1692
        %v1694 = vsel %vm1680, %v1691, %v1693
        %v1695 = vshll.u32 %v1655, 8
        %v1696 = vmul.u32.u64.compose %v1695, %v1694
        %v1697 = vextract.low.u32 %v1696
        %v1698 = vextract.high.u32 %v1696
        %v1699 = vmul.u32.u64.compose %v1695, %v1690
        %v1700 = vextract.low.u32 %v1699
        %v1701 = vextract.high.u32 %v1699
        %v1702 = vmul.u32 %v1695, %v1686
        %v1703 = vadd.s32 %v1698, %v1700
        %vm1704 = vc.u32 %v1698, %v1700
        %v1705 = vadd.s32 %v1701, 1
        %v1706 = vsel %vm1704, %v1705, %v1701
        %v1707 = vadd.s32 %v1702, %v1706
        %v1708 = vadd.s32 %v1707, 536870912
        %v1709 = vshrl.u32 %v1708, 30
        %v1710 = vshll.u32 %v1709, 30
        %v1711 = vsub.s32 %v1707, %v1710
        %vm1712 = vcmp.lt.s32.totalorder %v1711, 0
        %v1713 = vsub.s32 0, %v1711
        %v1714 = vsel %vm1712, %v1713, %v1711
        %v1715 = vclz %v1714
        %v1716 = vsub.s32 %v1715, 2
        %vm1717 = vcmp.gt.s32.totalorder 0, %v1716
        %v1718 = vsel %vm1717, 0, %v1716
        %v1719 = vsub.s32 32, %v1718
        %v1720 = vshll.u32 %v1711, %v1718
        %v1721 = vshrl.u32 %v1703, %v1719
        %v1722 = vor.u32 %v1720, %v1721
        %v1723 = vsub.s32 4294967266, %v1718
        %v1724 = vadd.s32 %v1723, 127
        %v1725 = vshll.u32 %v1724, 23
        %v1726 = vor.u32 4788187, %v1725
        %v1727 = vand.u32 2147483647, %v1726
        %v1729 = vcvt.s32.f32 %v1722
        %v1730 = vmul.f32 %v1729, %v1727
        %v1731 = vxor.u32 %v1730, 2147483648
        %v1732 = vsel %vm1649, %v1731, %v1730
        %v1733 = vsub.s32 4, %v1709
        %v1734 = vsel %vm1649, %v1733, %v1709
        %v1735 = vsel %vm1648, %v1331, %v1732
        %v1736 = vsel %vm1648, 0, %v1734
        %v1737 = vcosq.f32.pop %v1735
        %v1738 = vsinq.f32.pop %v1735
        %vm1739 = vweird.f32 %v1331
        %v1740 = vadd.s32 %v1736, 3
        %v1741 = vand.u32 %v1740, 3
        %vm1742 = vcmp.lt.s32.totalorder %v1741, 2
        %vm1743 = vcmp.eq.s32.totalorder %v1741, 0
        %v1744 = vxor.u32 %v1738, 2147483648
        %v1745 = vsel %vm1743, %v1737, %v1744
        %vm1746 = vcmp.eq.s32.totalorder %v1741, 2
        %v1747 = vxor.u32 %v1737, 2147483648
        %v1748 = vsel %vm1746, %v1747, %v1738
        %v1749 = vsel %vm1742, %v1745, %v1748
        %v1750 = vsel %vm1739, nan, %v1749
        %v1751 = vmul.f32 %v1646, %v1333
        %v1752 = vmul.f32 %v1750, %v1334
        %v1753 = vadd.f32 %v1541, %v1751
        %v1754 = vadd.f32 %v1542, %v1752
        %1755 = vmatprep.subr.mxu0 0.0
        %1756 = vmatpush1.msra.mxu0 %v1541
        %1757 = vmatprep.subr.mxu0 0.0
        %1758 = vmatpush1.msra.mxu0 %v1542
        %1759 = vmatprep.subr.mxu0 0.0
        %1760 = vmatpush1.msra.mxu0 0.0
        %1761 = vmatprep.subr.mxu0 0.0
        %1762 = vmatpush1.msra.mxu0 0.0
        %1763 = vmatprep.subr.mxu0 0.0
        %1764 = vmatpush1.msra.mxu0 0.0
        %1765 = vmatprep.subr.mxu0 0.0
        %1766 = vmatpush1.msra.mxu0 0.0
        %1767 = vmatprep.subr.mxu0 0.0
        %1768 = vmatpush1.msra.mxu0 0.0
        %1769 = vmatprep.subr.mxu0 0.0
        %1770 = vmatpush1.msra.mxu0 0.0
        %1771 = vmatprep.subr.mxu0 0.0
        %1772 = vmatpush1.msra.mxu0 0.0
        %1773 = vmatprep.subr.mxu0 0.0
        %1774 = vmatpush1.msra.mxu0 0.0
        %1775 = vmatprep.subr.mxu0 0.0
        %1776 = vmatpush1.msra.mxu0 0.0
        %1777 = vmatprep.subr.mxu0 0.0
        %1778 = vmatpush1.msra.mxu0 0.0
        %1779 = vmatprep.subr.mxu0 0.0
        %1780 = vmatpush1.msra.mxu0 0.0
        %1781 = vmatprep.subr.mxu0 0.0
        %1782 = vmatpush1.msra.mxu0 0.0
        %1783 = vmatprep.subr.mxu0 0.0
        %1784 = vmatpush1.msra.mxu0 0.0
        %1785 = vmatprep.subr.mxu0 0.0
        %1786 = vmatpush1.msra.mxu0 0.0
        %1787 = vmatprep.subr.mxu0 0.0
        %1788 = vmatpush1.msra.mxu0 0.0
        %1789 = vmatprep.subr.mxu0 0.0
        %1790 = vmatpush1.msra.mxu0 0.0
        %1791 = vmatprep.subr.mxu0 0.0
        %1792 = vmatpush1.msra.mxu0 0.0
        %1793 = vmatprep.subr.mxu0 0.0
        %1794 = vmatpush1.msra.mxu0 0.0
        %1795 = vmatprep.subr.mxu0 0.0
        %1796 = vmatpush1.msra.mxu0 0.0
        %1797 = vmatprep.subr.mxu0 0.0
        %1798 = vmatpush1.msra.mxu0 0.0
        %1799 = vmatprep.subr.mxu0 0.0
        %1800 = vmatpush1.msra.mxu0 0.0
        %1801 = vmatprep.subr.mxu0 0.0
        %1802 = vmatpush1.msra.mxu0 0.0
        %1803 = vmatprep.subr.mxu0 0.0
        %1804 = vmatpush1.msra.mxu0 0.0
        %1805 = vmatprep.subr.mxu0 0.0
        %1806 = vmatpush1.msra.mxu0 0.0
        %1807 = vmatprep.subr.mxu0 0.0
        %1808 = vmatpush1.msra.mxu0 0.0
        %1809 = vmatprep.subr.mxu0 0.0
        %1810 = vmatpush1.msra.mxu0 0.0
        %1811 = vmatprep.subr.mxu0 0.0
        %1812 = vmatpush1.msra.mxu0 0.0
        %1813 = vmatprep.subr.mxu0 0.0
        %1814 = vmatpush1.msra.mxu0 0.0
        %1815 = vmatprep.subr.mxu0 0.0
        %1816 = vmatpush1.msra.mxu0 0.0
        %1817 = vmatprep.subr.mxu0 0.0
        %1818 = vmatpush1.msra.mxu0 0.0
        %1819 = vmatprep.mubr.f32.mxu0 0.0
        %1820 = vmatmul.mubr.f32.gmra.mrb[0].mxu0 %v878
        %v1821 = vpop.f32.mrb[0].mxu0
        %v1822 = vadd.f32 0.0, %v1821
        %v1823 = vpop.f32.mrb[0].mxu0
        %1824 = vdwg.mxu0
        %1825 = vmatprep.subr.mxu0 0.0
        %1826 = vmatpush1.msra.mxu0 %v1751
        %1827 = vmatprep.subr.mxu0 0.0
        %1828 = vmatpush1.msra.mxu0 %v1752
        %1829 = vmatprep.subr.mxu0 0.0
        %1830 = vmatpush1.msra.mxu0 0.0
        %1831 = vmatprep.subr.mxu0 0.0
        %1832 = vmatpush1.msra.mxu0 0.0
        %1833 = vmatprep.subr.mxu0 0.0
        %1834 = vmatpush1.msra.mxu0 0.0
        %1835 = vmatprep.subr.mxu0 0.0
        %1836 = vmatpush1.msra.mxu0 0.0
        %1837 = vmatprep.subr.mxu0 0.0
        %1838 = vmatpush1.msra.mxu0 0.0
        %1839 = vmatprep.subr.mxu0 0.0
        %1840 = vmatpush1.msra.mxu0 0.0
        %1841 = vmatprep.subr.mxu0 0.0
        %1842 = vmatpush1.msra.mxu0 0.0
        %1843 = vmatprep.subr.mxu0 0.0
        %1844 = vmatpush1.msra.mxu0 0.0
        %1845 = vmatprep.subr.mxu0 0.0
        %1846 = vmatpush1.msra.mxu0 0.0
        %1847 = vmatprep.subr.mxu0 0.0
        %1848 = vmatpush1.msra.mxu0 0.0
        %1849 = vmatprep.subr.mxu0 0.0
        %1850 = vmatpush1.msra.mxu0 0.0
        %1851 = vmatprep.subr.mxu0 0.0
        %1852 = vmatpush1.msra.mxu0 0.0
        %1853 = vmatprep.subr.mxu0 0.0
        %1854 = vmatpush1.msra.mxu0 0.0
        %1855 = vmatprep.subr.mxu0 0.0
        %1856 = vmatpush1.msra.mxu0 0.0
        %1857 = vmatprep.subr.mxu0 0.0
        %1858 = vmatpush1.msra.mxu0 0.0
        %1859 = vmatprep.subr.mxu0 0.0
        %1860 = vmatpush1.msra.mxu0 0.0
        %1861 = vmatprep.subr.mxu0 0.0
        %1862 = vmatpush1.msra.mxu0 0.0
        %1863 = vmatprep.subr.mxu0 0.0
        %1864 = vmatpush1.msra.mxu0 0.0
        %1865 = vmatprep.subr.mxu0 0.0
        %1866 = vmatpush1.msra.mxu0 0.0
        %1867 = vmatprep.subr.mxu0 0.0
        %1868 = vmatpush1.msra.mxu0 0.0
        %1869 = vmatprep.subr.mxu0 0.0
        %1870 = vmatpush1.msra.mxu0 0.0
        %1871 = vmatprep.subr.mxu0 0.0
        %1872 = vmatpush1.msra.mxu0 0.0
        %1873 = vmatprep.subr.mxu0 0.0
        %1874 = vmatpush1.msra.mxu0 0.0
        %1875 = vmatprep.subr.mxu0 0.0
        %1876 = vmatpush1.msra.mxu0 0.0
        %1877 = vmatprep.subr.mxu0 0.0
        %1878 = vmatpush1.msra.mxu0 0.0
        %1879 = vmatprep.subr.mxu0 0.0
        %1880 = vmatpush1.msra.mxu0 0.0
        %1881 = vmatprep.subr.mxu0 0.0
        %1882 = vmatpush1.msra.mxu0 0.0
        %1883 = vmatprep.subr.mxu0 0.0
        %1884 = vmatpush1.msra.mxu0 0.0
        %1885 = vmatprep.subr.mxu0 0.0
        %1886 = vmatpush1.msra.mxu0 0.0
        %1887 = vmatprep.subr.mxu0 0.0
        %1888 = vmatpush1.msra.mxu0 0.0
        %1889 = vmatprep.mubr.f32.mxu0 0.0
        %1890 = vmatmul.mubr.f32.gmra.mrb[0].mxu0 %v951
        %v1891 = vpop.f32.mrb[0].mxu0
        %v1892 = vadd.f32 0.0, %v1891
        %v1893 = vpop.f32.mrb[0].mxu0
        %1894 = vdwg.mxu0
        %1895 = vmatprep.subr.mxu0 0.0
        %1896 = vmatpush1.msra.mxu0 %v1753
        %1897 = vmatprep.subr.mxu0 0.0
        %1898 = vmatpush1.msra.mxu0 %v1754
        %1899 = vmatprep.subr.mxu0 0.0
        %1900 = vmatpush1.msra.mxu0 0.0
        %1901 = vmatprep.subr.mxu0 0.0
        %1902 = vmatpush1.msra.mxu0 0.0
        %1903 = vmatprep.subr.mxu0 0.0
        %1904 = vmatpush1.msra.mxu0 0.0
        %1905 = vmatprep.subr.mxu0 0.0
        %1906 = vmatpush1.msra.mxu0 0.0
        %1907 = vmatprep.subr.mxu0 0.0
        %1908 = vmatpush1.msra.mxu0 0.0
        %1909 = vmatprep.subr.mxu0 0.0
        %1910 = vmatpush1.msra.mxu0 0.0
        %1911 = vmatprep.subr.mxu0 0.0
        %1912 = vmatpush1.msra.mxu0 0.0
        %1913 = vmatprep.subr.mxu0 0.0
        %1914 = vmatpush1.msra.mxu0 0.0
        %1915 = vmatprep.subr.mxu0 0.0
        %1916 = vmatpush1.msra.mxu0 0.0
        %1917 = vmatprep.subr.mxu0 0.0
        %1918 = vmatpush1.msra.mxu0 0.0
        %1919 = vmatprep.subr.mxu0 0.0
        %1920 = vmatpush1.msra.mxu0 0.0
        %1921 = vmatprep.subr.mxu0 0.0
        %1922 = vmatpush1.msra.mxu0 0.0
        %1923 = vmatprep.subr.mxu0 0.0
        %1924 = vmatpush1.msra.mxu0 0.0
        %1925 = vmatprep.subr.mxu0 0.0
        %1926 = vmatpush1.msra.mxu0 0.0
        %1927 = vmatprep.subr.mxu0 0.0
        %1928 = vmatpush1.msra.mxu0 0.0
        %1929 = vmatprep.subr.mxu0 0.0
        %1930 = vmatpush1.msra.mxu0 0.0
        %1931 = vmatprep.subr.mxu0 0.0
        %1932 = vmatpush1.msra.mxu0 0.0
        %1933 = vmatprep.subr.mxu0 0.0
        %1934 = vmatpush1.msra.mxu0 0.0
        %1935 = vmatprep.subr.mxu0 0.0
        %1936 = vmatpush1.msra.mxu0 0.0
        %1937 = vmatprep.subr.mxu0 0.0
        %1938 = vmatpush1.msra.mxu0 0.0
        %1939 = vmatprep.subr.mxu0 0.0
        %1940 = vmatpush1.msra.mxu0 0.0
        %1941 = vmatprep.subr.mxu0 0.0
        %1942 = vmatpush1.msra.mxu0 0.0
        %1943 = vmatprep.subr.mxu0 0.0
        %1944 = vmatpush1.msra.mxu0 0.0
        %1945 = vmatprep.subr.mxu0 0.0
        %1946 = vmatpush1.msra.mxu0 0.0
        %1947 = vmatprep.subr.mxu0 0.0
        %1948 = vmatpush1.msra.mxu0 0.0
        %1949 = vmatprep.subr.mxu0 0.0
        %1950 = vmatpush1.msra.mxu0 0.0
        %1951 = vmatprep.subr.mxu0 0.0
        %1952 = vmatpush1.msra.mxu0 0.0
        %1953 = vmatprep.subr.mxu0 0.0
        %1954 = vmatpush1.msra.mxu0 0.0
        %1955 = vmatprep.subr.mxu0 0.0
        %1956 = vmatpush1.msra.mxu0 0.0
        %1957 = vmatprep.subr.mxu0 0.0
        %1958 = vmatpush1.msra.mxu0 0.0
        %1959 = vmatprep.mubr.f32.mxu0 0.0
        %1960 = vmatmul.mubr.f32.gmra.mrb[0].mxu0 %v1024
        %v1961 = vpop.f32.mrb[0].mxu0
        %v1962 = vadd.f32 0.0, %v1961
        %v1963 = vpop.f32.mrb[0].mxu0
        %1964 = vdwg.mxu0
        %v1965 = vsub.f32 %v1822, %v1892
        %v1966 = vsub.f32 %v1962, %v1822
        %v1967 = vsub.f32 %v1966, %v1892
        %v1968 = vadd.f32 %v1965, %v1967
        %v1970 = vsel %vm876, %v1965, 0
        %1972 = vmatprep.subr.mxu0 0.0
        %1973 = vmatpush1.msra.mxu0 %v446
        %1974 = vmatprep.subr.mxu0 0.0
        %1975 = vmatpush1.msra.mxu0 %v447
        %1976 = vmatprep.subr.mxu0 0.0
        %1977 = vmatpush1.msra.mxu0 0.0
        %1978 = vmatprep.subr.mxu0 0.0
        %1979 = vmatpush1.msra.mxu0 0.0
        %1980 = vmatprep.subr.mxu0 0.0
        %1981 = vmatpush1.msra.mxu0 0.0
        %1982 = vmatprep.subr.mxu0 0.0
        %1983 = vmatpush1.msra.mxu0 0.0
        %1984 = vmatprep.subr.mxu0 0.0
        %1985 = vmatpush1.msra.mxu0 0.0
        %1986 = vmatprep.subr.mxu0 0.0
        %1987 = vmatpush1.msra.mxu0 0.0
        %1988 = vmatprep.subr.mxu0 0.0
        %1989 = vmatpush1.msra.mxu0 0.0
        %1990 = vmatprep.subr.mxu0 0.0
        %1991 = vmatpush1.msra.mxu0 0.0
        %1992 = vmatprep.subr.mxu0 0.0
        %1993 = vmatpush1.msra.mxu0 0.0
        %1994 = vmatprep.subr.mxu0 0.0
        %1995 = vmatpush1.msra.mxu0 0.0
        %1996 = vmatprep.subr.mxu0 0.0
        %1997 = vmatpush1.msra.mxu0 0.0
        %1998 = vmatprep.subr.mxu0 0.0
        %1999 = vmatpush1.msra.mxu0 0.0
        %2000 = vmatprep.subr.mxu0 0.0
        %2001 = vmatpush1.msra.mxu0 0.0
        %2002 = vmatprep.subr.mxu0 0.0
        %2003 = vmatpush1.msra.mxu0 0.0
        %2004 = vmatprep.subr.mxu0 0.0
        %2005 = vmatpush1.msra.mxu0 0.0
        %2006 = vmatprep.subr.mxu0 0.0
        %2007 = vmatpush1.msra.mxu0 0.0
        %2008 = vmatprep.subr.mxu0 0.0
        %2009 = vmatpush1.msra.mxu0 0.0
        %2010 = vmatprep.subr.mxu0 0.0
        %2011 = vmatpush1.msra.mxu0 0.0
        %2012 = vmatprep.subr.mxu0 0.0
        %2013 = vmatpush1.msra.mxu0 0.0
        %2014 = vmatprep.subr.mxu0 0.0
        %2015 = vmatpush1.msra.mxu0 0.0
        %2016 = vmatprep.subr.mxu0 0.0
        %2017 = vmatpush1.msra.mxu0 0.0
        %2018 = vmatprep.subr.mxu0 0.0
        %2019 = vmatpush1.msra.mxu0 0.0
        %2020 = vmatprep.subr.mxu0 0.0
        %2021 = vmatpush1.msra.mxu0 0.0
        %2022 = vmatprep.subr.mxu0 0.0
        %2023 = vmatpush1.msra.mxu0 0.0
        %2024 = vmatprep.subr.mxu0 0.0
        %2025 = vmatpush1.msra.mxu0 0.0
        %2026 = vmatprep.subr.mxu0 0.0
        %2027 = vmatpush1.msra.mxu0 0.0
        %2028 = vmatprep.subr.mxu0 0.0
        %2029 = vmatpush1.msra.mxu0 0.0
        %2030 = vmatprep.subr.mxu0 0.0
        %2031 = vmatpush1.msra.mxu0 0.0
        %2032 = vmatprep.subr.mxu0 0.0
        %2033 = vmatpush1.msra.mxu0 0.0
        %2034 = vmatprep.subr.mxu0 0.0
        %2035 = vmatpush1.msra.mxu0 0.0
        %2036 = vmatprep.mubr.f32.mxu0 0.0
        %2037 = vmatmul.mubr.f32.gmra.mrb[0].mxu0 %v1970
        %v2038 = vpop.f32.mrb[0].mxu0
        %v2039 = vadd.f32 0.0, %v2038
        %v2040 = vpop.f32.mrb[0].mxu0
        %2041 = vdwg.mxu0
        %v2043 = vsel %vm876, %v1967, 0
        %2045 = vmatprep.subr.mxu0 0.0
        %2046 = vmatpush1.msra.mxu0 %v448
        %2047 = vmatprep.subr.mxu0 0.0
        %2048 = vmatpush1.msra.mxu0 %v449
        %2049 = vmatprep.subr.mxu0 0.0
        %2050 = vmatpush1.msra.mxu0 0.0
        %2051 = vmatprep.subr.mxu0 0.0
        %2052 = vmatpush1.msra.mxu0 0.0
        %2053 = vmatprep.subr.mxu0 0.0
        %2054 = vmatpush1.msra.mxu0 0.0
        %2055 = vmatprep.subr.mxu0 0.0
        %2056 = vmatpush1.msra.mxu0 0.0
        %2057 = vmatprep.subr.mxu0 0.0
        %2058 = vmatpush1.msra.mxu0 0.0
        %2059 = vmatprep.subr.mxu0 0.0
        %2060 = vmatpush1.msra.mxu0 0.0
        %2061 = vmatprep.subr.mxu0 0.0
        %2062 = vmatpush1.msra.mxu0 0.0
        %2063 = vmatprep.subr.mxu0 0.0
        %2064 = vmatpush1.msra.mxu0 0.0
        %2065 = vmatprep.subr.mxu0 0.0
        %2066 = vmatpush1.msra.mxu0 0.0
        %2067 = vmatprep.subr.mxu0 0.0
        %2068 = vmatpush1.msra.mxu0 0.0
        %2069 = vmatprep.subr.mxu0 0.0
        %2070 = vmatpush1.msra.mxu0 0.0
        %2071 = vmatprep.subr.mxu0 0.0
        %2072 = vmatpush1.msra.mxu0 0.0
        %2073 = vmatprep.subr.mxu0 0.0
        %2074 = vmatpush1.msra.mxu0 0.0
        %2075 = vmatprep.subr.mxu0 0.0
        %2076 = vmatpush1.msra.mxu0 0.0
        %2077 = vmatprep.subr.mxu0 0.0
        %2078 = vmatpush1.msra.mxu0 0.0
        %2079 = vmatprep.subr.mxu0 0.0
        %2080 = vmatpush1.msra.mxu0 0.0
        %2081 = vmatprep.subr.mxu0 0.0
        %2082 = vmatpush1.msra.mxu0 0.0
        %2083 = vmatprep.subr.mxu0 0.0
        %2084 = vmatpush1.msra.mxu0 0.0
        %2085 = vmatprep.subr.mxu0 0.0
        %2086 = vmatpush1.msra.mxu0 0.0
        %2087 = vmatprep.subr.mxu0 0.0
        %2088 = vmatpush1.msra.mxu0 0.0
        %2089 = vmatprep.subr.mxu0 0.0
        %2090 = vmatpush1.msra.mxu0 0.0
        %2091 = vmatprep.subr.mxu0 0.0
        %2092 = vmatpush1.msra.mxu0 0.0
        %2093 = vmatprep.subr.mxu0 0.0
        %2094 = vmatpush1.msra.mxu0 0.0
        %2095 = vmatprep.subr.mxu0 0.0
        %2096 = vmatpush1.msra.mxu0 0.0
        %2097 = vmatprep.subr.mxu0 0.0
        %2098 = vmatpush1.msra.mxu0 0.0
        %2099 = vmatprep.subr.mxu0 0.0
        %2100 = vmatpush1.msra.mxu0 0.0
        %2101 = vmatprep.subr.mxu0 0.0
        %2102 = vmatpush1.msra.mxu0 0.0
        %2103 = vmatprep.subr.mxu0 0.0
        %2104 = vmatpush1.msra.mxu0 0.0
        %2105 = vmatprep.subr.mxu0 0.0
        %2106 = vmatpush1.msra.mxu0 0.0
        %2107 = vmatprep.subr.mxu0 0.0
        %2108 = vmatpush1.msra.mxu0 0.0
        %2109 = vmatprep.mubr.f32.mxu0 0.0
        %2110 = vmatmul.mubr.f32.gmra.mrb[0].mxu0 %v2043
        %v2111 = vpop.f32.mrb[0].mxu0
        %v2112 = vadd.f32 0.0, %v2111
        %v2113 = vpop.f32.mrb[0].mxu0
        %2114 = vdwg.mxu0
        %v2116 = vsel %vm876, %v1968, 0
        %2118 = vmatprep.subr.mxu0 0.0
        %2119 = vmatpush1.msra.mxu0 %v450
        %2120 = vmatprep.subr.mxu0 0.0
        %2121 = vmatpush1.msra.mxu0 %v451
        %2122 = vmatprep.subr.mxu0 0.0
        %2123 = vmatpush1.msra.mxu0 0.0
        %2124 = vmatprep.subr.mxu0 0.0
        %2125 = vmatpush1.msra.mxu0 0.0
        %2126 = vmatprep.subr.mxu0 0.0
        %2127 = vmatpush1.msra.mxu0 0.0
        %2128 = vmatprep.subr.mxu0 0.0
        %2129 = vmatpush1.msra.mxu0 0.0
        %2130 = vmatprep.subr.mxu0 0.0
        %2131 = vmatpush1.msra.mxu0 0.0
        %2132 = vmatprep.subr.mxu0 0.0
        %2133 = vmatpush1.msra.mxu0 0.0
        %2134 = vmatprep.subr.mxu0 0.0
        %2135 = vmatpush1.msra.mxu0 0.0
        %2136 = vmatprep.subr.mxu0 0.0
        %2137 = vmatpush1.msra.mxu0 0.0
        %2138 = vmatprep.subr.mxu0 0.0
        %2139 = vmatpush1.msra.mxu0 0.0
        %2140 = vmatprep.subr.mxu0 0.0
        %2141 = vmatpush1.msra.mxu0 0.0
        %2142 = vmatprep.subr.mxu0 0.0
        %2143 = vmatpush1.msra.mxu0 0.0
        %2144 = vmatprep.subr.mxu0 0.0
        %2145 = vmatpush1.msra.mxu0 0.0
        %2146 = vmatprep.subr.mxu0 0.0
        %2147 = vmatpush1.msra.mxu0 0.0
        %2148 = vmatprep.subr.mxu0 0.0
        %2149 = vmatpush1.msra.mxu0 0.0
        %2150 = vmatprep.subr.mxu0 0.0
        %2151 = vmatpush1.msra.mxu0 0.0
        %2152 = vmatprep.subr.mxu0 0.0
        %2153 = vmatpush1.msra.mxu0 0.0
        %2154 = vmatprep.subr.mxu0 0.0
        %2155 = vmatpush1.msra.mxu0 0.0
        %2156 = vmatprep.subr.mxu0 0.0
        %2157 = vmatpush1.msra.mxu0 0.0
        %2158 = vmatprep.subr.mxu0 0.0
        %2159 = vmatpush1.msra.mxu0 0.0
        %2160 = vmatprep.subr.mxu0 0.0
        %2161 = vmatpush1.msra.mxu0 0.0
        %2162 = vmatprep.subr.mxu0 0.0
        %2163 = vmatpush1.msra.mxu0 0.0
        %2164 = vmatprep.subr.mxu0 0.0
        %2165 = vmatpush1.msra.mxu0 0.0
        %2166 = vmatprep.subr.mxu0 0.0
        %2167 = vmatpush1.msra.mxu0 0.0
        %2168 = vmatprep.subr.mxu0 0.0
        %2169 = vmatpush1.msra.mxu0 0.0
        %2170 = vmatprep.subr.mxu0 0.0
        %2171 = vmatpush1.msra.mxu0 0.0
        %2172 = vmatprep.subr.mxu0 0.0
        %2173 = vmatpush1.msra.mxu0 0.0
        %2174 = vmatprep.subr.mxu0 0.0
        %2175 = vmatpush1.msra.mxu0 0.0
        %2176 = vmatprep.subr.mxu0 0.0
        %2177 = vmatpush1.msra.mxu0 0.0
        %2178 = vmatprep.subr.mxu0 0.0
        %2179 = vmatpush1.msra.mxu0 0.0
        %2180 = vmatprep.subr.mxu0 0.0
        %2181 = vmatpush1.msra.mxu0 0.0
        %2182 = vmatprep.mubr.f32.mxu0 0.0
        %2183 = vmatmul.mubr.f32.gmra.mrb[0].mxu0 %v2116
        %v2184 = vpop.f32.mrb[0].mxu0
        %v2185 = vadd.f32 0.0, %v2184
        %v2186 = vpop.f32.mrb[0].mxu0
        %2187 = vdwg.mxu0
        %v2188 = vsub.f32 %v2039, %v2112
        %v2189 = vsub.f32 %v2185, %v2039
        %v2190 = vsub.f32 %v2189, %v2112
        %v2191 = vmul.f32 %v2188, %v2188
        %v2192 = vmul.f32 %v2190, %v2190
        %v2193 = vadd.f32 %v2191, %v2192
        %s2194 = scalar_lea.vmem %s423, 8 [#allocation7]
        %2195 = vst.msk [vmem:[%s2194] sm:$0xff] %vm1325, %v2193
        %s2196 = scalar_lea.vmem %s430, 8 [#allocation8]
        %2197 = vst.msk [vmem:[%s2196] sm:$0xff] %vm1325, %v2188
        %s2198 = scalar_lea.vmem %s437, 8 [#allocation10]
        %2199 = vst.msk [vmem:[%s2198] sm:$0xff] %vm1325, %v2190
        %s2200 = scalar_lea.vmem %s386, 32 [#allocation5]
        %v2201 = vld [vmem:[%s2200] sm:$0xff]
        %v2202 = vld [vmem:[%s2200 + $0x8] sm:$0xff]
        %s2203 = scalar_lea.vmem %s377, 32 [#allocation2]
        %v2204 = vld [vmem:[%s2203] sm:$0xff]
        %v2205 = vld [vmem:[%s2203 + $0x8] sm:$0xff]
        %v2206 = vand.u32 2147483647, %v2201
        %vm2207 = vcmp.le.f32.partialorder %v2206, 0.7853982
        %vm2208 = vcmp.lt.s32.totalorder %v2201, 0
        %v2209 = vand.u32 %v2201, 2139095040
        %v2210 = vshrl.u32 %v2209, 23
        %v2211 = vsub.s32 %v2210, 127
        %v2212 = vand.u32 2147483647, %v2201
        %v2213 = vand.u32 %v2212, 8388607
        %v2214 = vor.u32 %v2213, 8388608
        %v2215 = vsub.s32 0, %v2214
        %v2216 = vadd.s32 %v2211, 1
        %vm2217 = vcmp.gt.s32.totalorder %v2216, 0
        %v2218 = vsel %vm2217, %v2216, 0
        %v2219 = vshrl.u32 %v2218, 5
        %v2220 = vand.u32 %v2218, 31
        %v2221 = vsub.s32 32, %v2220
        %v2222 = vshrl.u32 683565275, %v2221
        %v2223 = vshll.u32 683565275, %v2220
        %v2224 = vshrl.u32 2475754826, %v2221
        %v2225 = vor.u32 %v2223, %v2224
        %v2226 = vshll.u32 2475754826, %v2220
        %v2227 = vshrl.u32 2131351028, %v2221
        %v2228 = vor.u32 %v2226, %v2227
        %v2229 = vshll.u32 2131351028, %v2220
        %v2230 = vshrl.u32 2102212464, %v2221
        %v2231 = vor.u32 %v2229, %v2230
        %v2232 = vshll.u32 2102212464, %v2220
        %v2233 = vshrl.u32 920167782, %v2221
        %v2234 = vor.u32 %v2232, %v2233
        %v2235 = vshll.u32 920167782, %v2220
        %v2236 = vshrl.u32 1326507024, %v2221
        %v2237 = vor.u32 %v2235, %v2236
        %vm2238 = vcmp.lt.s32.totalorder %v2219, 1
        %vm2239 = vcmp.lt.s32.totalorder %v2219, 2
        %vm2240 = vcmp.lt.s32.totalorder %v2219, 3
        %vm2241 = vcmp.lt.s32.totalorder %v2219, 4
        %v2242 = vsel %vm2238, %v2222, %v2225
        %v2243 = vsel %vm2241, %v2231, 2102212464
        %v2244 = vsel %vm2240, %v2228, %v2243
        %v2245 = vsel %vm2239, %v2242, %v2244
        %v2246 = vsel %vm2238, %v2225, %v2228
        %v2247 = vsel %vm2241, %v2234, 920167782
        %v2248 = vsel %vm2240, %v2231, %v2247
        %v2249 = vsel %vm2239, %v2246, %v2248
        %v2250 = vsel %vm2238, %v2228, %v2231
        %v2251 = vsel %vm2241, %v2237, 1326507024
        %v2252 = vsel %vm2240, %v2234, %v2251
        %v2253 = vsel %vm2239, %v2250, %v2252
        %v2254 = vshll.u32 %v2214, 8
        %v2255 = vmul.u32.u64.compose %v2254, %v2253
        %v2256 = vextract.low.u32 %v2255
        %v2257 = vextract.high.u32 %v2255
        %v2258 = vmul.u32.u64.compose %v2254, %v2249
        %v2259 = vextract.low.u32 %v2258
        %v2260 = vextract.high.u32 %v2258
        %v2261 = vmul.u32 %v2254, %v2245
        %v2262 = vadd.s32 %v2257, %v2259
        %vm2263 = vc.u32 %v2257, %v2259
        %v2264 = vadd.s32 %v2260, 1
        %v2265 = vsel %vm2263, %v2264, %v2260
        %v2266 = vadd.s32 %v2261, %v2265
        %v2267 = vadd.s32 %v2266, 536870912
        %v2268 = vshrl.u32 %v2267, 30
        %v2269 = vshll.u32 %v2268, 30
        %v2270 = vsub.s32 %v2266, %v2269
        %vm2271 = vcmp.lt.s32.totalorder %v2270, 0
        %v2272 = vsub.s32 0, %v2270
        %v2273 = vsel %vm2271, %v2272, %v2270
        %v2274 = vclz %v2273
        %v2275 = vsub.s32 %v2274, 2
        %vm2276 = vcmp.gt.s32.totalorder 0, %v2275
        %v2277 = vsel %vm2276, 0, %v2275
        %v2278 = vsub.s32 32, %v2277
        %v2279 = vshll.u32 %v2270, %v2277
        %v2280 = vshrl.u32 %v2262, %v2278
        %v2281 = vor.u32 %v2279, %v2280
        %v2282 = vsub.s32 4294967266, %v2277
        %v2283 = vadd.s32 %v2282, 127
        %v2284 = vshll.u32 %v2283, 23
        %v2285 = vor.u32 4788187, %v2284
        %v2286 = vand.u32 2147483647, %v2285
        %v2288 = vcvt.s32.f32 %v2281
        %v2289 = vmul.f32 %v2288, %v2286
        %v2290 = vxor.u32 %v2289, 2147483648
        %v2291 = vsel %vm2208, %v2290, %v2289
        %v2292 = vsub.s32 4, %v2268
        %v2293 = vsel %vm2208, %v2292, %v2268
        %v2294 = vsel %vm2207, %v2201, %v2291
        %v2295 = vsel %vm2207, 0, %v2293
        %v2296 = vcosq.f32.pop %v2294
        %v2297 = vsinq.f32.pop %v2294
        %vm2298 = vweird.f32 %v2201
        %v2299 = vand.u32 %v2295, 3
        %vm2300 = vcmp.lt.s32.totalorder %v2299, 2
        %vm2301 = vcmp.eq.s32.totalorder %v2299, 0
        %v2302 = vxor.u32 %v2297, 2147483648
        %v2303 = vsel %vm2301, %v2296, %v2302
        %vm2304 = vcmp.eq.s32.totalorder %v2299, 2
        %v2305 = vxor.u32 %v2296, 2147483648
        %v2306 = vsel %vm2304, %v2305, %v2297
        %v2307 = vsel %vm2300, %v2303, %v2306
        %v2308 = vsel %vm2298, nan, %v2307
        %v2309 = vand.u32 2147483647, %v2202
        %vm2310 = vcmp.le.f32.partialorder %v2309, 0.7853982
        %vm2311 = vcmp.lt.s32.totalorder %v2202, 0
        %v2312 = vand.u32 %v2202, 2139095040
        %v2313 = vshrl.u32 %v2312, 23
        %v2314 = vsub.s32 %v2313, 127
        %v2315 = vand.u32 2147483647, %v2202
        %v2316 = vand.u32 %v2315, 8388607
        %v2317 = vor.u32 %v2316, 8388608
        %v2318 = vsub.s32 0, %v2317
        %v2319 = vadd.s32 %v2314, 1
        %vm2320 = vcmp.gt.s32.totalorder %v2319, 0
        %v2321 = vsel %vm2320, %v2319, 0
        %v2322 = vshrl.u32 %v2321, 5
        %v2323 = vand.u32 %v2321, 31
        %v2324 = vsub.s32 32, %v2323
        %v2325 = vshrl.u32 683565275, %v2324
        %v2326 = vshll.u32 683565275, %v2323
        %v2327 = vshrl.u32 2475754826, %v2324
        %v2328 = vor.u32 %v2326, %v2327
        %v2329 = vshll.u32 2475754826, %v2323
        %v2330 = vshrl.u32 2131351028, %v2324
        %v2331 = vor.u32 %v2329, %v2330
        %v2332 = vshll.u32 2131351028, %v2323
        %v2333 = vshrl.u32 2102212464, %v2324
        %v2334 = vor.u32 %v2332, %v2333
        %v2335 = vshll.u32 2102212464, %v2323
        %v2336 = vshrl.u32 920167782, %v2324
        %v2337 = vor.u32 %v2335, %v2336
        %v2338 = vshll.u32 920167782, %v2323
        %v2339 = vshrl.u32 1326507024, %v2324
        %v2340 = vor.u32 %v2338, %v2339
        %vm2341 = vcmp.lt.s32.totalorder %v2322, 1
        %vm2342 = vcmp.lt.s32.totalorder %v2322, 2
        %vm2343 = vcmp.lt.s32.totalorder %v2322, 3
        %vm2344 = vcmp.lt.s32.totalorder %v2322, 4
        %v2345 = vsel %vm2341, %v2325, %v2328
        %v2346 = vsel %vm2344, %v2334, 2102212464
        %v2347 = vsel %vm2343, %v2331, %v2346
        %v2348 = vsel %vm2342, %v2345, %v2347
        %v2349 = vsel %vm2341, %v2328, %v2331
        %v2350 = vsel %vm2344, %v2337, 920167782
        %v2351 = vsel %vm2343, %v2334, %v2350
        %v2352 = vsel %vm2342, %v2349, %v2351
        %v2353 = vsel %vm2341, %v2331, %v2334
        %v2354 = vsel %vm2344, %v2340, 1326507024
        %v2355 = vsel %vm2343, %v2337, %v2354
        %v2356 = vsel %vm2342, %v2353, %v2355
        %v2357 = vshll.u32 %v2317, 8
        %v2358 = vmul.u32.u64.compose %v2357, %v2356
        %v2359 = vextract.low.u32 %v2358
        %v2360 = vextract.high.u32 %v2358
        %v2361 = vmul.u32.u64.compose %v2357, %v2352
        %v2362 = vextract.low.u32 %v2361
        %v2363 = vextract.high.u32 %v2361
        %v2364 = vmul.u32 %v2357, %v2348
        %v2365 = vadd.s32 %v2360, %v2362
        %vm2366 = vc.u32 %v2360, %v2362
        %v2367 = vadd.s32 %v2363, 1
        %v2368 = vsel %vm2366, %v2367, %v2363
        %v2369 = vadd.s32 %v2364, %v2368
        %v2370 = vadd.s32 %v2369, 536870912
        %v2371 = vshrl.u32 %v2370, 30
        %v2372 = vshll.u32 %v2371, 30
        %v2373 = vsub.s32 %v2369, %v2372
        %vm2374 = vcmp.lt.s32.totalorder %v2373, 0
        %v2375 = vsub.s32 0, %v2373
        %v2376 = vsel %vm2374, %v2375, %v2373
        %v2377 = vclz %v2376
        %v2378 = vsub.s32 %v2377, 2
        %vm2379 = vcmp.gt.s32.totalorder 0, %v2378
        %v2380 = vsel %vm2379, 0, %v2378
        %v2381 = vsub.s32 32, %v2380
        %v2382 = vshll.u32 %v2373, %v2380
        %v2383 = vshrl.u32 %v2365, %v2381
        %v2384 = vor.u32 %v2382, %v2383
        %v2385 = vsub.s32 4294967266, %v2380
        %v2386 = vadd.s32 %v2385, 127
        %v2387 = vshll.u32 %v2386, 23
        %v2388 = vor.u32 4788187, %v2387
        %v2389 = vand.u32 2147483647, %v2388
        %v2391 = vcvt.s32.f32 %v2384
        %v2392 = vmul.f32 %v2391, %v2389
        %v2393 = vxor.u32 %v2392, 2147483648
        %v2394 = vsel %vm2311, %v2393, %v2392
        %v2395 = vsub.s32 4, %v2371
        %v2396 = vsel %vm2311, %v2395, %v2371
        %v2397 = vsel %vm2310, %v2202, %v2394
        %v2398 = vsel %vm2310, 0, %v2396
        %v2399 = vcosq.f32.pop %v2397
        %v2400 = vsinq.f32.pop %v2397
        %vm2401 = vweird.f32 %v2202
        %v2402 = vand.u32 %v2398, 3
        %vm2403 = vcmp.lt.s32.totalorder %v2402, 2
        %vm2404 = vcmp.eq.s32.totalorder %v2402, 0
        %v2405 = vxor.u32 %v2400, 2147483648
        %v2406 = vsel %vm2404, %v2399, %v2405
        %vm2407 = vcmp.eq.s32.totalorder %v2402, 2
        %v2408 = vxor.u32 %v2399, 2147483648
        %v2409 = vsel %vm2407, %v2408, %v2400
        %v2410 = vsel %vm2403, %v2406, %v2409
        %v2411 = vsel %vm2401, nan, %v2410
        %v2412 = vmul.f32 %v2308, %v2204
        %v2413 = vmul.f32 %v2411, %v2205
        %v2414 = vand.u32 2147483647, %v2201
        %vm2415 = vcmp.le.f32.partialorder %v2414, 0.7853982
        %vm2416 = vcmp.lt.s32.totalorder %v2201, 0
        %v2417 = vand.u32 %v2201, 2139095040
        %v2418 = vshrl.u32 %v2417, 23
        %v2419 = vsub.s32 %v2418, 127
        %v2420 = vand.u32 2147483647, %v2201
        %v2421 = vand.u32 %v2420, 8388607
        %v2422 = vor.u32 %v2421, 8388608
        %v2423 = vsub.s32 0, %v2422
        %v2424 = vadd.s32 %v2419, 1
        %vm2425 = vcmp.gt.s32.totalorder %v2424, 0
        %v2426 = vsel %vm2425, %v2424, 0
        %v2427 = vshrl.u32 %v2426, 5
        %v2428 = vand.u32 %v2426, 31
        %v2429 = vsub.s32 32, %v2428
        %v2430 = vshrl.u32 683565275, %v2429
        %v2431 = vshll.u32 683565275, %v2428
        %v2432 = vshrl.u32 2475754826, %v2429
        %v2433 = vor.u32 %v2431, %v2432
        %v2434 = vshll.u32 2475754826, %v2428
        %v2435 = vshrl.u32 2131351028, %v2429
        %v2436 = vor.u32 %v2434, %v2435
        %v2437 = vshll.u32 2131351028, %v2428
        %v2438 = vshrl.u32 2102212464, %v2429
        %v2439 = vor.u32 %v2437, %v2438
        %v2440 = vshll.u32 2102212464, %v2428
        %v2441 = vshrl.u32 920167782, %v2429
        %v2442 = vor.u32 %v2440, %v2441
        %v2443 = vshll.u32 920167782, %v2428
        %v2444 = vshrl.u32 1326507024, %v2429
        %v2445 = vor.u32 %v2443, %v2444
        %vm2446 = vcmp.lt.s32.totalorder %v2427, 1
        %vm2447 = vcmp.lt.s32.totalorder %v2427, 2
        %vm2448 = vcmp.lt.s32.totalorder %v2427, 3
        %vm2449 = vcmp.lt.s32.totalorder %v2427, 4
        %v2450 = vsel %vm2446, %v2430, %v2433
        %v2451 = vsel %vm2449, %v2439, 2102212464
        %v2452 = vsel %vm2448, %v2436, %v2451
        %v2453 = vsel %vm2447, %v2450, %v2452
        %v2454 = vsel %vm2446, %v2433, %v2436
        %v2455 = vsel %vm2449, %v2442, 920167782
        %v2456 = vsel %vm2448, %v2439, %v2455
        %v2457 = vsel %vm2447, %v2454, %v2456
        %v2458 = vsel %vm2446, %v2436, %v2439
        %v2459 = vsel %vm2449, %v2445, 1326507024
        %v2460 = vsel %vm2448, %v2442, %v2459
        %v2461 = vsel %vm2447, %v2458, %v2460
        %v2462 = vshll.u32 %v2422, 8
        %v2463 = vmul.u32.u64.compose %v2462, %v2461
        %v2464 = vextract.low.u32 %v2463
        %v2465 = vextract.high.u32 %v2463
        %v2466 = vmul.u32.u64.compose %v2462, %v2457
        %v2467 = vextract.low.u32 %v2466
        %v2468 = vextract.high.u32 %v2466
        %v2469 = vmul.u32 %v2462, %v2453
        %v2470 = vadd.s32 %v2465, %v2467
        %vm2471 = vc.u32 %v2465, %v2467
        %v2472 = vadd.s32 %v2468, 1
        %v2473 = vsel %vm2471, %v2472, %v2468
        %v2474 = vadd.s32 %v2469, %v2473
        %v2475 = vadd.s32 %v2474, 536870912
        %v2476 = vshrl.u32 %v2475, 30
        %v2477 = vshll.u32 %v2476, 30
        %v2478 = vsub.s32 %v2474, %v2477
        %vm2479 = vcmp.lt.s32.totalorder %v2478, 0
        %v2480 = vsub.s32 0, %v2478
        %v2481 = vsel %vm2479, %v2480, %v2478
        %v2482 = vclz %v2481
        %v2483 = vsub.s32 %v2482, 2
        %vm2484 = vcmp.gt.s32.totalorder 0, %v2483
        %v2485 = vsel %vm2484, 0, %v2483
        %v2486 = vsub.s32 32, %v2485
        %v2487 = vshll.u32 %v2478, %v2485
        %v2488 = vshrl.u32 %v2470, %v2486
        %v2489 = vor.u32 %v2487, %v2488
        %v2490 = vsub.s32 4294967266, %v2485
        %v2491 = vadd.s32 %v2490, 127
        %v2492 = vshll.u32 %v2491, 23
        %v2493 = vor.u32 4788187, %v2492
        %v2494 = vand.u32 2147483647, %v2493
        %v2496 = vcvt.s32.f32 %v2489
        %v2497 = vmul.f32 %v2496, %v2494
        %v2498 = vxor.u32 %v2497, 2147483648
        %v2499 = vsel %vm2416, %v2498, %v2497
        %v2500 = vsub.s32 4, %v2476
        %v2501 = vsel %vm2416, %v2500, %v2476
        %v2502 = vsel %vm2415, %v2201, %v2499
        %v2503 = vsel %vm2415, 0, %v2501
        %v2504 = vcosq.f32.pop %v2502
        %v2505 = vsinq.f32.pop %v2502
        %vm2506 = vweird.f32 %v2201
        %v2507 = vadd.s32 %v2503, 3
        %v2508 = vand.u32 %v2507, 3
        %vm2509 = vcmp.lt.s32.totalorder %v2508, 2
        %vm2510 = vcmp.eq.s32.totalorder %v2508, 0
        %v2511 = vxor.u32 %v2505, 2147483648
        %v2512 = vsel %vm2510, %v2504, %v2511
        %vm2513 = vcmp.eq.s32.totalorder %v2508, 2
        %v2514 = vxor.u32 %v2504, 2147483648
        %v2515 = vsel %vm2513, %v2514, %v2505
        %v2516 = vsel %vm2509, %v2512, %v2515
        %v2517 = vsel %vm2506, nan, %v2516
        %v2518 = vand.u32 2147483647, %v2202
        %vm2519 = vcmp.le.f32.partialorder %v2518, 0.7853982
        %vm2520 = vcmp.lt.s32.totalorder %v2202, 0
        %v2521 = vand.u32 %v2202, 2139095040
        %v2522 = vshrl.u32 %v2521, 23
        %v2523 = vsub.s32 %v2522, 127
        %v2524 = vand.u32 2147483647, %v2202
        %v2525 = vand.u32 %v2524, 8388607
        %v2526 = vor.u32 %v2525, 8388608
        %v2527 = vsub.s32 0, %v2526
        %v2528 = vadd.s32 %v2523, 1
        %vm2529 = vcmp.gt.s32.totalorder %v2528, 0
        %v2530 = vsel %vm2529, %v2528, 0
        %v2531 = vshrl.u32 %v2530, 5
        %v2532 = vand.u32 %v2530, 31
        %v2533 = vsub.s32 32, %v2532
        %v2534 = vshrl.u32 683565275, %v2533
        %v2535 = vshll.u32 683565275, %v2532
        %v2536 = vshrl.u32 2475754826, %v2533
        %v2537 = vor.u32 %v2535, %v2536
        %v2538 = vshll.u32 2475754826, %v2532
        %v2539 = vshrl.u32 2131351028, %v2533
        %v2540 = vor.u32 %v2538, %v2539
        %v2541 = vshll.u32 2131351028, %v2532
        %v2542 = vshrl.u32 2102212464, %v2533
        %v2543 = vor.u32 %v2541, %v2542
        %v2544 = vshll.u32 2102212464, %v2532
        %v2545 = vshrl.u32 920167782, %v2533
        %v2546 = vor.u32 %v2544, %v2545
        %v2547 = vshll.u32 920167782, %v2532
        %v2548 = vshrl.u32 1326507024, %v2533
        %v2549 = vor.u32 %v2547, %v2548
        %vm2550 = vcmp.lt.s32.totalorder %v2531, 1
        %vm2551 = vcmp.lt.s32.totalorder %v2531, 2
        %vm2552 = vcmp.lt.s32.totalorder %v2531, 3
        %vm2553 = vcmp.lt.s32.totalorder %v2531, 4
        %v2554 = vsel %vm2550, %v2534, %v2537
        %v2555 = vsel %vm2553, %v2543, 2102212464
        %v2556 = vsel %vm2552, %v2540, %v2555
        %v2557 = vsel %vm2551, %v2554, %v2556
        %v2558 = vsel %vm2550, %v2537, %v2540
        %v2559 = vsel %vm2553, %v2546, 920167782
        %v2560 = vsel %vm2552, %v2543, %v2559
        %v2561 = vsel %vm2551, %v2558, %v2560
        %v2562 = vsel %vm2550, %v2540, %v2543
        %v2563 = vsel %vm2553, %v2549, 1326507024
        %v2564 = vsel %vm2552, %v2546, %v2563
        %v2565 = vsel %vm2551, %v2562, %v2564
        %v2566 = vshll.u32 %v2526, 8
        %v2567 = vmul.u32.u64.compose %v2566, %v2565
        %v2568 = vextract.low.u32 %v2567
        %v2569 = vextract.high.u32 %v2567
        %v2570 = vmul.u32.u64.compose %v2566, %v2561
        %v2571 = vextract.low.u32 %v2570
        %v2572 = vextract.high.u32 %v2570
        %v2573 = vmul.u32 %v2566, %v2557
        %v2574 = vadd.s32 %v2569, %v2571
        %vm2575 = vc.u32 %v2569, %v2571
        %v2576 = vadd.s32 %v2572, 1
        %v2577 = vsel %vm2575, %v2576, %v2572
        %v2578 = vadd.s32 %v2573, %v2577
        %v2579 = vadd.s32 %v2578, 536870912
        %v2580 = vshrl.u32 %v2579, 30
        %v2581 = vshll.u32 %v2580, 30
        %v2582 = vsub.s32 %v2578, %v2581
        %vm2583 = vcmp.lt.s32.totalorder %v2582, 0
        %v2584 = vsub.s32 0, %v2582
        %v2585 = vsel %vm2583, %v2584, %v2582
        %v2586 = vclz %v2585
        %v2587 = vsub.s32 %v2586, 2
        %vm2588 = vcmp.gt.s32.totalorder 0, %v2587
        %v2589 = vsel %vm2588, 0, %v2587
        %v2590 = vsub.s32 32, %v2589
        %v2591 = vshll.u32 %v2582, %v2589
        %v2592 = vshrl.u32 %v2574, %v2590
        %v2593 = vor.u32 %v2591, %v2592
        %v2594 = vsub.s32 4294967266, %v2589
        %v2595 = vadd.s32 %v2594, 127
        %v2596 = vshll.u32 %v2595, 23
        %v2597 = vor.u32 4788187, %v2596
        %v2598 = vand.u32 2147483647, %v2597
        %v2600 = vcvt.s32.f32 %v2593
        %v2601 = vmul.f32 %v2600, %v2598
        %v2602 = vxor.u32 %v2601, 2147483648
        %v2603 = vsel %vm2520, %v2602, %v2601
        %v2604 = vsub.s32 4, %v2580
        %v2605 = vsel %vm2520, %v2604, %v2580
        %v2606 = vsel %vm2519, %v2202, %v2603
        %v2607 = vsel %vm2519, 0, %v2605
        %v2608 = vcosq.f32.pop %v2606
        %v2609 = vsinq.f32.pop %v2606
        %vm2610 = vweird.f32 %v2202
        %v2611 = vadd.s32 %v2607, 3
        %v2612 = vand.u32 %v2611, 3
        %vm2613 = vcmp.lt.s32.totalorder %v2612, 2
        %vm2614 = vcmp.eq.s32.totalorder %v2612, 0
        %v2615 = vxor.u32 %v2609, 2147483648
        %v2616 = vsel %vm2614, %v2608, %v2615
        %vm2617 = vcmp.eq.s32.totalorder %v2612, 2
        %v2618 = vxor.u32 %v2608, 2147483648
        %v2619 = vsel %vm2617, %v2618, %v2609
        %v2620 = vsel %vm2613, %v2616, %v2619
        %v2621 = vsel %vm2610, nan, %v2620
        %v2622 = vmul.f32 %v2517, %v2204
        %v2623 = vmul.f32 %v2621, %v2205
        %v2624 = vadd.f32 %v2412, %v2622
        %v2625 = vadd.f32 %v2413, %v2623
        %2626 = vmatprep.subr.mxu0 0.0
        %2627 = vmatpush1.msra.mxu0 %v2412
        %2628 = vmatprep.subr.mxu0 0.0
        %2629 = vmatpush1.msra.mxu0 %v2413
        %2630 = vmatprep.subr.mxu0 0.0
        %2631 = vmatpush1.msra.mxu0 0.0
        %2632 = vmatprep.subr.mxu0 0.0
        %2633 = vmatpush1.msra.mxu0 0.0
        %2634 = vmatprep.subr.mxu0 0.0
        %2635 = vmatpush1.msra.mxu0 0.0
        %2636 = vmatprep.subr.mxu0 0.0
        %2637 = vmatpush1.msra.mxu0 0.0
        %2638 = vmatprep.subr.mxu0 0.0
        %2639 = vmatpush1.msra.mxu0 0.0
        %2640 = vmatprep.subr.mxu0 0.0
        %2641 = vmatpush1.msra.mxu0 0.0
        %2642 = vmatprep.subr.mxu0 0.0
        %2643 = vmatpush1.msra.mxu0 0.0
        %2644 = vmatprep.subr.mxu0 0.0
        %2645 = vmatpush1.msra.mxu0 0.0
        %2646 = vmatprep.subr.mxu0 0.0
        %2647 = vmatpush1.msra.mxu0 0.0
        %2648 = vmatprep.subr.mxu0 0.0
        %2649 = vmatpush1.msra.mxu0 0.0
        %2650 = vmatprep.subr.mxu0 0.0
        %2651 = vmatpush1.msra.mxu0 0.0
        %2652 = vmatprep.subr.mxu0 0.0
        %2653 = vmatpush1.msra.mxu0 0.0
        %2654 = vmatprep.subr.mxu0 0.0
        %2655 = vmatpush1.msra.mxu0 0.0
        %2656 = vmatprep.subr.mxu0 0.0
        %2657 = vmatpush1.msra.mxu0 0.0
        %2658 = vmatprep.subr.mxu0 0.0
        %2659 = vmatpush1.msra.mxu0 0.0
        %2660 = vmatprep.subr.mxu0 0.0
        %2661 = vmatpush1.msra.mxu0 0.0
        %2662 = vmatprep.subr.mxu0 0.0
        %2663 = vmatpush1.msra.mxu0 0.0
        %2664 = vmatprep.subr.mxu0 0.0
        %2665 = vmatpush1.msra.mxu0 0.0
        %2666 = vmatprep.subr.mxu0 0.0
        %2667 = vmatpush1.msra.mxu0 0.0
        %2668 = vmatprep.subr.mxu0 0.0
        %2669 = vmatpush1.msra.mxu0 0.0
        %2670 = vmatprep.subr.mxu0 0.0
        %2671 = vmatpush1.msra.mxu0 0.0
        %2672 = vmatprep.subr.mxu0 0.0
        %2673 = vmatpush1.msra.mxu0 0.0
        %2674 = vmatprep.subr.mxu0 0.0
        %2675 = vmatpush1.msra.mxu0 0.0
        %2676 = vmatprep.subr.mxu0 0.0
        %2677 = vmatpush1.msra.mxu0 0.0
        %2678 = vmatprep.subr.mxu0 0.0
        %2679 = vmatpush1.msra.mxu0 0.0
        %2680 = vmatprep.subr.mxu0 0.0
        %2681 = vmatpush1.msra.mxu0 0.0
        %2682 = vmatprep.subr.mxu0 0.0
        %2683 = vmatpush1.msra.mxu0 0.0
        %2684 = vmatprep.subr.mxu0 0.0
        %2685 = vmatpush1.msra.mxu0 0.0
        %2686 = vmatprep.subr.mxu0 0.0
        %2687 = vmatpush1.msra.mxu0 0.0
        %2688 = vmatprep.subr.mxu0 0.0
        %2689 = vmatpush1.msra.mxu0 0.0
        %2690 = vmatprep.mubr.f32.mxu0 0.0
        %2691 = vmatmul.mubr.f32.gmra.mrb[0].mxu0 %v878
        %v2692 = vpop.f32.mrb[0].mxu0
        %v2693 = vadd.f32 0.0, %v2692
        %v2694 = vpop.f32.mrb[0].mxu0
        %2695 = vdwg.mxu0
        %2696 = vmatprep.subr.mxu0 0.0
        %2697 = vmatpush1.msra.mxu0 %v2622
        %2698 = vmatprep.subr.mxu0 0.0
        %2699 = vmatpush1.msra.mxu0 %v2623
        %2700 = vmatprep.subr.mxu0 0.0
        %2701 = vmatpush1.msra.mxu0 0.0
        %2702 = vmatprep.subr.mxu0 0.0
        %2703 = vmatpush1.msra.mxu0 0.0
        %2704 = vmatprep.subr.mxu0 0.0
        %2705 = vmatpush1.msra.mxu0 0.0
        %2706 = vmatprep.subr.mxu0 0.0
        %2707 = vmatpush1.msra.mxu0 0.0
        %2708 = vmatprep.subr.mxu0 0.0
        %2709 = vmatpush1.msra.mxu0 0.0
        %2710 = vmatprep.subr.mxu0 0.0
        %2711 = vmatpush1.msra.mxu0 0.0
        %2712 = vmatprep.subr.mxu0 0.0
        %2713 = vmatpush1.msra.mxu0 0.0
        %2714 = vmatprep.subr.mxu0 0.0
        %2715 = vmatpush1.msra.mxu0 0.0
        %2716 = vmatprep.subr.mxu0 0.0
        %2717 = vmatpush1.msra.mxu0 0.0
        %2718 = vmatprep.subr.mxu0 0.0
        %2719 = vmatpush1.msra.mxu0 0.0
        %2720 = vmatprep.subr.mxu0 0.0
        %2721 = vmatpush1.msra.mxu0 0.0
        %2722 = vmatprep.subr.mxu0 0.0
        %2723 = vmatpush1.msra.mxu0 0.0
        %2724 = vmatprep.subr.mxu0 0.0
        %2725 = vmatpush1.msra.mxu0 0.0
        %2726 = vmatprep.subr.mxu0 0.0
        %2727 = vmatpush1.msra.mxu0 0.0
        %2728 = vmatprep.subr.mxu0 0.0
        %2729 = vmatpush1.msra.mxu0 0.0
        %2730 = vmatprep.subr.mxu0 0.0
        %2731 = vmatpush1.msra.mxu0 0.0
        %2732 = vmatprep.subr.mxu0 0.0
        %2733 = vmatpush1.msra.mxu0 0.0
        %2734 = vmatprep.subr.mxu0 0.0
        %2735 = vmatpush1.msra.mxu0 0.0
        %2736 = vmatprep.subr.mxu0 0.0
        %2737 = vmatpush1.msra.mxu0 0.0
        %2738 = vmatprep.subr.mxu0 0.0
        %2739 = vmatpush1.msra.mxu0 0.0
        %2740 = vmatprep.subr.mxu0 0.0
        %2741 = vmatpush1.msra.mxu0 0.0
        %2742 = vmatprep.subr.mxu0 0.0
        %2743 = vmatpush1.msra.mxu0 0.0
        %2744 = vmatprep.subr.mxu0 0.0
        %2745 = vmatpush1.msra.mxu0 0.0
        %2746 = vmatprep.subr.mxu0 0.0
        %2747 = vmatpush1.msra.mxu0 0.0
        %2748 = vmatprep.subr.mxu0 0.0
        %2749 = vmatpush1.msra.mxu0 0.0
        %2750 = vmatprep.subr.mxu0 0.0
        %2751 = vmatpush1.msra.mxu0 0.0
        %2752 = vmatprep.subr.mxu0 0.0
        %2753 = vmatpush1.msra.mxu0 0.0
        %2754 = vmatprep.subr.mxu0 0.0
        %2755 = vmatpush1.msra.mxu0 0.0
        %2756 = vmatprep.subr.mxu0 0.0
        %2757 = vmatpush1.msra.mxu0 0.0
        %2758 = vmatprep.subr.mxu0 0.0
        %2759 = vmatpush1.msra.mxu0 0.0
        %2760 = vmatprep.mubr.f32.mxu0 0.0
        %2761 = vmatmul.mubr.f32.gmra.mrb[0].mxu0 %v951
        %v2762 = vpop.f32.mrb[0].mxu0
        %v2763 = vadd.f32 0.0, %v2762
        %v2764 = vpop.f32.mrb[0].mxu0
        %2765 = vdwg.mxu0
        %2766 = vmatprep.subr.mxu0 0.0
        %2767 = vmatpush1.msra.mxu0 %v2624
        %2768 = vmatprep.subr.mxu0 0.0
        %2769 = vmatpush1.msra.mxu0 %v2625
        %2770 = vmatprep.subr.mxu0 0.0
        %2771 = vmatpush1.msra.mxu0 0.0
        %2772 = vmatprep.subr.mxu0 0.0
        %2773 = vmatpush1.msra.mxu0 0.0
        %2774 = vmatprep.subr.mxu0 0.0
        %2775 = vmatpush1.msra.mxu0 0.0
        %2776 = vmatprep.subr.mxu0 0.0
        %2777 = vmatpush1.msra.mxu0 0.0
        %2778 = vmatprep.subr.mxu0 0.0
        %2779 = vmatpush1.msra.mxu0 0.0
        %2780 = vmatprep.subr.mxu0 0.0
        %2781 = vmatpush1.msra.mxu0 0.0
        %2782 = vmatprep.subr.mxu0 0.0
        %2783 = vmatpush1.msra.mxu0 0.0
        %2784 = vmatprep.subr.mxu0 0.0
        %2785 = vmatpush1.msra.mxu0 0.0
        %2786 = vmatprep.subr.mxu0 0.0
        %2787 = vmatpush1.msra.mxu0 0.0
        %2788 = vmatprep.subr.mxu0 0.0
        %2789 = vmatpush1.msra.mxu0 0.0
        %2790 = vmatprep.subr.mxu0 0.0
        %2791 = vmatpush1.msra.mxu0 0.0
        %2792 = vmatprep.subr.mxu0 0.0
        %2793 = vmatpush1.msra.mxu0 0.0
        %2794 = vmatprep.subr.mxu0 0.0
        %2795 = vmatpush1.msra.mxu0 0.0
        %2796 = vmatprep.subr.mxu0 0.0
        %2797 = vmatpush1.msra.mxu0 0.0
        %2798 = vmatprep.subr.mxu0 0.0
        %2799 = vmatpush1.msra.mxu0 0.0
        %2800 = vmatprep.subr.mxu0 0.0
        %2801 = vmatpush1.msra.mxu0 0.0
        %2802 = vmatprep.subr.mxu0 0.0
        %2803 = vmatpush1.msra.mxu0 0.0
        %2804 = vmatprep.subr.mxu0 0.0
        %2805 = vmatpush1.msra.mxu0 0.0
        %2806 = vmatprep.subr.mxu0 0.0
        %2807 = vmatpush1.msra.mxu0 0.0
        %2808 = vmatprep.subr.mxu0 0.0
        %2809 = vmatpush1.msra.mxu0 0.0
        %2810 = vmatprep.subr.mxu0 0.0
        %2811 = vmatpush1.msra.mxu0 0.0
        %2812 = vmatprep.subr.mxu0 0.0
        %2813 = vmatpush1.msra.mxu0 0.0
        %2814 = vmatprep.subr.mxu0 0.0
        %2815 = vmatpush1.msra.mxu0 0.0
        %2816 = vmatprep.subr.mxu0 0.0
        %2817 = vmatpush1.msra.mxu0 0.0
        %2818 = vmatprep.subr.mxu0 0.0
        %2819 = vmatpush1.msra.mxu0 0.0
        %2820 = vmatprep.subr.mxu0 0.0
        %2821 = vmatpush1.msra.mxu0 0.0
        %2822 = vmatprep.subr.mxu0 0.0
        %2823 = vmatpush1.msra.mxu0 0.0
        %2824 = vmatprep.subr.mxu0 0.0
        %2825 = vmatpush1.msra.mxu0 0.0
        %2826 = vmatprep.subr.mxu0 0.0
        %2827 = vmatpush1.msra.mxu0 0.0
        %2828 = vmatprep.subr.mxu0 0.0
        %2829 = vmatpush1.msra.mxu0 0.0
        %2830 = vmatprep.mubr.f32.mxu0 0.0
        %2831 = vmatmul.mubr.f32.gmra.mrb[0].mxu0 %v1024
        %v2832 = vpop.f32.mrb[0].mxu0
        %v2833 = vadd.f32 0.0, %v2832
        %v2834 = vpop.f32.mrb[0].mxu0
        %2835 = vdwg.mxu0
        %v2836 = vsub.f32 %v2693, %v2763
        %v2837 = vsub.f32 %v2833, %v2693
        %v2838 = vsub.f32 %v2837, %v2763
        %v2839 = vadd.f32 %v2836, %v2838
        %v2841 = vsel %vm876, %v2836, 0
        %2843 = vmatprep.subr.mxu0 0.0
        %2844 = vmatpush1.msra.mxu0 %v446
        %2845 = vmatprep.subr.mxu0 0.0
        %2846 = vmatpush1.msra.mxu0 %v447
        %2847 = vmatprep.subr.mxu0 0.0
        %2848 = vmatpush1.msra.mxu0 0.0
        %2849 = vmatprep.subr.mxu0 0.0
        %2850 = vmatpush1.msra.mxu0 0.0
        %2851 = vmatprep.subr.mxu0 0.0
        %2852 = vmatpush1.msra.mxu0 0.0
        %2853 = vmatprep.subr.mxu0 0.0
        %2854 = vmatpush1.msra.mxu0 0.0
        %2855 = vmatprep.subr.mxu0 0.0
        %2856 = vmatpush1.msra.mxu0 0.0
        %2857 = vmatprep.subr.mxu0 0.0
        %2858 = vmatpush1.msra.mxu0 0.0
        %2859 = vmatprep.subr.mxu0 0.0
        %2860 = vmatpush1.msra.mxu0 0.0
        %2861 = vmatprep.subr.mxu0 0.0
        %2862 = vmatpush1.msra.mxu0 0.0
        %2863 = vmatprep.subr.mxu0 0.0
        %2864 = vmatpush1.msra.mxu0 0.0
        %2865 = vmatprep.subr.mxu0 0.0
        %2866 = vmatpush1.msra.mxu0 0.0
        %2867 = vmatprep.subr.mxu0 0.0
        %2868 = vmatpush1.msra.mxu0 0.0
        %2869 = vmatprep.subr.mxu0 0.0
        %2870 = vmatpush1.msra.mxu0 0.0
        %2871 = vmatprep.subr.mxu0 0.0
        %2872 = vmatpush1.msra.mxu0 0.0
        %2873 = vmatprep.subr.mxu0 0.0
        %2874 = vmatpush1.msra.mxu0 0.0
        %2875 = vmatprep.subr.mxu0 0.0
        %2876 = vmatpush1.msra.mxu0 0.0
        %2877 = vmatprep.subr.mxu0 0.0
        %2878 = vmatpush1.msra.mxu0 0.0
        %2879 = vmatprep.subr.mxu0 0.0
        %2880 = vmatpush1.msra.mxu0 0.0
        %2881 = vmatprep.subr.mxu0 0.0
        %2882 = vmatpush1.msra.mxu0 0.0
        %2883 = vmatprep.subr.mxu0 0.0
        %2884 = vmatpush1.msra.mxu0 0.0
        %2885 = vmatprep.subr.mxu0 0.0
        %2886 = vmatpush1.msra.mxu0 0.0
        %2887 = vmatprep.subr.mxu0 0.0
        %2888 = vmatpush1.msra.mxu0 0.0
        %2889 = vmatprep.subr.mxu0 0.0
        %2890 = vmatpush1.msra.mxu0 0.0
        %2891 = vmatprep.subr.mxu0 0.0
        %2892 = vmatpush1.msra.mxu0 0.0
        %2893 = vmatprep.subr.mxu0 0.0
        %2894 = vmatpush1.msra.mxu0 0.0
        %2895 = vmatprep.subr.mxu0 0.0
        %2896 = vmatpush1.msra.mxu0 0.0
        %2897 = vmatprep.subr.mxu0 0.0
        %2898 = vmatpush1.msra.mxu0 0.0
        %2899 = vmatprep.subr.mxu0 0.0
        %2900 = vmatpush1.msra.mxu0 0.0
        %2901 = vmatprep.subr.mxu0 0.0
        %2902 = vmatpush1.msra.mxu0 0.0
        %2903 = vmatprep.subr.mxu0 0.0
        %2904 = vmatpush1.msra.mxu0 0.0
        %2905 = vmatprep.subr.mxu0 0.0
        %2906 = vmatpush1.msra.mxu0 0.0
        %2907 = vmatprep.mubr.f32.mxu0 0.0
        %2908 = vmatmul.mubr.f32.gmra.mrb[0].mxu0 %v2841
        %v2909 = vpop.f32.mrb[0].mxu0
        %v2910 = vadd.f32 0.0, %v2909
        %v2911 = vpop.f32.mrb[0].mxu0
        %2912 = vdwg.mxu0
        %v2914 = vsel %vm876, %v2838, 0
        %2916 = vmatprep.subr.mxu0 0.0
        %2917 = vmatpush1.msra.mxu0 %v448
        %2918 = vmatprep.subr.mxu0 0.0
        %2919 = vmatpush1.msra.mxu0 %v449
        %2920 = vmatprep.subr.mxu0 0.0
        %2921 = vmatpush1.msra.mxu0 0.0
        %2922 = vmatprep.subr.mxu0 0.0
        %2923 = vmatpush1.msra.mxu0 0.0
        %2924 = vmatprep.subr.mxu0 0.0
        %2925 = vmatpush1.msra.mxu0 0.0
        %2926 = vmatprep.subr.mxu0 0.0
        %2927 = vmatpush1.msra.mxu0 0.0
        %2928 = vmatprep.subr.mxu0 0.0
        %2929 = vmatpush1.msra.mxu0 0.0
        %2930 = vmatprep.subr.mxu0 0.0
        %2931 = vmatpush1.msra.mxu0 0.0
        %2932 = vmatprep.subr.mxu0 0.0
        %2933 = vmatpush1.msra.mxu0 0.0
        %2934 = vmatprep.subr.mxu0 0.0
        %2935 = vmatpush1.msra.mxu0 0.0
        %2936 = vmatprep.subr.mxu0 0.0
        %2937 = vmatpush1.msra.mxu0 0.0
        %2938 = vmatprep.subr.mxu0 0.0
        %2939 = vmatpush1.msra.mxu0 0.0
        %2940 = vmatprep.subr.mxu0 0.0
        %2941 = vmatpush1.msra.mxu0 0.0
        %2942 = vmatprep.subr.mxu0 0.0
        %2943 = vmatpush1.msra.mxu0 0.0
        %2944 = vmatprep.subr.mxu0 0.0
        %2945 = vmatpush1.msra.mxu0 0.0
        %2946 = vmatprep.subr.mxu0 0.0
        %2947 = vmatpush1.msra.mxu0 0.0
        %2948 = vmatprep.subr.mxu0 0.0
        %2949 = vmatpush1.msra.mxu0 0.0
        %2950 = vmatprep.subr.mxu0 0.0
        %2951 = vmatpush1.msra.mxu0 0.0
        %2952 = vmatprep.subr.mxu0 0.0
        %2953 = vmatpush1.msra.mxu0 0.0
        %2954 = vmatprep.subr.mxu0 0.0
        %2955 = vmatpush1.msra.mxu0 0.0
        %2956 = vmatprep.subr.mxu0 0.0
        %2957 = vmatpush1.msra.mxu0 0.0
        %2958 = vmatprep.subr.mxu0 0.0
        %2959 = vmatpush1.msra.mxu0 0.0
        %2960 = vmatprep.subr.mxu0 0.0
        %2961 = vmatpush1.msra.mxu0 0.0
        %2962 = vmatprep.subr.mxu0 0.0
        %2963 = vmatpush1.msra.mxu0 0.0
        %2964 = vmatprep.subr.mxu0 0.0
        %2965 = vmatpush1.msra.mxu0 0.0
        %2966 = vmatprep.subr.mxu0 0.0
        %2967 = vmatpush1.msra.mxu0 0.0
        %2968 = vmatprep.subr.mxu0 0.0
        %2969 = vmatpush1.msra.mxu0 0.0
        %2970 = vmatprep.subr.mxu0 0.0
        %2971 = vmatpush1.msra.mxu0 0.0
        %2972 = vmatprep.subr.mxu0 0.0
        %2973 = vmatpush1.msra.mxu0 0.0
        %2974 = vmatprep.subr.mxu0 0.0
        %2975 = vmatpush1.msra.mxu0 0.0
        %2976 = vmatprep.subr.mxu0 0.0
        %2977 = vmatpush1.msra.mxu0 0.0
        %2978 = vmatprep.subr.mxu0 0.0
        %2979 = vmatpush1.msra.mxu0 0.0
        %2980 = vmatprep.mubr.f32.mxu0 0.0
        %2981 = vmatmul.mubr.f32.gmra.mrb[0].mxu0 %v2914
        %v2982 = vpop.f32.mrb[0].mxu0
        %v2983 = vadd.f32 0.0, %v2982
        %v2984 = vpop.f32.mrb[0].mxu0
        %2985 = vdwg.mxu0
        %v2987 = vsel %vm876, %v2839, 0
        %2989 = vmatprep.subr.mxu0 0.0
        %2990 = vmatpush1.msra.mxu0 %v450
        %2991 = vmatprep.subr.mxu0 0.0
        %2992 = vmatpush1.msra.mxu0 %v451
        %2993 = vmatprep.subr.mxu0 0.0
        %2994 = vmatpush1.msra.mxu0 0.0
        %2995 = vmatprep.subr.mxu0 0.0
        %2996 = vmatpush1.msra.mxu0 0.0
        %2997 = vmatprep.subr.mxu0 0.0
        %2998 = vmatpush1.msra.mxu0 0.0
        %2999 = vmatprep.subr.mxu0 0.0
        %3000 = vmatpush1.msra.mxu0 0.0
        %3001 = vmatprep.subr.mxu0 0.0
        %3002 = vmatpush1.msra.mxu0 0.0
        %3003 = vmatprep.subr.mxu0 0.0
        %3004 = vmatpush1.msra.mxu0 0.0
        %3005 = vmatprep.subr.mxu0 0.0
        %3006 = vmatpush1.msra.mxu0 0.0
        %3007 = vmatprep.subr.mxu0 0.0
        %3008 = vmatpush1.msra.mxu0 0.0
        %3009 = vmatprep.subr.mxu0 0.0
        %3010 = vmatpush1.msra.mxu0 0.0
        %3011 = vmatprep.subr.mxu0 0.0
        %3012 = vmatpush1.msra.mxu0 0.0
        %3013 = vmatprep.subr.mxu0 0.0
        %3014 = vmatpush1.msra.mxu0 0.0
        %3015 = vmatprep.subr.mxu0 0.0
        %3016 = vmatpush1.msra.mxu0 0.0
        %3017 = vmatprep.subr.mxu0 0.0
        %3018 = vmatpush1.msra.mxu0 0.0
        %3019 = vmatprep.subr.mxu0 0.0
        %3020 = vmatpush1.msra.mxu0 0.0
        %3021 = vmatprep.subr.mxu0 0.0
        %3022 = vmatpush1.msra.mxu0 0.0
        %3023 = vmatprep.subr.mxu0 0.0
        %3024 = vmatpush1.msra.mxu0 0.0
        %3025 = vmatprep.subr.mxu0 0.0
        %3026 = vmatpush1.msra.mxu0 0.0
        %3027 = vmatprep.subr.mxu0 0.0
        %3028 = vmatpush1.msra.mxu0 0.0
        %3029 = vmatprep.subr.mxu0 0.0
        %3030 = vmatpush1.msra.mxu0 0.0
        %3031 = vmatprep.subr.mxu0 0.0
        %3032 = vmatpush1.msra.mxu0 0.0
        %3033 = vmatprep.subr.mxu0 0.0
        %3034 = vmatpush1.msra.mxu0 0.0
        %3035 = vmatprep.subr.mxu0 0.0
        %3036 = vmatpush1.msra.mxu0 0.0
        %3037 = vmatprep.subr.mxu0 0.0
        %3038 = vmatpush1.msra.mxu0 0.0
        %3039 = vmatprep.subr.mxu0 0.0
        %3040 = vmatpush1.msra.mxu0 0.0
        %3041 = vmatprep.subr.mxu0 0.0
        %3042 = vmatpush1.msra.mxu0 0.0
        %3043 = vmatprep.subr.mxu0 0.0
        %3044 = vmatpush1.msra.mxu0 0.0
        %3045 = vmatprep.subr.mxu0 0.0
        %3046 = vmatpush1.msra.mxu0 0.0
        %3047 = vmatprep.subr.mxu0 0.0
        %3048 = vmatpush1.msra.mxu0 0.0
        %3049 = vmatprep.subr.mxu0 0.0
        %3050 = vmatpush1.msra.mxu0 0.0
        %3051 = vmatprep.subr.mxu0 0.0
        %3052 = vmatpush1.msra.mxu0 0.0
        %3053 = vmatprep.mubr.f32.mxu0 0.0
        %3054 = vmatmul.mubr.f32.gmra.mrb[0].mxu0 %v2987
        %v3055 = vpop.f32.mrb[0].mxu0
        %v3056 = vadd.f32 0.0, %v3055
        %v3057 = vpop.f32.mrb[0].mxu0
        %3058 = vdwg.mxu0
        %v3059 = vsub.f32 %v2910, %v2983
        %v3060 = vsub.f32 %v3056, %v2910
        %v3061 = vsub.f32 %v3060, %v2983
        %v3062 = vmul.f32 %v3059, %v3059
        %v3063 = vmul.f32 %v3061, %v3061
        %v3064 = vadd.f32 %v3062, %v3063
        %s3065 = scalar_lea.vmem %s423, 16 [#allocation7]
        %3066 = vst.msk [vmem:[%s3065] sm:$0xff] %vm1325, %v3064
        %s3067 = scalar_lea.vmem %s430, 16 [#allocation8]
        %3068 = vst.msk [vmem:[%s3067] sm:$0xff] %vm1325, %v3059
        %s3069 = scalar_lea.vmem %s437, 16 [#allocation10]
        %3070 = vst.msk [vmem:[%s3069] sm:$0xff] %vm1325, %v3061
        %s3071 = scalar_lea.vmem %s386, 48 [#allocation5]
        %v3072 = vld [vmem:[%s3071] sm:$0xff]
        %v3073 = vld [vmem:[%s3071 + $0x8] sm:$0xff]
        %s3074 = scalar_lea.vmem %s377, 48 [#allocation2]
        %v3075 = vld [vmem:[%s3074] sm:$0xff]
        %v3076 = vld [vmem:[%s3074 + $0x8] sm:$0xff]
        %v3077 = vand.u32 2147483647, %v3072
        %vm3078 = vcmp.le.f32.partialorder %v3077, 0.7853982
        %vm3079 = vcmp.lt.s32.totalorder %v3072, 0
        %v3080 = vand.u32 %v3072, 2139095040
        %v3081 = vshrl.u32 %v3080, 23
        %v3082 = vsub.s32 %v3081, 127
        %v3083 = vand.u32 2147483647, %v3072
        %v3084 = vand.u32 %v3083, 8388607
        %v3085 = vor.u32 %v3084, 8388608
        %v3086 = vsub.s32 0, %v3085
        %v3087 = vadd.s32 %v3082, 1
        %vm3088 = vcmp.gt.s32.totalorder %v3087, 0
        %v3089 = vsel %vm3088, %v3087, 0
        %v3090 = vshrl.u32 %v3089, 5
        %v3091 = vand.u32 %v3089, 31
        %v3092 = vsub.s32 32, %v3091
        %v3093 = vshrl.u32 683565275, %v3092
        %v3094 = vshll.u32 683565275, %v3091
        %v3095 = vshrl.u32 2475754826, %v3092
        %v3096 = vor.u32 %v3094, %v3095
        %v3097 = vshll.u32 2475754826, %v3091
        %v3098 = vshrl.u32 2131351028, %v3092
        %v3099 = vor.u32 %v3097, %v3098
        %v3100 = vshll.u32 2131351028, %v3091
        %v3101 = vshrl.u32 2102212464, %v3092
        %v3102 = vor.u32 %v3100, %v3101
        %v3103 = vshll.u32 2102212464, %v3091
        %v3104 = vshrl.u32 920167782, %v3092
        %v3105 = vor.u32 %v3103, %v3104
        %v3106 = vshll.u32 920167782, %v3091
        %v3107 = vshrl.u32 1326507024, %v3092
        %v3108 = vor.u32 %v3106, %v3107
        %vm3109 = vcmp.lt.s32.totalorder %v3090, 1
        %vm3110 = vcmp.lt.s32.totalorder %v3090, 2
        %vm3111 = vcmp.lt.s32.totalorder %v3090, 3
        %vm3112 = vcmp.lt.s32.totalorder %v3090, 4
        %v3113 = vsel %vm3109, %v3093, %v3096
        %v3114 = vsel %vm3112, %v3102, 2102212464
        %v3115 = vsel %vm3111, %v3099, %v3114
        %v3116 = vsel %vm3110, %v3113, %v3115
        %v3117 = vsel %vm3109, %v3096, %v3099
        %v3118 = vsel %vm3112, %v3105, 920167782
        %v3119 = vsel %vm3111, %v3102, %v3118
        %v3120 = vsel %vm3110, %v3117, %v3119
        %v3121 = vsel %vm3109, %v3099, %v3102
        %v3122 = vsel %vm3112, %v3108, 1326507024
        %v3123 = vsel %vm3111, %v3105, %v3122
        %v3124 = vsel %vm3110, %v3121, %v3123
        %v3125 = vshll.u32 %v3085, 8
        %v3126 = vmul.u32.u64.compose %v3125, %v3124
        %v3127 = vextract.low.u32 %v3126
        %v3128 = vextract.high.u32 %v3126
        %v3129 = vmul.u32.u64.compose %v3125, %v3120
        %v3130 = vextract.low.u32 %v3129
        %v3131 = vextract.high.u32 %v3129
        %v3132 = vmul.u32 %v3125, %v3116
        %v3133 = vadd.s32 %v3128, %v3130
        %vm3134 = vc.u32 %v3128, %v3130
        %v3135 = vadd.s32 %v3131, 1
        %v3136 = vsel %vm3134, %v3135, %v3131
        %v3137 = vadd.s32 %v3132, %v3136
        %v3138 = vadd.s32 %v3137, 536870912
        %v3139 = vshrl.u32 %v3138, 30
        %v3140 = vshll.u32 %v3139, 30
        %v3141 = vsub.s32 %v3137, %v3140
        %vm3142 = vcmp.lt.s32.totalorder %v3141, 0
        %v3143 = vsub.s32 0, %v3141
        %v3144 = vsel %vm3142, %v3143, %v3141
        %v3145 = vclz %v3144
        %v3146 = vsub.s32 %v3145, 2
        %vm3147 = vcmp.gt.s32.totalorder 0, %v3146
        %v3148 = vsel %vm3147, 0, %v3146
        %v3149 = vsub.s32 32, %v3148
        %v3150 = vshll.u32 %v3141, %v3148
        %v3151 = vshrl.u32 %v3133, %v3149
        %v3152 = vor.u32 %v3150, %v3151
        %v3153 = vsub.s32 4294967266, %v3148
        %v3154 = vadd.s32 %v3153, 127
        %v3155 = vshll.u32 %v3154, 23
        %v3156 = vor.u32 4788187, %v3155
        %v3157 = vand.u32 2147483647, %v3156
        %v3159 = vcvt.s32.f32 %v3152
        %v3160 = vmul.f32 %v3159, %v3157
        %v3161 = vxor.u32 %v3160, 2147483648
        %v3162 = vsel %vm3079, %v3161, %v3160
        %v3163 = vsub.s32 4, %v3139
        %v3164 = vsel %vm3079, %v3163, %v3139
        %v3165 = vsel %vm3078, %v3072, %v3162
        %v3166 = vsel %vm3078, 0, %v3164
        %v3167 = vcosq.f32.pop %v3165
        %v3168 = vsinq.f32.pop %v3165
        %vm3169 = vweird.f32 %v3072
        %v3170 = vand.u32 %v3166, 3
        %vm3171 = vcmp.lt.s32.totalorder %v3170, 2
        %vm3172 = vcmp.eq.s32.totalorder %v3170, 0
        %v3173 = vxor.u32 %v3168, 2147483648
        %v3174 = vsel %vm3172, %v3167, %v3173
        %vm3175 = vcmp.eq.s32.totalorder %v3170, 2
        %v3176 = vxor.u32 %v3167, 2147483648
        %v3177 = vsel %vm3175, %v3176, %v3168
        %v3178 = vsel %vm3171, %v3174, %v3177
        %v3179 = vsel %vm3169, nan, %v3178
        %v3180 = vand.u32 2147483647, %v3073
        %vm3181 = vcmp.le.f32.partialorder %v3180, 0.7853982
        %vm3182 = vcmp.lt.s32.totalorder %v3073, 0
        %v3183 = vand.u32 %v3073, 2139095040
        %v3184 = vshrl.u32 %v3183, 23
        %v3185 = vsub.s32 %v3184, 127
        %v3186 = vand.u32 2147483647, %v3073
        %v3187 = vand.u32 %v3186, 8388607
        %v3188 = vor.u32 %v3187, 8388608
        %v3189 = vsub.s32 0, %v3188
        %v3190 = vadd.s32 %v3185, 1
        %vm3191 = vcmp.gt.s32.totalorder %v3190, 0
        %v3192 = vsel %vm3191, %v3190, 0
        %v3193 = vshrl.u32 %v3192, 5
        %v3194 = vand.u32 %v3192, 31
        %v3195 = vsub.s32 32, %v3194
        %v3196 = vshrl.u32 683565275, %v3195
        %v3197 = vshll.u32 683565275, %v3194
        %v3198 = vshrl.u32 2475754826, %v3195
        %v3199 = vor.u32 %v3197, %v3198
        %v3200 = vshll.u32 2475754826, %v3194
        %v3201 = vshrl.u32 2131351028, %v3195
        %v3202 = vor.u32 %v3200, %v3201
        %v3203 = vshll.u32 2131351028, %v3194
        %v3204 = vshrl.u32 2102212464, %v3195
        %v3205 = vor.u32 %v3203, %v3204
        %v3206 = vshll.u32 2102212464, %v3194
        %v3207 = vshrl.u32 920167782, %v3195
        %v3208 = vor.u32 %v3206, %v3207
        %v3209 = vshll.u32 920167782, %v3194
        %v3210 = vshrl.u32 1326507024, %v3195
        %v3211 = vor.u32 %v3209, %v3210
        %vm3212 = vcmp.lt.s32.totalorder %v3193, 1
        %vm3213 = vcmp.lt.s32.totalorder %v3193, 2
        %vm3214 = vcmp.lt.s32.totalorder %v3193, 3
        %vm3215 = vcmp.lt.s32.totalorder %v3193, 4
        %v3216 = vsel %vm3212, %v3196, %v3199
        %v3217 = vsel %vm3215, %v3205, 2102212464
        %v3218 = vsel %vm3214, %v3202, %v3217
        %v3219 = vsel %vm3213, %v3216, %v3218
        %v3220 = vsel %vm3212, %v3199, %v3202
        %v3221 = vsel %vm3215, %v3208, 920167782
        %v3222 = vsel %vm3214, %v3205, %v3221
        %v3223 = vsel %vm3213, %v3220, %v3222
        %v3224 = vsel %vm3212, %v3202, %v3205
        %v3225 = vsel %vm3215, %v3211, 1326507024
        %v3226 = vsel %vm3214, %v3208, %v3225
        %v3227 = vsel %vm3213, %v3224, %v3226
        %v3228 = vshll.u32 %v3188, 8
        %v3229 = vmul.u32.u64.compose %v3228, %v3227
        %v3230 = vextract.low.u32 %v3229
        %v3231 = vextract.high.u32 %v3229
        %v3232 = vmul.u32.u64.compose %v3228, %v3223
        %v3233 = vextract.low.u32 %v3232
        %v3234 = vextract.high.u32 %v3232
        %v3235 = vmul.u32 %v3228, %v3219
        %v3236 = vadd.s32 %v3231, %v3233
        %vm3237 = vc.u32 %v3231, %v3233
        %v3238 = vadd.s32 %v3234, 1
        %v3239 = vsel %vm3237, %v3238, %v3234
        %v3240 = vadd.s32 %v3235, %v3239
        %v3241 = vadd.s32 %v3240, 536870912
        %v3242 = vshrl.u32 %v3241, 30
        %v3243 = vshll.u32 %v3242, 30
        %v3244 = vsub.s32 %v3240, %v3243
        %vm3245 = vcmp.lt.s32.totalorder %v3244, 0
        %v3246 = vsub.s32 0, %v3244
        %v3247 = vsel %vm3245, %v3246, %v3244
        %v3248 = vclz %v3247
        %v3249 = vsub.s32 %v3248, 2
        %vm3250 = vcmp.gt.s32.totalorder 0, %v3249
        %v3251 = vsel %vm3250, 0, %v3249
        %v3252 = vsub.s32 32, %v3251
        %v3253 = vshll.u32 %v3244, %v3251
        %v3254 = vshrl.u32 %v3236, %v3252
        %v3255 = vor.u32 %v3253, %v3254
        %v3256 = vsub.s32 4294967266, %v3251
        %v3257 = vadd.s32 %v3256, 127
        %v3258 = vshll.u32 %v3257, 23
        %v3259 = vor.u32 4788187, %v3258
        %v3260 = vand.u32 2147483647, %v3259
        %v3262 = vcvt.s32.f32 %v3255
        %v3263 = vmul.f32 %v3262, %v3260
        %v3264 = vxor.u32 %v3263, 2147483648
        %v3265 = vsel %vm3182, %v3264, %v3263
        %v3266 = vsub.s32 4, %v3242
        %v3267 = vsel %vm3182, %v3266, %v3242
        %v3268 = vsel %vm3181, %v3073, %v3265
        %v3269 = vsel %vm3181, 0, %v3267
        %v3270 = vcosq.f32.pop %v3268
        %v3271 = vsinq.f32.pop %v3268
        %vm3272 = vweird.f32 %v3073
        %v3273 = vand.u32 %v3269, 3
        %vm3274 = vcmp.lt.s32.totalorder %v3273, 2
        %vm3275 = vcmp.eq.s32.totalorder %v3273, 0
        %v3276 = vxor.u32 %v3271, 2147483648
        %v3277 = vsel %vm3275, %v3270, %v3276
        %vm3278 = vcmp.eq.s32.totalorder %v3273, 2
        %v3279 = vxor.u32 %v3270, 2147483648
        %v3280 = vsel %vm3278, %v3279, %v3271
        %v3281 = vsel %vm3274, %v3277, %v3280
        %v3282 = vsel %vm3272, nan, %v3281
        %v3283 = vmul.f32 %v3179, %v3075
        %v3284 = vmul.f32 %v3282, %v3076
        %v3285 = vand.u32 2147483647, %v3072
        %vm3286 = vcmp.le.f32.partialorder %v3285, 0.7853982
        %vm3287 = vcmp.lt.s32.totalorder %v3072, 0
        %v3288 = vand.u32 %v3072, 2139095040
        %v3289 = vshrl.u32 %v3288, 23
        %v3290 = vsub.s32 %v3289, 127
        %v3291 = vand.u32 2147483647, %v3072
        %v3292 = vand.u32 %v3291, 8388607
        %v3293 = vor.u32 %v3292, 8388608
        %v3294 = vsub.s32 0, %v3293
        %v3295 = vadd.s32 %v3290, 1
        %vm3296 = vcmp.gt.s32.totalorder %v3295, 0
        %v3297 = vsel %vm3296, %v3295, 0
        %v3298 = vshrl.u32 %v3297, 5
        %v3299 = vand.u32 %v3297, 31
        %v3300 = vsub.s32 32, %v3299
        %v3301 = vshrl.u32 683565275, %v3300
        %v3302 = vshll.u32 683565275, %v3299
        %v3303 = vshrl.u32 2475754826, %v3300
        %v3304 = vor.u32 %v3302, %v3303
        %v3305 = vshll.u32 2475754826, %v3299
        %v3306 = vshrl.u32 2131351028, %v3300
        %v3307 = vor.u32 %v3305, %v3306
        %v3308 = vshll.u32 2131351028, %v3299
        %v3309 = vshrl.u32 2102212464, %v3300
        %v3310 = vor.u32 %v3308, %v3309
        %v3311 = vshll.u32 2102212464, %v3299
        %v3312 = vshrl.u32 920167782, %v3300
        %v3313 = vor.u32 %v3311, %v3312
        %v3314 = vshll.u32 920167782, %v3299
        %v3315 = vshrl.u32 1326507024, %v3300
        %v3316 = vor.u32 %v3314, %v3315
        %vm3317 = vcmp.lt.s32.totalorder %v3298, 1
        %vm3318 = vcmp.lt.s32.totalorder %v3298, 2
        %vm3319 = vcmp.lt.s32.totalorder %v3298, 3
        %vm3320 = vcmp.lt.s32.totalorder %v3298, 4
        %v3321 = vsel %vm3317, %v3301, %v3304
        %v3322 = vsel %vm3320, %v3310, 2102212464
        %v3323 = vsel %vm3319, %v3307, %v3322
        %v3324 = vsel %vm3318, %v3321, %v3323
        %v3325 = vsel %vm3317, %v3304, %v3307
        %v3326 = vsel %vm3320, %v3313, 920167782
        %v3327 = vsel %vm3319, %v3310, %v3326
        %v3328 = vsel %vm3318, %v3325, %v3327
        %v3329 = vsel %vm3317, %v3307, %v3310
        %v3330 = vsel %vm3320, %v3316, 1326507024
        %v3331 = vsel %vm3319, %v3313, %v3330
        %v3332 = vsel %vm3318, %v3329, %v3331
        %v3333 = vshll.u32 %v3293, 8
        %v3334 = vmul.u32.u64.compose %v3333, %v3332
        %v3335 = vextract.low.u32 %v3334
        %v3336 = vextract.high.u32 %v3334
        %v3337 = vmul.u32.u64.compose %v3333, %v3328
        %v3338 = vextract.low.u32 %v3337
        %v3339 = vextract.high.u32 %v3337
        %v3340 = vmul.u32 %v3333, %v3324
        %v3341 = vadd.s32 %v3336, %v3338
        %vm3342 = vc.u32 %v3336, %v3338
        %v3343 = vadd.s32 %v3339, 1
        %v3344 = vsel %vm3342, %v3343, %v3339
        %v3345 = vadd.s32 %v3340, %v3344
        %v3346 = vadd.s32 %v3345, 536870912
        %v3347 = vshrl.u32 %v3346, 30
        %v3348 = vshll.u32 %v3347, 30
        %v3349 = vsub.s32 %v3345, %v3348
        %vm3350 = vcmp.lt.s32.totalorder %v3349, 0
        %v3351 = vsub.s32 0, %v3349
        %v3352 = vsel %vm3350, %v3351, %v3349
        %v3353 = vclz %v3352
        %v3354 = vsub.s32 %v3353, 2
        %vm3355 = vcmp.gt.s32.totalorder 0, %v3354
        %v3356 = vsel %vm3355, 0, %v3354
        %v3357 = vsub.s32 32, %v3356
        %v3358 = vshll.u32 %v3349, %v3356
        %v3359 = vshrl.u32 %v3341, %v3357
        %v3360 = vor.u32 %v3358, %v3359
        %v3361 = vsub.s32 4294967266, %v3356
        %v3362 = vadd.s32 %v3361, 127
        %v3363 = vshll.u32 %v3362, 23
        %v3364 = vor.u32 4788187, %v3363
        %v3365 = vand.u32 2147483647, %v3364
        %v3367 = vcvt.s32.f32 %v3360
        %v3368 = vmul.f32 %v3367, %v3365
        %v3369 = vxor.u32 %v3368, 2147483648
        %v3370 = vsel %vm3287, %v3369, %v3368
        %v3371 = vsub.s32 4, %v3347
        %v3372 = vsel %vm3287, %v3371, %v3347
        %v3373 = vsel %vm3286, %v3072, %v3370
        %v3374 = vsel %vm3286, 0, %v3372
        %v3375 = vcosq.f32.pop %v3373
        %v3376 = vsinq.f32.pop %v3373
        %vm3377 = vweird.f32 %v3072
        %v3378 = vadd.s32 %v3374, 3
        %v3379 = vand.u32 %v3378, 3
        %vm3380 = vcmp.lt.s32.totalorder %v3379, 2
        %vm3381 = vcmp.eq.s32.totalorder %v3379, 0
        %v3382 = vxor.u32 %v3376, 2147483648
        %v3383 = vsel %vm3381, %v3375, %v3382
        %vm3384 = vcmp.eq.s32.totalorder %v3379, 2
        %v3385 = vxor.u32 %v3375, 2147483648
        %v3386 = vsel %vm3384, %v3385, %v3376
        %v3387 = vsel %vm3380, %v3383, %v3386
        %v3388 = vsel %vm3377, nan, %v3387
        %v3389 = vand.u32 2147483647, %v3073
        %vm3390 = vcmp.le.f32.partialorder %v3389, 0.7853982
        %vm3391 = vcmp.lt.s32.totalorder %v3073, 0
        %v3392 = vand.u32 %v3073, 2139095040
        %v3393 = vshrl.u32 %v3392, 23
        %v3394 = vsub.s32 %v3393, 127
        %v3395 = vand.u32 2147483647, %v3073
        %v3396 = vand.u32 %v3395, 8388607
        %v3397 = vor.u32 %v3396, 8388608
        %v3398 = vsub.s32 0, %v3397
        %v3399 = vadd.s32 %v3394, 1
        %vm3400 = vcmp.gt.s32.totalorder %v3399, 0
        %v3401 = vsel %vm3400, %v3399, 0
        %v3402 = vshrl.u32 %v3401, 5
        %v3403 = vand.u32 %v3401, 31
        %v3404 = vsub.s32 32, %v3403
        %v3405 = vshrl.u32 683565275, %v3404
        %v3406 = vshll.u32 683565275, %v3403
        %v3407 = vshrl.u32 2475754826, %v3404
        %v3408 = vor.u32 %v3406, %v3407
        %v3409 = vshll.u32 2475754826, %v3403
        %v3410 = vshrl.u32 2131351028, %v3404
        %v3411 = vor.u32 %v3409, %v3410
        %v3412 = vshll.u32 2131351028, %v3403
        %v3413 = vshrl.u32 2102212464, %v3404
        %v3414 = vor.u32 %v3412, %v3413
        %v3415 = vshll.u32 2102212464, %v3403
        %v3416 = vshrl.u32 920167782, %v3404
        %v3417 = vor.u32 %v3415, %v3416
        %v3418 = vshll.u32 920167782, %v3403
        %v3419 = vshrl.u32 1326507024, %v3404
        %v3420 = vor.u32 %v3418, %v3419
        %vm3421 = vcmp.lt.s32.totalorder %v3402, 1
        %vm3422 = vcmp.lt.s32.totalorder %v3402, 2
        %vm3423 = vcmp.lt.s32.totalorder %v3402, 3
        %vm3424 = vcmp.lt.s32.totalorder %v3402, 4
        %v3425 = vsel %vm3421, %v3405, %v3408
        %v3426 = vsel %vm3424, %v3414, 2102212464
        %v3427 = vsel %vm3423, %v3411, %v3426
        %v3428 = vsel %vm3422, %v3425, %v3427
        %v3429 = vsel %vm3421, %v3408, %v3411
        %v3430 = vsel %vm3424, %v3417, 920167782
        %v3431 = vsel %vm3423, %v3414, %v3430
        %v3432 = vsel %vm3422, %v3429, %v3431
        %v3433 = vsel %vm3421, %v3411, %v3414
        %v3434 = vsel %vm3424, %v3420, 1326507024
        %v3435 = vsel %vm3423, %v3417, %v3434
        %v3436 = vsel %vm3422, %v3433, %v3435
        %v3437 = vshll.u32 %v3397, 8
        %v3438 = vmul.u32.u64.compose %v3437, %v3436
        %v3439 = vextract.low.u32 %v3438
        %v3440 = vextract.high.u32 %v3438
        %v3441 = vmul.u32.u64.compose %v3437, %v3432
        %v3442 = vextract.low.u32 %v3441
        %v3443 = vextract.high.u32 %v3441
        %v3444 = vmul.u32 %v3437, %v3428
        %v3445 = vadd.s32 %v3440, %v3442
        %vm3446 = vc.u32 %v3440, %v3442
        %v3447 = vadd.s32 %v3443, 1
        %v3448 = vsel %vm3446, %v3447, %v3443
        %v3449 = vadd.s32 %v3444, %v3448
        %v3450 = vadd.s32 %v3449, 536870912
        %v3451 = vshrl.u32 %v3450, 30
        %v3452 = vshll.u32 %v3451, 30
        %v3453 = vsub.s32 %v3449, %v3452
        %vm3454 = vcmp.lt.s32.totalorder %v3453, 0
        %v3455 = vsub.s32 0, %v3453
        %v3456 = vsel %vm3454, %v3455, %v3453
        %v3457 = vclz %v3456
        %v3458 = vsub.s32 %v3457, 2
        %vm3459 = vcmp.gt.s32.totalorder 0, %v3458
        %v3460 = vsel %vm3459, 0, %v3458
        %v3461 = vsub.s32 32, %v3460
        %v3462 = vshll.u32 %v3453, %v3460
        %v3463 = vshrl.u32 %v3445, %v3461
        %v3464 = vor.u32 %v3462, %v3463
        %v3465 = vsub.s32 4294967266, %v3460
        %v3466 = vadd.s32 %v3465, 127
        %v3467 = vshll.u32 %v3466, 23
        %v3468 = vor.u32 4788187, %v3467
        %v3469 = vand.u32 2147483647, %v3468
        %v3471 = vcvt.s32.f32 %v3464
        %v3472 = vmul.f32 %v3471, %v3469
        %v3473 = vxor.u32 %v3472, 2147483648
        %v3474 = vsel %vm3391, %v3473, %v3472
        %v3475 = vsub.s32 4, %v3451
        %v3476 = vsel %vm3391, %v3475, %v3451
        %v3477 = vsel %vm3390, %v3073, %v3474
        %v3478 = vsel %vm3390, 0, %v3476
        %v3479 = vcosq.f32.pop %v3477
        %v3480 = vsinq.f32.pop %v3477
        %vm3481 = vweird.f32 %v3073
        %v3482 = vadd.s32 %v3478, 3
        %v3483 = vand.u32 %v3482, 3
        %vm3484 = vcmp.lt.s32.totalorder %v3483, 2
        %vm3485 = vcmp.eq.s32.totalorder %v3483, 0
        %v3486 = vxor.u32 %v3480, 2147483648
        %v3487 = vsel %vm3485, %v3479, %v3486
        %vm3488 = vcmp.eq.s32.totalorder %v3483, 2
        %v3489 = vxor.u32 %v3479, 2147483648
        %v3490 = vsel %vm3488, %v3489, %v3480
        %v3491 = vsel %vm3484, %v3487, %v3490
        %v3492 = vsel %vm3481, nan, %v3491
        %v3493 = vmul.f32 %v3388, %v3075
        %v3494 = vmul.f32 %v3492, %v3076
        %v3495 = vadd.f32 %v3283, %v3493
        %v3496 = vadd.f32 %v3284, %v3494
        %3497 = vmatprep.subr.mxu0 0.0
        %3498 = vmatpush1.msra.mxu0 %v3283
        %3499 = vmatprep.subr.mxu0 0.0
        %3500 = vmatpush1.msra.mxu0 %v3284
        %3501 = vmatprep.subr.mxu0 0.0
        %3502 = vmatpush1.msra.mxu0 0.0
        %3503 = vmatprep.subr.mxu0 0.0
        %3504 = vmatpush1.msra.mxu0 0.0
        %3505 = vmatprep.subr.mxu0 0.0
        %3506 = vmatpush1.msra.mxu0 0.0
        %3507 = vmatprep.subr.mxu0 0.0
        %3508 = vmatpush1.msra.mxu0 0.0
        %3509 = vmatprep.subr.mxu0 0.0
        %3510 = vmatpush1.msra.mxu0 0.0
        %3511 = vmatprep.subr.mxu0 0.0
        %3512 = vmatpush1.msra.mxu0 0.0
        %3513 = vmatprep.subr.mxu0 0.0
        %3514 = vmatpush1.msra.mxu0 0.0
        %3515 = vmatprep.subr.mxu0 0.0
        %3516 = vmatpush1.msra.mxu0 0.0
        %3517 = vmatprep.subr.mxu0 0.0
        %3518 = vmatpush1.msra.mxu0 0.0
        %3519 = vmatprep.subr.mxu0 0.0
        %3520 = vmatpush1.msra.mxu0 0.0
        %3521 = vmatprep.subr.mxu0 0.0
        %3522 = vmatpush1.msra.mxu0 0.0
        %3523 = vmatprep.subr.mxu0 0.0
        %3524 = vmatpush1.msra.mxu0 0.0
        %3525 = vmatprep.subr.mxu0 0.0
        %3526 = vmatpush1.msra.mxu0 0.0
        %3527 = vmatprep.subr.mxu0 0.0
        %3528 = vmatpush1.msra.mxu0 0.0
        %3529 = vmatprep.subr.mxu0 0.0
        %3530 = vmatpush1.msra.mxu0 0.0
        %3531 = vmatprep.subr.mxu0 0.0
        %3532 = vmatpush1.msra.mxu0 0.0
        %3533 = vmatprep.subr.mxu0 0.0
        %3534 = vmatpush1.msra.mxu0 0.0
        %3535 = vmatprep.subr.mxu0 0.0
        %3536 = vmatpush1.msra.mxu0 0.0
        %3537 = vmatprep.subr.mxu0 0.0
        %3538 = vmatpush1.msra.mxu0 0.0
        %3539 = vmatprep.subr.mxu0 0.0
        %3540 = vmatpush1.msra.mxu0 0.0
        %3541 = vmatprep.subr.mxu0 0.0
        %3542 = vmatpush1.msra.mxu0 0.0
        %3543 = vmatprep.subr.mxu0 0.0
        %3544 = vmatpush1.msra.mxu0 0.0
        %3545 = vmatprep.subr.mxu0 0.0
        %3546 = vmatpush1.msra.mxu0 0.0
        %3547 = vmatprep.subr.mxu0 0.0
        %3548 = vmatpush1.msra.mxu0 0.0
        %3549 = vmatprep.subr.mxu0 0.0
        %3550 = vmatpush1.msra.mxu0 0.0
        %3551 = vmatprep.subr.mxu0 0.0
        %3552 = vmatpush1.msra.mxu0 0.0
        %3553 = vmatprep.subr.mxu0 0.0
        %3554 = vmatpush1.msra.mxu0 0.0
        %3555 = vmatprep.subr.mxu0 0.0
        %3556 = vmatpush1.msra.mxu0 0.0
        %3557 = vmatprep.subr.mxu0 0.0
        %3558 = vmatpush1.msra.mxu0 0.0
        %3559 = vmatprep.subr.mxu0 0.0
        %3560 = vmatpush1.msra.mxu0 0.0
        %3561 = vmatprep.mubr.f32.mxu0 0.0
        %3562 = vmatmul.mubr.f32.gmra.mrb[0].mxu0 %v878
        %v3563 = vpop.f32.mrb[0].mxu0
        %v3564 = vadd.f32 0.0, %v3563
        %v3565 = vpop.f32.mrb[0].mxu0
        %3566 = vdwg.mxu0
        %3567 = vmatprep.subr.mxu0 0.0
        %3568 = vmatpush1.msra.mxu0 %v3493
        %3569 = vmatprep.subr.mxu0 0.0
        %3570 = vmatpush1.msra.mxu0 %v3494
        %3571 = vmatprep.subr.mxu0 0.0
        %3572 = vmatpush1.msra.mxu0 0.0
        %3573 = vmatprep.subr.mxu0 0.0
        %3574 = vmatpush1.msra.mxu0 0.0
        %3575 = vmatprep.subr.mxu0 0.0
        %3576 = vmatpush1.msra.mxu0 0.0
        %3577 = vmatprep.subr.mxu0 0.0
        %3578 = vmatpush1.msra.mxu0 0.0
        %3579 = vmatprep.subr.mxu0 0.0
        %3580 = vmatpush1.msra.mxu0 0.0
        %3581 = vmatprep.subr.mxu0 0.0
        %3582 = vmatpush1.msra.mxu0 0.0
        %3583 = vmatprep.subr.mxu0 0.0
        %3584 = vmatpush1.msra.mxu0 0.0
        %3585 = vmatprep.subr.mxu0 0.0
        %3586 = vmatpush1.msra.mxu0 0.0
        %3587 = vmatprep.subr.mxu0 0.0
        %3588 = vmatpush1.msra.mxu0 0.0
        %3589 = vmatprep.subr.mxu0 0.0
        %3590 = vmatpush1.msra.mxu0 0.0
        %3591 = vmatprep.subr.mxu0 0.0
        %3592 = vmatpush1.msra.mxu0 0.0
        %3593 = vmatprep.subr.mxu0 0.0
        %3594 = vmatpush1.msra.mxu0 0.0
        %3595 = vmatprep.subr.mxu0 0.0
        %3596 = vmatpush1.msra.mxu0 0.0
        %3597 = vmatprep.subr.mxu0 0.0
        %3598 = vmatpush1.msra.mxu0 0.0
        %3599 = vmatprep.subr.mxu0 0.0
        %3600 = vmatpush1.msra.mxu0 0.0
        %3601 = vmatprep.subr.mxu0 0.0
        %3602 = vmatpush1.msra.mxu0 0.0
        %3603 = vmatprep.subr.mxu0 0.0
        %3604 = vmatpush1.msra.mxu0 0.0
        %3605 = vmatprep.subr.mxu0 0.0
        %3606 = vmatpush1.msra.mxu0 0.0
        %3607 = vmatprep.subr.mxu0 0.0
        %3608 = vmatpush1.msra.mxu0 0.0
        %3609 = vmatprep.subr.mxu0 0.0
        %3610 = vmatpush1.msra.mxu0 0.0
        %3611 = vmatprep.subr.mxu0 0.0
        %3612 = vmatpush1.msra.mxu0 0.0
        %3613 = vmatprep.subr.mxu0 0.0
        %3614 = vmatpush1.msra.mxu0 0.0
        %3615 = vmatprep.subr.mxu0 0.0
        %3616 = vmatpush1.msra.mxu0 0.0
        %3617 = vmatprep.subr.mxu0 0.0
        %3618 = vmatpush1.msra.mxu0 0.0
        %3619 = vmatprep.subr.mxu0 0.0
        %3620 = vmatpush1.msra.mxu0 0.0
        %3621 = vmatprep.subr.mxu0 0.0
        %3622 = vmatpush1.msra.mxu0 0.0
        %3623 = vmatprep.subr.mxu0 0.0
        %3624 = vmatpush1.msra.mxu0 0.0
        %3625 = vmatprep.subr.mxu0 0.0
        %3626 = vmatpush1.msra.mxu0 0.0
        %3627 = vmatprep.subr.mxu0 0.0
        %3628 = vmatpush1.msra.mxu0 0.0
        %3629 = vmatprep.subr.mxu0 0.0
        %3630 = vmatpush1.msra.mxu0 0.0
        %3631 = vmatprep.mubr.f32.mxu0 0.0
        %3632 = vmatmul.mubr.f32.gmra.mrb[0].mxu0 %v951
        %v3633 = vpop.f32.mrb[0].mxu0
        %v3634 = vadd.f32 0.0, %v3633
        %v3635 = vpop.f32.mrb[0].mxu0
        %3636 = vdwg.mxu0
        %3637 = vmatprep.subr.mxu0 0.0
        %3638 = vmatpush1.msra.mxu0 %v3495
        %3639 = vmatprep.subr.mxu0 0.0
        %3640 = vmatpush1.msra.mxu0 %v3496
        %3641 = vmatprep.subr.mxu0 0.0
        %3642 = vmatpush1.msra.mxu0 0.0
        %3643 = vmatprep.subr.mxu0 0.0
        %3644 = vmatpush1.msra.mxu0 0.0
        %3645 = vmatprep.subr.mxu0 0.0
        %3646 = vmatpush1.msra.mxu0 0.0
        %3647 = vmatprep.subr.mxu0 0.0
        %3648 = vmatpush1.msra.mxu0 0.0
        %3649 = vmatprep.subr.mxu0 0.0
        %3650 = vmatpush1.msra.mxu0 0.0
        %3651 = vmatprep.subr.mxu0 0.0
        %3652 = vmatpush1.msra.mxu0 0.0
        %3653 = vmatprep.subr.mxu0 0.0
        %3654 = vmatpush1.msra.mxu0 0.0
        %3655 = vmatprep.subr.mxu0 0.0
        %3656 = vmatpush1.msra.mxu0 0.0
        %3657 = vmatprep.subr.mxu0 0.0
        %3658 = vmatpush1.msra.mxu0 0.0
        %3659 = vmatprep.subr.mxu0 0.0
        %3660 = vmatpush1.msra.mxu0 0.0
        %3661 = vmatprep.subr.mxu0 0.0
        %3662 = vmatpush1.msra.mxu0 0.0
        %3663 = vmatprep.subr.mxu0 0.0
        %3664 = vmatpush1.msra.mxu0 0.0
        %3665 = vmatprep.subr.mxu0 0.0
        %3666 = vmatpush1.msra.mxu0 0.0
        %3667 = vmatprep.subr.mxu0 0.0
        %3668 = vmatpush1.msra.mxu0 0.0
        %3669 = vmatprep.subr.mxu0 0.0
        %3670 = vmatpush1.msra.mxu0 0.0
        %3671 = vmatprep.subr.mxu0 0.0
        %3672 = vmatpush1.msra.mxu0 0.0
        %3673 = vmatprep.subr.mxu0 0.0
        %3674 = vmatpush1.msra.mxu0 0.0
        %3675 = vmatprep.subr.mxu0 0.0
        %3676 = vmatpush1.msra.mxu0 0.0
        %3677 = vmatprep.subr.mxu0 0.0
        %3678 = vmatpush1.msra.mxu0 0.0
        %3679 = vmatprep.subr.mxu0 0.0
        %3680 = vmatpush1.msra.mxu0 0.0
        %3681 = vmatprep.subr.mxu0 0.0
        %3682 = vmatpush1.msra.mxu0 0.0
        %3683 = vmatprep.subr.mxu0 0.0
        %3684 = vmatpush1.msra.mxu0 0.0
        %3685 = vmatprep.subr.mxu0 0.0
        %3686 = vmatpush1.msra.mxu0 0.0
        %3687 = vmatprep.subr.mxu0 0.0
        %3688 = vmatpush1.msra.mxu0 0.0
        %3689 = vmatprep.subr.mxu0 0.0
        %3690 = vmatpush1.msra.mxu0 0.0
        %3691 = vmatprep.subr.mxu0 0.0
        %3692 = vmatpush1.msra.mxu0 0.0
        %3693 = vmatprep.subr.mxu0 0.0
        %3694 = vmatpush1.msra.mxu0 0.0
        %3695 = vmatprep.subr.mxu0 0.0
        %3696 = vmatpush1.msra.mxu0 0.0
        %3697 = vmatprep.subr.mxu0 0.0
        %3698 = vmatpush1.msra.mxu0 0.0
        %3699 = vmatprep.subr.mxu0 0.0
        %3700 = vmatpush1.msra.mxu0 0.0
        %3701 = vmatprep.mubr.f32.mxu0 0.0
        %3702 = vmatmul.mubr.f32.gmra.mrb[0].mxu0 %v1024
        %v3703 = vpop.f32.mrb[0].mxu0
        %v3704 = vadd.f32 0.0, %v3703
        %v3705 = vpop.f32.mrb[0].mxu0
        %3706 = vdwg.mxu0
        %v3707 = vsub.f32 %v3564, %v3634
        %v3708 = vsub.f32 %v3704, %v3564
        %v3709 = vsub.f32 %v3708, %v3634
        %v3710 = vadd.f32 %v3707, %v3709
        %v3712 = vsel %vm876, %v3707, 0
        %3714 = vmatprep.subr.mxu0 0.0
        %3715 = vmatpush1.msra.mxu0 %v446
        %3716 = vmatprep.subr.mxu0 0.0
        %3717 = vmatpush1.msra.mxu0 %v447
        %3718 = vmatprep.subr.mxu0 0.0
        %3719 = vmatpush1.msra.mxu0 0.0
        %3720 = vmatprep.subr.mxu0 0.0
        %3721 = vmatpush1.msra.mxu0 0.0
        %3722 = vmatprep.subr.mxu0 0.0
        %3723 = vmatpush1.msra.mxu0 0.0
        %3724 = vmatprep.subr.mxu0 0.0
        %3725 = vmatpush1.msra.mxu0 0.0
        %3726 = vmatprep.subr.mxu0 0.0
        %3727 = vmatpush1.msra.mxu0 0.0
        %3728 = vmatprep.subr.mxu0 0.0
        %3729 = vmatpush1.msra.mxu0 0.0
        %3730 = vmatprep.subr.mxu0 0.0
        %3731 = vmatpush1.msra.mxu0 0.0
        %3732 = vmatprep.subr.mxu0 0.0
        %3733 = vmatpush1.msra.mxu0 0.0
        %3734 = vmatprep.subr.mxu0 0.0
        %3735 = vmatpush1.msra.mxu0 0.0
        %3736 = vmatprep.subr.mxu0 0.0
        %3737 = vmatpush1.msra.mxu0 0.0
        %3738 = vmatprep.subr.mxu0 0.0
        %3739 = vmatpush1.msra.mxu0 0.0
        %3740 = vmatprep.subr.mxu0 0.0
        %3741 = vmatpush1.msra.mxu0 0.0
        %3742 = vmatprep.subr.mxu0 0.0
        %3743 = vmatpush1.msra.mxu0 0.0
        %3744 = vmatprep.subr.mxu0 0.0
        %3745 = vmatpush1.msra.mxu0 0.0
        %3746 = vmatprep.subr.mxu0 0.0
        %3747 = vmatpush1.msra.mxu0 0.0
        %3748 = vmatprep.subr.mxu0 0.0
        %3749 = vmatpush1.msra.mxu0 0.0
        %3750 = vmatprep.subr.mxu0 0.0
        %3751 = vmatpush1.msra.mxu0 0.0
        %3752 = vmatprep.subr.mxu0 0.0
        %3753 = vmatpush1.msra.mxu0 0.0
        %3754 = vmatprep.subr.mxu0 0.0
        %3755 = vmatpush1.msra.mxu0 0.0
        %3756 = vmatprep.subr.mxu0 0.0
        %3757 = vmatpush1.msra.mxu0 0.0
        %3758 = vmatprep.subr.mxu0 0.0
        %3759 = vmatpush1.msra.mxu0 0.0
        %3760 = vmatprep.subr.mxu0 0.0
        %3761 = vmatpush1.msra.mxu0 0.0
        %3762 = vmatprep.subr.mxu0 0.0
        %3763 = vmatpush1.msra.mxu0 0.0
        %3764 = vmatprep.subr.mxu0 0.0
        %3765 = vmatpush1.msra.mxu0 0.0
        %3766 = vmatprep.subr.mxu0 0.0
        %3767 = vmatpush1.msra.mxu0 0.0
        %3768 = vmatprep.subr.mxu0 0.0
        %3769 = vmatpush1.msra.mxu0 0.0
        %3770 = vmatprep.subr.mxu0 0.0
        %3771 = vmatpush1.msra.mxu0 0.0
        %3772 = vmatprep.subr.mxu0 0.0
        %3773 = vmatpush1.msra.mxu0 0.0
        %3774 = vmatprep.subr.mxu0 0.0
        %3775 = vmatpush1.msra.mxu0 0.0
        %3776 = vmatprep.subr.mxu0 0.0
        %3777 = vmatpush1.msra.mxu0 0.0
        %3778 = vmatprep.mubr.f32.mxu0 0.0
        %3779 = vmatmul.mubr.f32.gmra.mrb[0].mxu0 %v3712
        %v3780 = vpop.f32.mrb[0].mxu0
        %v3781 = vadd.f32 0.0, %v3780
        %v3782 = vpop.f32.mrb[0].mxu0
        %3783 = vdwg.mxu0
        %v3785 = vsel %vm876, %v3709, 0
        %3787 = vmatprep.subr.mxu0 0.0
        %3788 = vmatpush1.msra.mxu0 %v448
        %3789 = vmatprep.subr.mxu0 0.0
        %3790 = vmatpush1.msra.mxu0 %v449
        %3791 = vmatprep.subr.mxu0 0.0
        %3792 = vmatpush1.msra.mxu0 0.0
        %3793 = vmatprep.subr.mxu0 0.0
        %3794 = vmatpush1.msra.mxu0 0.0
        %3795 = vmatprep.subr.mxu0 0.0
        %3796 = vmatpush1.msra.mxu0 0.0
        %3797 = vmatprep.subr.mxu0 0.0
        %3798 = vmatpush1.msra.mxu0 0.0
        %3799 = vmatprep.subr.mxu0 0.0
        %3800 = vmatpush1.msra.mxu0 0.0
        %3801 = vmatprep.subr.mxu0 0.0
        %3802 = vmatpush1.msra.mxu0 0.0
        %3803 = vmatprep.subr.mxu0 0.0
        %3804 = vmatpush1.msra.mxu0 0.0
        %3805 = vmatprep.subr.mxu0 0.0
        %3806 = vmatpush1.msra.mxu0 0.0
        %3807 = vmatprep.subr.mxu0 0.0
        %3808 = vmatpush1.msra.mxu0 0.0
        %3809 = vmatprep.subr.mxu0 0.0
        %3810 = vmatpush1.msra.mxu0 0.0
        %3811 = vmatprep.subr.mxu0 0.0
        %3812 = vmatpush1.msra.mxu0 0.0
        %3813 = vmatprep.subr.mxu0 0.0
        %3814 = vmatpush1.msra.mxu0 0.0
        %3815 = vmatprep.subr.mxu0 0.0
        %3816 = vmatpush1.msra.mxu0 0.0
        %3817 = vmatprep.subr.mxu0 0.0
        %3818 = vmatpush1.msra.mxu0 0.0
        %3819 = vmatprep.subr.mxu0 0.0
        %3820 = vmatpush1.msra.mxu0 0.0
        %3821 = vmatprep.subr.mxu0 0.0
        %3822 = vmatpush1.msra.mxu0 0.0
        %3823 = vmatprep.subr.mxu0 0.0
        %3824 = vmatpush1.msra.mxu0 0.0
        %3825 = vmatprep.subr.mxu0 0.0
        %3826 = vmatpush1.msra.mxu0 0.0
        %3827 = vmatprep.subr.mxu0 0.0
        %3828 = vmatpush1.msra.mxu0 0.0
        %3829 = vmatprep.subr.mxu0 0.0
        %3830 = vmatpush1.msra.mxu0 0.0
        %3831 = vmatprep.subr.mxu0 0.0
        %3832 = vmatpush1.msra.mxu0 0.0
        %3833 = vmatprep.subr.mxu0 0.0
        %3834 = vmatpush1.msra.mxu0 0.0
        %3835 = vmatprep.subr.mxu0 0.0
        %3836 = vmatpush1.msra.mxu0 0.0
        %3837 = vmatprep.subr.mxu0 0.0
        %3838 = vmatpush1.msra.mxu0 0.0
        %3839 = vmatprep.subr.mxu0 0.0
        %3840 = vmatpush1.msra.mxu0 0.0
        %3841 = vmatprep.subr.mxu0 0.0
        %3842 = vmatpush1.msra.mxu0 0.0
        %3843 = vmatprep.subr.mxu0 0.0
        %3844 = vmatpush1.msra.mxu0 0.0
        %3845 = vmatprep.subr.mxu0 0.0
        %3846 = vmatpush1.msra.mxu0 0.0
        %3847 = vmatprep.subr.mxu0 0.0
        %3848 = vmatpush1.msra.mxu0 0.0
        %3849 = vmatprep.subr.mxu0 0.0
        %3850 = vmatpush1.msra.mxu0 0.0
        %3851 = vmatprep.mubr.f32.mxu0 0.0
        %3852 = vmatmul.mubr.f32.gmra.mrb[0].mxu0 %v3785
        %v3853 = vpop.f32.mrb[0].mxu0
        %v3854 = vadd.f32 0.0, %v3853
        %v3855 = vpop.f32.mrb[0].mxu0
        %3856 = vdwg.mxu0
        %v3858 = vsel %vm876, %v3710, 0
        %3860 = vmatprep.subr.mxu0 0.0
        %3861 = vmatpush1.msra.mxu0 %v450
        %3862 = vmatprep.subr.mxu0 0.0
        %3863 = vmatpush1.msra.mxu0 %v451
        %3864 = vmatprep.subr.mxu0 0.0
        %3865 = vmatpush1.msra.mxu0 0.0
        %3866 = vmatprep.subr.mxu0 0.0
        %3867 = vmatpush1.msra.mxu0 0.0
        %3868 = vmatprep.subr.mxu0 0.0
        %3869 = vmatpush1.msra.mxu0 0.0
        %3870 = vmatprep.subr.mxu0 0.0
        %3871 = vmatpush1.msra.mxu0 0.0
        %3872 = vmatprep.subr.mxu0 0.0
        %3873 = vmatpush1.msra.mxu0 0.0
        %3874 = vmatprep.subr.mxu0 0.0
        %3875 = vmatpush1.msra.mxu0 0.0
        %3876 = vmatprep.subr.mxu0 0.0
        %3877 = vmatpush1.msra.mxu0 0.0
        %3878 = vmatprep.subr.mxu0 0.0
        %3879 = vmatpush1.msra.mxu0 0.0
        %3880 = vmatprep.subr.mxu0 0.0
        %3881 = vmatpush1.msra.mxu0 0.0
        %3882 = vmatprep.subr.mxu0 0.0
        %3883 = vmatpush1.msra.mxu0 0.0
        %3884 = vmatprep.subr.mxu0 0.0
        %3885 = vmatpush1.msra.mxu0 0.0
        %3886 = vmatprep.subr.mxu0 0.0
        %3887 = vmatpush1.msra.mxu0 0.0
        %3888 = vmatprep.subr.mxu0 0.0
        %3889 = vmatpush1.msra.mxu0 0.0
        %3890 = vmatprep.subr.mxu0 0.0
        %3891 = vmatpush1.msra.mxu0 0.0
        %3892 = vmatprep.subr.mxu0 0.0
        %3893 = vmatpush1.msra.mxu0 0.0
        %3894 = vmatprep.subr.mxu0 0.0
        %3895 = vmatpush1.msra.mxu0 0.0
        %3896 = vmatprep.subr.mxu0 0.0
        %3897 = vmatpush1.msra.mxu0 0.0
        %3898 = vmatprep.subr.mxu0 0.0
        %3899 = vmatpush1.msra.mxu0 0.0
        %3900 = vmatprep.subr.mxu0 0.0
        %3901 = vmatpush1.msra.mxu0 0.0
        %3902 = vmatprep.subr.mxu0 0.0
        %3903 = vmatpush1.msra.mxu0 0.0
        %3904 = vmatprep.subr.mxu0 0.0
        %3905 = vmatpush1.msra.mxu0 0.0
        %3906 = vmatprep.subr.mxu0 0.0
        %3907 = vmatpush1.msra.mxu0 0.0
        %3908 = vmatprep.subr.mxu0 0.0
        %3909 = vmatpush1.msra.mxu0 0.0
        %3910 = vmatprep.subr.mxu0 0.0
        %3911 = vmatpush1.msra.mxu0 0.0
        %3912 = vmatprep.subr.mxu0 0.0
        %3913 = vmatpush1.msra.mxu0 0.0
        %3914 = vmatprep.subr.mxu0 0.0
        %3915 = vmatpush1.msra.mxu0 0.0
        %3916 = vmatprep.subr.mxu0 0.0
        %3917 = vmatpush1.msra.mxu0 0.0
        %3918 = vmatprep.subr.mxu0 0.0
        %3919 = vmatpush1.msra.mxu0 0.0
        %3920 = vmatprep.subr.mxu0 0.0
        %3921 = vmatpush1.msra.mxu0 0.0
        %3922 = vmatprep.subr.mxu0 0.0
        %3923 = vmatpush1.msra.mxu0 0.0
        %3924 = vmatprep.mubr.f32.mxu0 0.0
        %3925 = vmatmul.mubr.f32.gmra.mrb[0].mxu0 %v3858
        %v3926 = vpop.f32.mrb[0].mxu0
        %v3927 = vadd.f32 0.0, %v3926
        %v3928 = vpop.f32.mrb[0].mxu0
        %3929 = vdwg.mxu0
        %v3930 = vsub.f32 %v3781, %v3854
        %v3931 = vsub.f32 %v3927, %v3781
        %v3932 = vsub.f32 %v3931, %v3854
        %v3933 = vmul.f32 %v3930, %v3930
        %v3934 = vmul.f32 %v3932, %v3932
        %v3935 = vadd.f32 %v3933, %v3934
        %s3936 = scalar_lea.vmem %s423, 24 [#allocation7]
        %3937 = vst.msk [vmem:[%s3936] sm:$0xff] %vm1325, %v3935
        %s3938 = scalar_lea.vmem %s430, 24 [#allocation8]
        %3939 = vst.msk [vmem:[%s3938] sm:$0xff] %vm1325, %v3930
        %s3940 = scalar_lea.vmem %s437, 24 [#allocation10]
        %3941 = vst.msk [vmem:[%s3940] sm:$0xff] %vm1325, %v3932
        %s3942 = sand.u32 %s220, 1
        %s3943 = scalar_lea.sflag [#allocation4], %s3942
        %s3944 = sand.u32 %s220, 1
        %s3945 = smul.addr %s3944, 32
        %s3946 = scalar_lea.vmem [#allocation7], %s3945
        %s3947 = sand.u32 %s34, 1
        %s3948 = scalar_lea.sflag [#allocation9], %s3947
        %s3949 = sand.u32 %s246, 1
        %s3950 = smul.addr %s3949, 32
        %s3951 = scalar_lea.vmem [#allocation8], %s3950
        %s3952 = sand.u32 %s34, 1
        %s3953 = scalar_lea.sflag [#allocation9], %s3952
        %s3954 = sand.u32 %s272, 1
        %s3955 = smul.addr %s3954, 32
        %s3956 = scalar_lea.vmem [#allocation10], %s3955
        // Predicated region
        $region61: #{tpu_custom_call.1} parent=51 // pred_check
          %p3957 = pneg %p230
        $region62: #{tpu_custom_call.1} parent=51 // pred_check_branch
          %3959 = sbr.rel (%p3957) target = $region64
        $region63: #{tpu_custom_call.1} parent=51 // pred_region
          %s3960 = smul.u32 4, %s34
          %s3962 = ssub.s32 512, 512
          %3963 = vsyncadd %s3943, %s3962
          %s3964 = smul.addr %s3960, 128
          %s3965 = scalar_lea.hbm %s8, %s3964
          %s3966 = sshll.u32 %s3946, 4
          %s3967 = int_to_ptr.vmem [resolvable:$true] %s3966
          %3972 = dma.vmem_to_hbm [thread:$0]  %s3967, 512, %s3965, %s3943, 128, 128, 8
        $region64: #{tpu_custom_call.1} parent=51 // pred_fallthru
          _
        // Predicated region
        $region65: #{tpu_custom_call.1} parent=51 // pred_check
          %p3973 = pneg %p256
        $region66: #{tpu_custom_call.1} parent=51 // pred_check_branch
          %3975 = sbr.rel (%p3973) target = $region68
        $region67: #{tpu_custom_call.1} parent=51 // pred_region
          %s3976 = smul.u32 4, %s34
          %s3978 = ssub.s32 512, 512
          %3979 = vsyncadd %s3948, %s3978
          %s3980 = smul.addr %s3976, 128
          %s3981 = scalar_lea.hbm %s9, %s3980
          %s3982 = sshll.u32 %s3951, 4
          %s3983 = int_to_ptr.vmem [resolvable:$true] %s3982
          %3988 = dma.vmem_to_hbm [thread:$0]  %s3983, 512, %s3981, %s3948, 128, 128, 8
        $region68: #{tpu_custom_call.1} parent=51 // pred_fallthru
          _
        // Predicated region
        $region69: #{tpu_custom_call.1} parent=51 // pred_check
          %p3989 = pneg %p282
        $region70: #{tpu_custom_call.1} parent=51 // pred_check_branch
          %3991 = sbr.rel (%p3989) target = $region72
        $region71: #{tpu_custom_call.1} parent=51 // pred_region
          %s3992 = smul.u32 4, %s34
          %s3994 = ssub.s32 512, 512
          %3995 = vsyncadd %s3953, %s3994
          %s3996 = smul.addr %s3992, 128
          %s3997 = scalar_lea.hbm %s10, %s3996
          %s3998 = sshll.u32 %s3956, 4
          %s3999 = int_to_ptr.vmem [resolvable:$true] %s3998
          %4004 = dma.vmem_to_hbm [thread:$0]  %s3999, 512, %s3997, %s3953, 128, 128, 8
        $region72: #{tpu_custom_call.1} parent=51 // pred_fallthru
          _
      $region52: #{tpu_custom_call.1} parent=5 // pred_fallthru
        _
      %p4005 = scmp.le.s32.totalorder 2, %s29
      // Predicated region
      $region73: #{tpu_custom_call.1} parent=5 // pred_check
        %p4006 = pneg %p4005
      $region74: #{tpu_custom_call.1} parent=5 // pred_check_branch
        %4008 = sbr.rel (%p4006) target = $region76
      $region75: #{tpu_custom_call.1} parent=5 // pred_region
        %s4009 = ssub.s32 %s29, 2
        // Predicated region
        $region77: #{tpu_custom_call.1} parent=75 // pred_check
          %p4010 = pneg %p236
        $region78: #{tpu_custom_call.1} parent=75 // pred_check_branch
          %4012 = sbr.rel (%p4010) target = $region80
        $region79: #{tpu_custom_call.1} parent=75 // pred_region
          %s4013 = sand.u32 %s221, 1
          %s4014 = scalar_lea.sflag [#allocation4], %s4013
          %s4015 = sand.u32 %s221, 1
          %s4016 = smul.addr %s4015, 32
          %s4017 = scalar_lea.vmem [#allocation7], %s4016
          %4018 = dma.done %s4014, 512
        $region80: #{tpu_custom_call.1} parent=75 // pred_fallthru
          _
        // Predicated region
        $region81: #{tpu_custom_call.1} parent=75 // pred_check
          %p4019 = pneg %p262
        $region82: #{tpu_custom_call.1} parent=75 // pred_check_branch
          %4021 = sbr.rel (%p4019) target = $region84
        $region83: #{tpu_custom_call.1} parent=75 // pred_region
          %s4022 = sand.u32 %s35, 1
          %s4023 = scalar_lea.sflag [#allocation9], %s4022
          %s4024 = sand.u32 %s247, 1
          %s4025 = smul.addr %s4024, 32
          %s4026 = scalar_lea.vmem [#allocation8], %s4025
          %4027 = dma.done %s4023, 512
        $region84: #{tpu_custom_call.1} parent=75 // pred_fallthru
          _
        // Predicated region
        $region85: #{tpu_custom_call.1} parent=75 // pred_check
          %p4028 = pneg %p288
        $region86: #{tpu_custom_call.1} parent=75 // pred_check_branch
          %4030 = sbr.rel (%p4028) target = $region88
        $region87: #{tpu_custom_call.1} parent=75 // pred_region
          %s4031 = sand.u32 %s35, 1
          %s4032 = scalar_lea.sflag [#allocation9], %s4031
          %s4033 = sand.u32 %s273, 1
          %s4034 = smul.addr %s4033, 32
          %s4035 = scalar_lea.vmem [#allocation10], %s4034
          %4036 = dma.done %s4032, 512
        $region88: #{tpu_custom_call.1} parent=75 // pred_fallthru
          _
      $region76: #{tpu_custom_call.1} parent=5 // pred_fallthru
        _
    $region6: #{tpu_custom_call.1} parent=1 // loop_footer
      %s33 = sadd.s32 1, %s29
    $region7: #{tpu_custom_call.1} parent=1 // loop_footer_branch
      %28 = sbr.rel target = $region3
    $region8: #{tpu_custom_call.1} parent=1 // loop_exit
      _
    %4037 = vsyncpa [#allocation3], 1
    %s4038 = scalar_lea.sflag [#allocation3], 1
    %4039 = vsyncpa %s4038, 1
    %4040 = vsyncpa [#allocation6], 1
    %s4041 = scalar_lea.sflag [#allocation6], 1
    %4042 = vsyncpa %s4041, 1
    %4043 = vsyncpa [#allocation4], 1
    %s4044 = scalar_lea.sflag [#allocation4], 1
    %4045 = vsyncpa %s4044, 1
    %4046 = vsyncpa [#allocation9], 1
    %s4047 = scalar_lea.sflag [#allocation9], 1
    %4048 = vsyncpa %s4047, 1

</llo_original>
